<compile_context>
chip_gen: v7x
topology: tpu7x:2x2x1
jax: 0.10.0
libtpu: 0.0.40
codegen_flags: <defaults>
</compile_context>

<pallas_src>
import functools

import jax
import jax.numpy as jnp
from jax import lax
from jax.experimental import pallas as pl
from jax.experimental.pallas import tpu as pltpu  # noqa: F401 (TPU backend)

N_TICKERS = 16   # stands in for the hard-coded 1737 tickers of the module
SEQ_LEN   = 8    # lookback window
IN_FEAT   = 5    # price features (GRU input_size=5)
HIDDEN    = 32   # hidden size everywhere
N_EDGES   = 8    # number of hyperedges (<= N_TICKERS, old-PyG attention quirk)
HEADS1    = 4
HEADS2    = 1

LANES = 128


def _gate_pad(h):
    # pad packed GRU gate dim 3H up to a multiple of 128 lanes
    return ((3 * h + LANES - 1) // LANES) * LANES


def _slab_layout(h, f, heads1):
    """Row offsets (8-aligned) of every parameter block in the packed slab."""
    layout = {}
    r = 0

    def add(name, nrows):
        nonlocal r
        layout[name] = r
        r = ((r + nrows + 7) // 8) * 8

    add("wih", f)            # (F, 128)        GRU W_ih^T, gate-padded
    add("whh", h)            # (H, 128)        GRU W_hh^T, gate-padded
    add("bih", 1)            # (1, 128)        b_ih + [b_hh_r, b_hh_z, 0]
    add("bhh_n", 1)          # (1, H)          n-gate hidden bias
    add("win", h)            # (H, H)          attention linear_in^T
    add("wo1", h)            # (H, H)          linear_out[:, :H]^T (mix part)
    add("wo2", h)            # (H, H)          linear_out[:, H:]^T (query part)
    add("h1w", h)            # (H, heads1*H)
    add("h1ai", heads1 * h)  # (heads1*H, heads1)  block-diagonal att_i
    add("h1aj", heads1)      # (heads1, heads1*H)  block-row att_j
    add("h1b", 1)            # (1, H)
    add("h2w", h)            # (H, H)
    add("h2ai", 1)           # (1, H)
    add("h2aj", 1)           # (1, H)
    add("h2b", 1)            # (1, H)
    add("linw", 1)           # (1, H)
    add("linb", 1)           # (1, 1)
    return layout, r


# ----------------------------------------------------------------------------
# Fused forward kernel
#   x_ref   : (T*N, F) time-major-flattened price sequence
#   aux_ref : (N, M+T) = [dense incidence | ae*exp(-ab*delta_t) decay]
#   slab_ref: (rows, 128) packed parameter slab
#   output  : (N, 1) predictions
# ----------------------------------------------------------------------------
def hgat_fused_kernel(x_ref, aux_ref, slab_ref, out_ref, *,
                      L, h_dim, n_edges, heads1, heads2,
                      neg_slope, lin_slope):
    H = h_dim
    n_rows = aux_ref.shape[0]
    f_in = x_ref.shape[1]
    t_len = x_ref.shape[0] // n_rows

    # ---------------- unpack parameter slab (static slices: free) ------------
    wih   = slab_ref[L["wih"]:L["wih"] + f_in, :]                  # (F, 128)
    whh   = slab_ref[L["whh"]:L["whh"] + H, :]                     # (H, 128)
    bih   = slab_ref[L["bih"]:L["bih"] + 1, :]                     # (1, 128)
    bhh_n = slab_ref[L["bhh_n"]:L["bhh_n"] + 1, :H]                # (1, H)
    win   = slab_ref[L["win"]:L["win"] + H, :H]
    wo1   = slab_ref[L["wo1"]:L["wo1"] + H, :H]
    wo2   = slab_ref[L["wo2"]:L["wo2"] + H, :H]
    h1w   = slab_ref[L["h1w"]:L["h1w"] + H, :heads1 * H]
    h1ai  = slab_ref[L["h1ai"]:L["h1ai"] + heads1 * H, :heads1]
    h1aj  = slab_ref[L["h1aj"]:L["h1aj"] + heads1, :heads1 * H]
    h1b   = slab_ref[L["h1b"]:L["h1b"] + 1, :H]
    h2w   = slab_ref[L["h2w"]:L["h2w"] + H, :heads2 * H]
    h2ai  = slab_ref[L["h2ai"]:L["h2ai"] + 1, :heads2 * H]
    h2aj  = slab_ref[L["h2aj"]:L["h2aj"] + heads2, :heads2 * H]
    h2b   = slab_ref[L["h2b"]:L["h2b"] + 1, :H]
    linw  = slab_ref[L["linw"]:L["linw"] + 1, :H]
    linb  = slab_ref[L["linb"]:L["linb"] + 1, :1]

    aux  = aux_ref[...]                                            # (N, M+T)
    inc  = aux[:, :n_edges]                                        # (N, M)
    aebt = aux[:, n_edges:n_edges + t_len]                         # (N, T)

    # ---------------- GRU(5 -> 32), h0 = 0, batch_first, fully unrolled ------
    # Hoisted input projection for all timesteps: one (T*N, F) x (F, 128) matmul.
    # bih already contains b_hh for the r/z gates (folded in the wrapper).
    gx_all = (jnp.dot(x_ref[...], wih, preferred_element_type=jnp.float32)
              + bih)                                               # (T*N, 128)
    bhh_n_b = jnp.broadcast_to(bhh_n, (n_rows, H))                 # hoisted bcast

    h = jnp.zeros((n_rows, H), jnp.float32)
    hs = []                    # full GRU sequence kept on-chip
    for t in range(t_len):     # static unroll (T small & fixed)
        gx = gx_all[t * n_rows:(t + 1) * n_rows, :]                # (N, 128)
        gh = jnp.dot(h, whh, preferred_element_type=jnp.float32)   # (N, 128)
        rz = jax.nn.sigmoid(gx[:, :2 * H] + gh[:, :2 * H])
        r = rz[:, :H]
        z = rz[:, H:2 * H]
        ng = jnp.tanh(gx[:, 2 * H:3 * H] + r * (gh[:, 2 * H:3 * H] + bhh_n_b))
        h = (1.0 - z) * ng + z * h
        hs.append(h)

    # ---------------- temporal Attention ('general', output_len == 1) --------
    q = jnp.dot(h, win, preferred_element_type=jnp.float32)        # linear_in(query)

    s_list = [jnp.sum(q * ht, axis=-1, keepdims=True) for ht in hs]  # T x (N,1)
    smax = s_list[0]
    for s_t in s_list[1:]:
        smax = jnp.maximum(smax, s_t)
    ex_list = [jnp.exp(s_t - smax) for s_t in s_list]
    denom = ex_list[0]
    for e_t in ex_list[1:]:
        denom = denom + e_t
    inv_denom = pl.reciprocal(denom, approx=True)                  # softmax 1/sum

    mix = jnp.zeros((n_rows, H), jnp.float32)
    for t in range(t_len):
        w_t = ex_list[t] * inv_denom                               # softmax weight
        c_t = aebt[:, t:t + 1] * w_t                               # ae * bt * weight
        # sum_t [ relu(ae * w * ctx * bt) + w * ctx ]
        mix = mix + w_t * hs[t] + jnp.maximum(c_t * hs[t], 0.0)

    att_out = jnp.tanh(
        jnp.dot(mix, wo1, preferred_element_type=jnp.float32)
        + jnp.dot(q, wo2, preferred_element_type=jnp.float32))     # linear_out([mix,q])

    # ---------------- HypergraphConv(use_attention=True, concat=False) x2 ----
    mask = inc > 0.0
    deg_n = jnp.sum(inc, axis=1, keepdims=True)                    # node degree D
    d_inv = jnp.where(deg_n > 0.0, 1.0 / deg_n, 0.0)
    deg_e = jnp.sum(inc, axis=0, keepdims=True)                    # edge degree B
    b_inv = jnp.where(deg_e > 0.0, 1.0 / deg_e, 0.0)
    dn_lane = (((1,), (1,)), ((), ()))                             # A @ B^T
    dn_sub = (((0,), (0,)), ((), ()))                              # A^T @ B

    def hconv(x_in, w, a_i, a_j, bias, heads):
        xw = jnp.dot(x_in, w, preferred_element_type=jnp.float32)  # (N, heads*H)
        # node scores s_i for ALL heads at once
        if heads > 1:
            # one full-depth (K=heads*H) MXU matmul vs block-diagonal att_i
            s_i = jnp.dot(xw, a_i, preferred_element_type=jnp.float32)   # (N, heads)
        else:
            s_i = jnp.sum(xw * a_i, axis=-1, keepdims=True)              # (N, 1) VPU+XLU
        # hyperedge scores s_j for ALL heads in one op; hyperedge "attr" is the
        # transformed node feature at the edge id (old-PyG quirk, M <= N), so
        # only the first M rows of xw participate.
        s_j = lax.dot_general(a_j, xw[:n_edges, :], dn_lane,
                              preferred_element_type=jnp.float32)        # (heads, M)

        acc = jnp.zeros((n_rows, H), jnp.float32)
        for hh in range(heads):                                          # static unroll
            logits = s_i[:, hh:hh + 1] + s_j[hh:hh + 1, :]               # (N, M)
            logits = jnp.where(logits >= 0.0, logits, neg_slope * logits)  # leaky_relu
            ml = jnp.where(mask, logits, -1e30)
            rmax = jnp.max(ml, axis=1, keepdims=True)
            exv = jnp.where(mask, jnp.exp(ml - rmax), 0.0)
            den = jnp.sum(exv, axis=1, keepdims=True)
            alpha = jnp.where(den > 0.0,
                              exv * pl.reciprocal(den, approx=True), 0.0)
            # TODO(synk): attention dropout (p=0.5, training) not applied — eval semantics.
            xw_h = xw[:, hh * H:(hh + 1) * H]                            # (N, H)
            # node -> hyperedge:  E = B^-1 * alpha^T @ XW
            e_feat = lax.dot_general(alpha * b_inv, xw_h, dn_sub,
                                     preferred_element_type=jnp.float32)  # (M, H)
            # hyperedge -> node:  out = D^-1 * alpha @ E
            acc = acc + jnp.dot(alpha, e_feat,
                                preferred_element_type=jnp.float32) * d_inv
        return acc * (1.0 / heads) + bias                                # mean heads + bias

    x1 = hconv(att_out, h1w, h1ai, h1aj, h1b, heads1)
    x1 = jnp.where(x1 >= 0.0, x1, neg_slope * x1)                        # leaky_relu(0.2)
    x2 = hconv(x1, h2w, h2ai, h2aj, h2b, heads2)
    x2 = jnp.where(x2 >= 0.0, x2, neg_slope * x2)                        # leaky_relu(0.2)

    # ---------------- final Linear(32 -> 1) + leaky_relu(0.01) ---------------
    # VPU multiply + lane reduce — no width-1 MXU matmul.
    y = jnp.sum(x2 * linw, axis=-1, keepdims=True) + linb
    # TODO(synk): at the real 1737-ticker scale emit a lane-dense (1, N) slab
    # instead of this (N, 1) masked-store column; negligible at toy size.
    out_ref[...] = jnp.where(y >= 0.0, y, lin_slope * y)


# ----------------------------------------------------------------------------
# Parameters (deterministic synthetic init; shapes follow the module __init__)
# ----------------------------------------------------------------------------
def init_params(key):
    ks = jax.random.split(key, 16)
    H, F = HIDDEN, IN_FEAT
    u = lambda k, shape, s: jax.random.uniform(k, shape, jnp.float32, -s, s)
    sh = 1.0 / (H ** 0.5)
    p = {}
    # gru (PyTorch GRU weights: (3H, in), (3H, H), biases (3H,))
    p["gru_wih"] = u(ks[0], (3 * H, F), sh)
    p["gru_whh"] = u(ks[1], (3 * H, H), sh)
    p["gru_bih"] = u(ks[2], (3 * H,), sh)
    p["gru_bhh"] = u(ks[3], (3 * H,), sh)
    # attention
    p["att_w_in"] = u(ks[4], (H, H), sh)                         # Linear(32,32,bias=False)
    p["att_w_out"] = u(ks[5], (H, 2 * H), 1.0 / (2 * H) ** 0.5)  # Linear(64,32,bias=False)
    p["att_ae"] = jax.random.normal(ks[6], (N_TICKERS, 1), jnp.float32) * 0.1
    p["att_ab"] = jax.random.uniform(ks[7], (N_TICKERS, 1), jnp.float32, 0.0, 0.5)
    # hatt1: HypergraphConv(32, 32, heads=4) -> weight (32, 4*32), att (heads, 2*32) split
    p["h1_w"] = u(ks[8], (H, HEADS1 * H), (6.0 / (5 * H)) ** 0.5)
    p["h1_att_i"] = u(ks[9], (HEADS1, H), 0.3)
    p["h1_att_j"] = u(ks[10], (HEADS1, H), 0.3)
    p["h1_b"] = jnp.zeros((1, H), jnp.float32)
    # hatt2: heads=1
    p["h2_w"] = u(ks[11], (H, HEADS2 * H), (6.0 / (2 * H)) ** 0.5)
    p["h2_att_i"] = u(ks[12], (HEADS2, H), 0.3)
    p["h2_att_j"] = u(ks[13], (HEADS2, H), 0.3)
    p["h2_b"] = jnp.zeros((1, H), jnp.float32)
    # final Linear(32, 1)
    p["lin_w"] = u(ks[14], (1, H), sh)
    p["lin_b"] = u(ks[15], (1,), sh)
    return p


def _pack_slab(params, layout, rows):
    """Pack every weight/bias into one (rows, 128) f32 slab (single DMA)."""
    H = HIDDEN
    G = _gate_pad(H)
    slab = jnp.zeros((rows, LANES), jnp.float32)

    def put(s, name, a):
        a = jnp.asarray(a, jnp.float32)
        r = layout[name]
        return s.at[r:r + a.shape[0], :a.shape[1]].set(a)

    gate_pad = lambda a: jnp.pad(a, ((0, 0), (0, G - a.shape[1])))  # 3H -> 128 lanes

    bih = params["gru_bih"]
    bhh = params["gru_bhh"]
    # fold the r/z hidden biases into the input bias (n-gate bias stays separate
    # because it sits inside the r*(...) product)
    bih_comb = bih + jnp.concatenate([bhh[:2 * H], jnp.zeros((H,), jnp.float32)])

    # block-diagonal / block-row attention matrices for fused-head scores
    h1ai = jnp.zeros((HEADS1 * H, HEADS1), jnp.float32)
    h1aj = jnp.zeros((HEADS1, HEADS1 * H), jnp.float32)
    for hh in range(HEADS1):
        h1ai = h1ai.at[hh * H:(hh + 1) * H, hh].set(params["h1_att_i"][hh])
        h1aj = h1aj.at[hh, hh * H:(hh + 1) * H].set(params["h1_att_j"][hh])

    slab = put(slab, "wih", gate_pad(params["gru_wih"].T))
    slab = put(slab, "whh", gate_pad(params["gru_whh"].T))
    slab = put(slab, "bih", gate_pad(bih_comb[None, :]))
    slab = put(slab, "bhh_n", bhh[None, 2 * H:])
    slab = put(slab, "win", params["att_w_in"].T)
    slab = put(slab, "wo1", params["att_w_out"][:, :H].T)
    slab = put(slab, "wo2", params["att_w_out"][:, H:].T)
    slab = put(slab, "h1w", params["h1_w"])
    slab = put(slab, "h1ai", h1ai)
    slab = put(slab, "h1aj", h1aj)
    slab = put(slab, "h1b", params["h1_b"])
    slab = put(slab, "h2w", params["h2_w"])
    slab = put(slab, "h2ai", params["h2_att_i"])
    slab = put(slab, "h2aj", params["h2_att_j"])
    slab = put(slab, "h2b", params["h2_b"])
    slab = put(slab, "linw", params["lin_w"])
    slab = put(slab, "linb", params["lin_b"][None, :])
    return slab


# ----------------------------------------------------------------------------
# Full HGAT forward (single pallas_call, 3 input DMAs)
# ----------------------------------------------------------------------------
@functools.partial(jax.jit, static_argnums=(3,))
def hgat_forward(price_input, e, params, num_edges):
    n, t, f = price_input.shape
    H = HIDDEN
    # old-PyG hyperedge-attr quirk (hyperedge_attr = x[edge_id]) needs M <= N
    assert num_edges <= n, "num_edges must be <= num_nodes"

    layout, slab_rows = _slab_layout(H, f, HEADS1)
    slab = _pack_slab(params, layout, slab_rows)

    # dense incidence from hyperedge_index e = [node_ids; hyperedge_ids]
    inc = jnp.zeros((n, num_edges), jnp.float32).at[e[0], e[1]].set(1.0)

    # temporal-decay factors ae * exp(-ab * delta_t), delta_t = T-1-t (wrapper-side)
    delta = jnp.arange(t - 1, -1, -1, dtype=jnp.float32)[None, :]       # (1, T)
    aebt = params["att_ae"] * jnp.exp(-params["att_ab"] * delta)        # (N, T)

    # one per-node auxiliary input: [incidence | decay]
    aux = jnp.concatenate([inc, aebt], axis=1)                          # (N, M+T)

    # time-major, flattened to (T*N, F) for the hoisted GRU input projection
    x_flat = jnp.transpose(price_input, (1, 0, 2)).reshape(t * n, f)

    kernel = functools.partial(
        hgat_fused_kernel, L=layout, h_dim=H, n_edges=num_edges,
        heads1=HEADS1, heads2=HEADS2, neg_slope=0.2, lin_slope=0.01)

    flops = int(
        2 * t * n * f * 3 * H + 2 * t * n * H * 3 * H                   # GRU
        + 2 * n * H * H * 3                                             # attention linears
        + 2 * n * H * H * (HEADS1 + HEADS2)                             # hconv xw
        + 4 * (HEADS1 + HEADS2) * n * num_edges * H                     # aggregation
        + 2 * n * H)                                                    # final linear
    transcendentals = int(t * n * 3 * H + 2 * t * n
                          + (HEADS1 + HEADS2) * n * num_edges + n * H)
    bytes_accessed = int(4 * (x_flat.size + aux.size + slab.size + n))

    # TODO(synk): at the real 1737-ticker scale, tile the hypergraph convs over
    # node rows (grid + BlockSpec, node axis "parallel" for v7x megacore, bf16
    # MXU inputs, bounded head-loop live ranges) instead of whole-array VMEM
    # blocks; trivial at this toy size.
    return pl.pallas_call(
        kernel,
        out_shape=jax.ShapeDtypeStruct((n, 1), jnp.float32),
        cost_estimate=pl.CostEstimate(flops=flops,
                                      transcendentals=transcendentals,
                                      bytes_accessed=bytes_accessed),
    )(x_flat, aux, slab)


if __name__ == "__main__":
    key = jax.random.PRNGKey(0)
    kp, kx = jax.random.split(key)
    params = init_params(kp)

    price_input = jax.random.normal(kx, (N_TICKERS, SEQ_LEN, IN_FEAT), jnp.float32)

    # deterministic hypergraph: each ticker belongs to 2 distinct hyperedges
    nodes = jnp.arange(N_TICKERS, dtype=jnp.int32)
    e = jnp.stack([jnp.concatenate([nodes, nodes]),
                   jnp.concatenate([nodes % N_EDGES, (nodes + 1) % N_EDGES])])

    out = hgat_forward(price_input, e, params, N_EDGES)
    out = jax.block_until_ready(out)
    assert out.shape == (N_TICKERS, 1)
    assert bool(jnp.all(jnp.isfinite(out)))
    print("KERNEL_OK")
</pallas_src>

<mosaic_0001>
module attributes {stable_mosaic.version = 11 : i64} {
  func.func @hgat_fused_kernel(%arg0: memref<128x5xf32, #tpu.memory_space<vmem>>, %arg1: memref<16x16xf32, #tpu.memory_space<vmem>>, %arg2: memref<400x128xf32, #tpu.memory_space<vmem>>, %arg3: memref<16x1xf32, #tpu.memory_space<vmem>>) attributes {dimension_semantics = [], scalar_prefetch = 0 : i64, scratch_operands = 0 : i64, tpu.core_type = #tpu.core_type<tc>} {
    %c0 = arith.constant 0 : index
    %c0_0 = arith.constant 0 : index
    %0 = vector.load %arg2[%c0, %c0_0] : memref<400x128xf32, #tpu.memory_space<vmem>>, vector<5x128xf32>
    %c8 = arith.constant 8 : index
    %c0_1 = arith.constant 0 : index
    %1 = vector.load %arg2[%c8, %c0_1] : memref<400x128xf32, #tpu.memory_space<vmem>>, vector<32x128xf32>
    %c40 = arith.constant 40 : index
    %c0_2 = arith.constant 0 : index
    %2 = vector.load %arg2[%c40, %c0_2] : memref<400x128xf32, #tpu.memory_space<vmem>>, vector<1x128xf32>
    %c48 = arith.constant 48 : index
    %c0_3 = arith.constant 0 : index
    %3 = vector.load %arg2[%c48, %c0_3] : memref<400x128xf32, #tpu.memory_space<vmem>>, vector<1x32xf32>
    %c56 = arith.constant 56 : index
    %c0_4 = arith.constant 0 : index
    %4 = vector.load %arg2[%c56, %c0_4] : memref<400x128xf32, #tpu.memory_space<vmem>>, vector<32x32xf32>
    %c88 = arith.constant 88 : index
    %c0_5 = arith.constant 0 : index
    %5 = vector.load %arg2[%c88, %c0_5] : memref<400x128xf32, #tpu.memory_space<vmem>>, vector<32x32xf32>
    %c120 = arith.constant 120 : index
    %c0_6 = arith.constant 0 : index
    %6 = vector.load %arg2[%c120, %c0_6] : memref<400x128xf32, #tpu.memory_space<vmem>>, vector<32x32xf32>
    %c152 = arith.constant 152 : index
    %c0_7 = arith.constant 0 : index
    %7 = vector.load %arg2[%c152, %c0_7] : memref<400x128xf32, #tpu.memory_space<vmem>>, vector<32x128xf32>
    %c184 = arith.constant 184 : index
    %c0_8 = arith.constant 0 : index
    %8 = vector.load %arg2[%c184, %c0_8] : memref<400x128xf32, #tpu.memory_space<vmem>>, vector<128x4xf32>
    %c312 = arith.constant 312 : index
    %c0_9 = arith.constant 0 : index
    %9 = vector.load %arg2[%c312, %c0_9] : memref<400x128xf32, #tpu.memory_space<vmem>>, vector<4x128xf32>
    %c320 = arith.constant 320 : index
    %c0_10 = arith.constant 0 : index
    %10 = vector.load %arg2[%c320, %c0_10] : memref<400x128xf32, #tpu.memory_space<vmem>>, vector<1x32xf32>
    %c328 = arith.constant 328 : index
    %c0_11 = arith.constant 0 : index
    %11 = vector.load %arg2[%c328, %c0_11] : memref<400x128xf32, #tpu.memory_space<vmem>>, vector<32x32xf32>
    %c360 = arith.constant 360 : index
    %c0_12 = arith.constant 0 : index
    %12 = vector.load %arg2[%c360, %c0_12] : memref<400x128xf32, #tpu.memory_space<vmem>>, vector<1x32xf32>
    %c368 = arith.constant 368 : index
    %c0_13 = arith.constant 0 : index
    %13 = vector.load %arg2[%c368, %c0_13] : memref<400x128xf32, #tpu.memory_space<vmem>>, vector<1x32xf32>
    %c376 = arith.constant 376 : index
    %c0_14 = arith.constant 0 : index
    %14 = vector.load %arg2[%c376, %c0_14] : memref<400x128xf32, #tpu.memory_space<vmem>>, vector<1x32xf32>
    %c384 = arith.constant 384 : index
    %c0_15 = arith.constant 0 : index
    %15 = vector.load %arg2[%c384, %c0_15] : memref<400x128xf32, #tpu.memory_space<vmem>>, vector<1x32xf32>
    %c392 = arith.constant 392 : index
    %c0_16 = arith.constant 0 : index
    %16 = vector.load %arg2[%c392, %c0_16] : memref<400x128xf32, #tpu.memory_space<vmem>>, vector<1x1xf32>
    %c0_17 = arith.constant 0 : index
    %c0_18 = arith.constant 0 : index
    %17 = vector.load %arg1[%c0_17, %c0_18] : memref<16x16xf32, #tpu.memory_space<vmem>>, vector<16x16xf32>
    %18 = vector.extract_strided_slice %17 {offsets = [0, 0], sizes = [16, 8], strides = [1, 1]} : vector<16x16xf32> to vector<16x8xf32>
    %19 = vector.extract_strided_slice %17 {offsets = [0, 8], sizes = [16, 8], strides = [1, 1]} : vector<16x16xf32> to vector<16x8xf32>
    %c0_19 = arith.constant 0 : index
    %c0_20 = arith.constant 0 : index
    %20 = vector.load %arg0[%c0_19, %c0_20] : memref<128x5xf32, #tpu.memory_space<vmem>>, vector<128x5xf32>
    %cst = arith.constant dense<0.000000e+00> : vector<128x128xf32>
    %21 = tpu.matmul %20, %0, %cst {dimension_numbers = #tpu.dot_dimension_numbers<[1], [0], [0], [1], [0, 0, 1, 1], [], []>} : vector<128x5xf32>, vector<5x128xf32>, vector<128x128xf32> -> vector<128x128xf32>
    %22 = vector.broadcast %2 : vector<1x128xf32> to vector<128x128xf32>
    %23 = arith.addf %21, %22 : vector<128x128xf32>
    %24 = vector.shape_cast %3 : vector<1x32xf32> to vector<1x32xf32>
    %25 = vector.broadcast %24 : vector<1x32xf32> to vector<16x32xf32>
    %cst_21 = arith.constant 0.000000e+00 : f32
    %26 = vector.broadcast %cst_21 : f32 to vector<16x32xf32>
    %27 = vector.extract_strided_slice %23 {offsets = [0, 0], sizes = [16, 128], strides = [1, 1]} : vector<128x128xf32> to vector<16x128xf32>
    %cst_22 = arith.constant dense<0.000000e+00> : vector<16x128xf32>
    %28 = tpu.matmul %26, %1, %cst_22 {dimension_numbers = #tpu.dot_dimension_numbers<[1], [0], [0], [1], [0, 0, 1, 1], [], []>} : vector<16x32xf32>, vector<32x128xf32>, vector<16x128xf32> -> vector<16x128xf32>
    %29 = vector.extract_strided_slice %27 {offsets = [0, 0], sizes = [16, 64], strides = [1, 1]} : vector<16x128xf32> to vector<16x64xf32>
    %30 = vector.extract_strided_slice %28 {offsets = [0, 0], sizes = [16, 64], strides = [1, 1]} : vector<16x128xf32> to vector<16x64xf32>
    %31 = arith.addf %29, %30 : vector<16x64xf32>
    %32 = arith.negf %31 : vector<16x64xf32>
    %33 = math.exp %32 : vector<16x64xf32>
    %cst_23 = arith.constant 1.000000e+00 : f32
    %34 = vector.broadcast %cst_23 : f32 to vector<16x64xf32>
    %35 = arith.addf %34, %33 : vector<16x64xf32>
    %36 = arith.divf %34, %35 : vector<16x64xf32>
    %37 = vector.extract_strided_slice %36 {offsets = [0, 0], sizes = [16, 32], strides = [1, 1]} : vector<16x64xf32> to vector<16x32xf32>
    %38 = vector.extract_strided_slice %36 {offsets = [0, 32], sizes = [16, 32], strides = [1, 1]} : vector<16x64xf32> to vector<16x32xf32>
    %39 = vector.extract_strided_slice %27 {offsets = [0, 64], sizes = [16, 32], strides = [1, 1]} : vector<16x128xf32> to vector<16x32xf32>
    %40 = vector.extract_strided_slice %28 {offsets = [0, 64], sizes = [16, 32], strides = [1, 1]} : vector<16x128xf32> to vector<16x32xf32>
    %41 = arith.addf %40, %25 : vector<16x32xf32>
    %42 = arith.mulf %37, %41 : vector<16x32xf32>
    %43 = arith.addf %39, %42 : vector<16x32xf32>
    %44 = math.tanh %43 : vector<16x32xf32>
    %cst_24 = arith.constant 1.000000e+00 : f32
    %45 = vector.broadcast %cst_24 : f32 to vector<16x32xf32>
    %46 = arith.subf %45, %38 : vector<16x32xf32>
    %47 = arith.mulf %46, %44 : vector<16x32xf32>
    %48 = arith.mulf %38, %26 : vector<16x32xf32>
    %49 = arith.addf %47, %48 : vector<16x32xf32>
    %50 = vector.extract_strided_slice %23 {offsets = [16, 0], sizes = [16, 128], strides = [1, 1]} : vector<128x128xf32> to vector<16x128xf32>
    %cst_25 = arith.constant dense<0.000000e+00> : vector<16x128xf32>
    %51 = tpu.matmul %49, %1, %cst_25 {dimension_numbers = #tpu.dot_dimension_numbers<[1], [0], [0], [1], [0, 0, 1, 1], [], []>} : vector<16x32xf32>, vector<32x128xf32>, vector<16x128xf32> -> vector<16x128xf32>
    %52 = vector.extract_strided_slice %50 {offsets = [0, 0], sizes = [16, 64], strides = [1, 1]} : vector<16x128xf32> to vector<16x64xf32>
    %53 = vector.extract_strided_slice %51 {offsets = [0, 0], sizes = [16, 64], strides = [1, 1]} : vector<16x128xf32> to vector<16x64xf32>
    %54 = arith.addf %52, %53 : vector<16x64xf32>
    %55 = arith.negf %54 : vector<16x64xf32>
    %56 = math.exp %55 : vector<16x64xf32>
    %cst_26 = arith.constant 1.000000e+00 : f32
    %57 = vector.broadcast %cst_26 : f32 to vector<16x64xf32>
    %58 = arith.addf %57, %56 : vector<16x64xf32>
    %59 = arith.divf %57, %58 : vector<16x64xf32>
    %60 = vector.extract_strided_slice %59 {offsets = [0, 0], sizes = [16, 32], strides = [1, 1]} : vector<16x64xf32> to vector<16x32xf32>
    %61 = vector.extract_strided_slice %59 {offsets = [0, 32], sizes = [16, 32], strides = [1, 1]} : vector<16x64xf32> to vector<16x32xf32>
    %62 = vector.extract_strided_slice %50 {offsets = [0, 64], sizes = [16, 32], strides = [1, 1]} : vector<16x128xf32> to vector<16x32xf32>
    %63 = vector.extract_strided_slice %51 {offsets = [0, 64], sizes = [16, 32], strides = [1, 1]} : vector<16x128xf32> to vector<16x32xf32>
    %64 = arith.addf %63, %25 : vector<16x32xf32>
    %65 = arith.mulf %60, %64 : vector<16x32xf32>
    %66 = arith.addf %62, %65 : vector<16x32xf32>
    %67 = math.tanh %66 : vector<16x32xf32>
    %cst_27 = arith.constant 1.000000e+00 : f32
    %68 = vector.broadcast %cst_27 : f32 to vector<16x32xf32>
    %69 = arith.subf %68, %61 : vector<16x32xf32>
    %70 = arith.mulf %69, %67 : vector<16x32xf32>
    %71 = arith.mulf %61, %49 : vector<16x32xf32>
    %72 = arith.addf %70, %71 : vector<16x32xf32>
    %73 = vector.extract_strided_slice %23 {offsets = [32, 0], sizes = [16, 128], strides = [1, 1]} : vector<128x128xf32> to vector<16x128xf32>
    %cst_28 = arith.constant dense<0.000000e+00> : vector<16x128xf32>
    %74 = tpu.matmul %72, %1, %cst_28 {dimension_numbers = #tpu.dot_dimension_numbers<[1], [0], [0], [1], [0, 0, 1, 1], [], []>} : vector<16x32xf32>, vector<32x128xf32>, vector<16x128xf32> -> vector<16x128xf32>
    %75 = vector.extract_strided_slice %73 {offsets = [0, 0], sizes = [16, 64], strides = [1, 1]} : vector<16x128xf32> to vector<16x64xf32>
    %76 = vector.extract_strided_slice %74 {offsets = [0, 0], sizes = [16, 64], strides = [1, 1]} : vector<16x128xf32> to vector<16x64xf32>
    %77 = arith.addf %75, %76 : vector<16x64xf32>
    %78 = arith.negf %77 : vector<16x64xf32>
    %79 = math.exp %78 : vector<16x64xf32>
    %cst_29 = arith.constant 1.000000e+00 : f32
    %80 = vector.broadcast %cst_29 : f32 to vector<16x64xf32>
    %81 = arith.addf %80, %79 : vector<16x64xf32>
    %82 = arith.divf %80, %81 : vector<16x64xf32>
    %83 = vector.extract_strided_slice %82 {offsets = [0, 0], sizes = [16, 32], strides = [1, 1]} : vector<16x64xf32> to vector<16x32xf32>
    %84 = vector.extract_strided_slice %82 {offsets = [0, 32], sizes = [16, 32], strides = [1, 1]} : vector<16x64xf32> to vector<16x32xf32>
    %85 = vector.extract_strided_slice %73 {offsets = [0, 64], sizes = [16, 32], strides = [1, 1]} : vector<16x128xf32> to vector<16x32xf32>
    %86 = vector.extract_strided_slice %74 {offsets = [0, 64], sizes = [16, 32], strides = [1, 1]} : vector<16x128xf32> to vector<16x32xf32>
    %87 = arith.addf %86, %25 : vector<16x32xf32>
    %88 = arith.mulf %83, %87 : vector<16x32xf32>
    %89 = arith.addf %85, %88 : vector<16x32xf32>
    %90 = math.tanh %89 : vector<16x32xf32>
    %cst_30 = arith.constant 1.000000e+00 : f32
    %91 = vector.broadcast %cst_30 : f32 to vector<16x32xf32>
    %92 = arith.subf %91, %84 : vector<16x32xf32>
    %93 = arith.mulf %92, %90 : vector<16x32xf32>
    %94 = arith.mulf %84, %72 : vector<16x32xf32>
    %95 = arith.addf %93, %94 : vector<16x32xf32>
    %96 = vector.extract_strided_slice %23 {offsets = [48, 0], sizes = [16, 128], strides = [1, 1]} : vector<128x128xf32> to vector<16x128xf32>
    %cst_31 = arith.constant dense<0.000000e+00> : vector<16x128xf32>
    %97 = tpu.matmul %95, %1, %cst_31 {dimension_numbers = #tpu.dot_dimension_numbers<[1], [0], [0], [1], [0, 0, 1, 1], [], []>} : vector<16x32xf32>, vector<32x128xf32>, vector<16x128xf32> -> vector<16x128xf32>
    %98 = vector.extract_strided_slice %96 {offsets = [0, 0], sizes = [16, 64], strides = [1, 1]} : vector<16x128xf32> to vector<16x64xf32>
    %99 = vector.extract_strided_slice %97 {offsets = [0, 0], sizes = [16, 64], strides = [1, 1]} : vector<16x128xf32> to vector<16x64xf32>
    %100 = arith.addf %98, %99 : vector<16x64xf32>
    %101 = arith.negf %100 : vector<16x64xf32>
    %102 = math.exp %101 : vector<16x64xf32>
    %cst_32 = arith.constant 1.000000e+00 : f32
    %103 = vector.broadcast %cst_32 : f32 to vector<16x64xf32>
    %104 = arith.addf %103, %102 : vector<16x64xf32>
    %105 = arith.divf %103, %104 : vector<16x64xf32>
    %106 = vector.extract_strided_slice %105 {offsets = [0, 0], sizes = [16, 32], strides = [1, 1]} : vector<16x64xf32> to vector<16x32xf32>
    %107 = vector.extract_strided_slice %105 {offsets = [0, 32], sizes = [16, 32], strides = [1, 1]} : vector<16x64xf32> to vector<16x32xf32>
    %108 = vector.extract_strided_slice %96 {offsets = [0, 64], sizes = [16, 32], strides = [1, 1]} : vector<16x128xf32> to vector<16x32xf32>
    %109 = vector.extract_strided_slice %97 {offsets = [0, 64], sizes = [16, 32], strides = [1, 1]} : vector<16x128xf32> to vector<16x32xf32>
    %110 = arith.addf %109, %25 : vector<16x32xf32>
    %111 = arith.mulf %106, %110 : vector<16x32xf32>
    %112 = arith.addf %108, %111 : vector<16x32xf32>
    %113 = math.tanh %112 : vector<16x32xf32>
    %cst_33 = arith.constant 1.000000e+00 : f32
    %114 = vector.broadcast %cst_33 : f32 to vector<16x32xf32>
    %115 = arith.subf %114, %107 : vector<16x32xf32>
    %116 = arith.mulf %115, %113 : vector<16x32xf32>
    %117 = arith.mulf %107, %95 : vector<16x32xf32>
    %118 = arith.addf %116, %117 : vector<16x32xf32>
    %119 = vector.extract_strided_slice %23 {offsets = [64, 0], sizes = [16, 128], strides = [1, 1]} : vector<128x128xf32> to vector<16x128xf32>
    %cst_34 = arith.constant dense<0.000000e+00> : vector<16x128xf32>
    %120 = tpu.matmul %118, %1, %cst_34 {dimension_numbers = #tpu.dot_dimension_numbers<[1], [0], [0], [1], [0, 0, 1, 1], [], []>} : vector<16x32xf32>, vector<32x128xf32>, vector<16x128xf32> -> vector<16x128xf32>
    %121 = vector.extract_strided_slice %119 {offsets = [0, 0], sizes = [16, 64], strides = [1, 1]} : vector<16x128xf32> to vector<16x64xf32>
    %122 = vector.extract_strided_slice %120 {offsets = [0, 0], sizes = [16, 64], strides = [1, 1]} : vector<16x128xf32> to vector<16x64xf32>
    %123 = arith.addf %121, %122 : vector<16x64xf32>
    %124 = arith.negf %123 : vector<16x64xf32>
    %125 = math.exp %124 : vector<16x64xf32>
    %cst_35 = arith.constant 1.000000e+00 : f32
    %126 = vector.broadcast %cst_35 : f32 to vector<16x64xf32>
    %127 = arith.addf %126, %125 : vector<16x64xf32>
    %128 = arith.divf %126, %127 : vector<16x64xf32>
    %129 = vector.extract_strided_slice %128 {offsets = [0, 0], sizes = [16, 32], strides = [1, 1]} : vector<16x64xf32> to vector<16x32xf32>
    %130 = vector.extract_strided_slice %128 {offsets = [0, 32], sizes = [16, 32], strides = [1, 1]} : vector<16x64xf32> to vector<16x32xf32>
    %131 = vector.extract_strided_slice %119 {offsets = [0, 64], sizes = [16, 32], strides = [1, 1]} : vector<16x128xf32> to vector<16x32xf32>
    %132 = vector.extract_strided_slice %120 {offsets = [0, 64], sizes = [16, 32], strides = [1, 1]} : vector<16x128xf32> to vector<16x32xf32>
    %133 = arith.addf %132, %25 : vector<16x32xf32>
    %134 = arith.mulf %129, %133 : vector<16x32xf32>
    %135 = arith.addf %131, %134 : vector<16x32xf32>
    %136 = math.tanh %135 : vector<16x32xf32>
    %cst_36 = arith.constant 1.000000e+00 : f32
    %137 = vector.broadcast %cst_36 : f32 to vector<16x32xf32>
    %138 = arith.subf %137, %130 : vector<16x32xf32>
    %139 = arith.mulf %138, %136 : vector<16x32xf32>
    %140 = arith.mulf %130, %118 : vector<16x32xf32>
    %141 = arith.addf %139, %140 : vector<16x32xf32>
    %142 = vector.extract_strided_slice %23 {offsets = [80, 0], sizes = [16, 128], strides = [1, 1]} : vector<128x128xf32> to vector<16x128xf32>
    %cst_37 = arith.constant dense<0.000000e+00> : vector<16x128xf32>
    %143 = tpu.matmul %141, %1, %cst_37 {dimension_numbers = #tpu.dot_dimension_numbers<[1], [0], [0], [1], [0, 0, 1, 1], [], []>} : vector<16x32xf32>, vector<32x128xf32>, vector<16x128xf32> -> vector<16x128xf32>
    %144 = vector.extract_strided_slice %142 {offsets = [0, 0], sizes = [16, 64], strides = [1, 1]} : vector<16x128xf32> to vector<16x64xf32>
    %145 = vector.extract_strided_slice %143 {offsets = [0, 0], sizes = [16, 64], strides = [1, 1]} : vector<16x128xf32> to vector<16x64xf32>
    %146 = arith.addf %144, %145 : vector<16x64xf32>
    %147 = arith.negf %146 : vector<16x64xf32>
    %148 = math.exp %147 : vector<16x64xf32>
    %cst_38 = arith.constant 1.000000e+00 : f32
    %149 = vector.broadcast %cst_38 : f32 to vector<16x64xf32>
    %150 = arith.addf %149, %148 : vector<16x64xf32>
    %151 = arith.divf %149, %150 : vector<16x64xf32>
    %152 = vector.extract_strided_slice %151 {offsets = [0, 0], sizes = [16, 32], strides = [1, 1]} : vector<16x64xf32> to vector<16x32xf32>
    %153 = vector.extract_strided_slice %151 {offsets = [0, 32], sizes = [16, 32], strides = [1, 1]} : vector<16x64xf32> to vector<16x32xf32>
    %154 = vector.extract_strided_slice %142 {offsets = [0, 64], sizes = [16, 32], strides = [1, 1]} : vector<16x128xf32> to vector<16x32xf32>
    %155 = vector.extract_strided_slice %143 {offsets = [0, 64], sizes = [16, 32], strides = [1, 1]} : vector<16x128xf32> to vector<16x32xf32>
    %156 = arith.addf %155, %25 : vector<16x32xf32>
    %157 = arith.mulf %152, %156 : vector<16x32xf32>
    %158 = arith.addf %154, %157 : vector<16x32xf32>
    %159 = math.tanh %158 : vector<16x32xf32>
    %cst_39 = arith.constant 1.000000e+00 : f32
    %160 = vector.broadcast %cst_39 : f32 to vector<16x32xf32>
    %161 = arith.subf %160, %153 : vector<16x32xf32>
    %162 = arith.mulf %161, %159 : vector<16x32xf32>
    %163 = arith.mulf %153, %141 : vector<16x32xf32>
    %164 = arith.addf %162, %163 : vector<16x32xf32>
    %165 = vector.extract_strided_slice %23 {offsets = [96, 0], sizes = [16, 128], strides = [1, 1]} : vector<128x128xf32> to vector<16x128xf32>
    %cst_40 = arith.constant dense<0.000000e+00> : vector<16x128xf32>
    %166 = tpu.matmul %164, %1, %cst_40 {dimension_numbers = #tpu.dot_dimension_numbers<[1], [0], [0], [1], [0, 0, 1, 1], [], []>} : vector<16x32xf32>, vector<32x128xf32>, vector<16x128xf32> -> vector<16x128xf32>
    %167 = vector.extract_strided_slice %165 {offsets = [0, 0], sizes = [16, 64], strides = [1, 1]} : vector<16x128xf32> to vector<16x64xf32>
    %168 = vector.extract_strided_slice %166 {offsets = [0, 0], sizes = [16, 64], strides = [1, 1]} : vector<16x128xf32> to vector<16x64xf32>
    %169 = arith.addf %167, %168 : vector<16x64xf32>
    %170 = arith.negf %169 : vector<16x64xf32>
    %171 = math.exp %170 : vector<16x64xf32>
    %cst_41 = arith.constant 1.000000e+00 : f32
    %172 = vector.broadcast %cst_41 : f32 to vector<16x64xf32>
    %173 = arith.addf %172, %171 : vector<16x64xf32>
    %174 = arith.divf %172, %173 : vector<16x64xf32>
    %175 = vector.extract_strided_slice %174 {offsets = [0, 0], sizes = [16, 32], strides = [1, 1]} : vector<16x64xf32> to vector<16x32xf32>
    %176 = vector.extract_strided_slice %174 {offsets = [0, 32], sizes = [16, 32], strides = [1, 1]} : vector<16x64xf32> to vector<16x32xf32>
    %177 = vector.extract_strided_slice %165 {offsets = [0, 64], sizes = [16, 32], strides = [1, 1]} : vector<16x128xf32> to vector<16x32xf32>
    %178 = vector.extract_strided_slice %166 {offsets = [0, 64], sizes = [16, 32], strides = [1, 1]} : vector<16x128xf32> to vector<16x32xf32>
    %179 = arith.addf %178, %25 : vector<16x32xf32>
    %180 = arith.mulf %175, %179 : vector<16x32xf32>
    %181 = arith.addf %177, %180 : vector<16x32xf32>
    %182 = math.tanh %181 : vector<16x32xf32>
    %cst_42 = arith.constant 1.000000e+00 : f32
    %183 = vector.broadcast %cst_42 : f32 to vector<16x32xf32>
    %184 = arith.subf %183, %176 : vector<16x32xf32>
    %185 = arith.mulf %184, %182 : vector<16x32xf32>
    %186 = arith.mulf %176, %164 : vector<16x32xf32>
    %187 = arith.addf %185, %186 : vector<16x32xf32>
    %188 = vector.extract_strided_slice %23 {offsets = [112, 0], sizes = [16, 128], strides = [1, 1]} : vector<128x128xf32> to vector<16x128xf32>
    %cst_43 = arith.constant dense<0.000000e+00> : vector<16x128xf32>
    %189 = tpu.matmul %187, %1, %cst_43 {dimension_numbers = #tpu.dot_dimension_numbers<[1], [0], [0], [1], [0, 0, 1, 1], [], []>} : vector<16x32xf32>, vector<32x128xf32>, vector<16x128xf32> -> vector<16x128xf32>
    %190 = vector.extract_strided_slice %188 {offsets = [0, 0], sizes = [16, 64], strides = [1, 1]} : vector<16x128xf32> to vector<16x64xf32>
    %191 = vector.extract_strided_slice %189 {offsets = [0, 0], sizes = [16, 64], strides = [1, 1]} : vector<16x128xf32> to vector<16x64xf32>
    %192 = arith.addf %190, %191 : vector<16x64xf32>
    %193 = arith.negf %192 : vector<16x64xf32>
    %194 = math.exp %193 : vector<16x64xf32>
    %cst_44 = arith.constant 1.000000e+00 : f32
    %195 = vector.broadcast %cst_44 : f32 to vector<16x64xf32>
    %196 = arith.addf %195, %194 : vector<16x64xf32>
    %197 = arith.divf %195, %196 : vector<16x64xf32>
    %198 = vector.extract_strided_slice %197 {offsets = [0, 0], sizes = [16, 32], strides = [1, 1]} : vector<16x64xf32> to vector<16x32xf32>
    %199 = vector.extract_strided_slice %197 {offsets = [0, 32], sizes = [16, 32], strides = [1, 1]} : vector<16x64xf32> to vector<16x32xf32>
    %200 = vector.extract_strided_slice %188 {offsets = [0, 64], sizes = [16, 32], strides = [1, 1]} : vector<16x128xf32> to vector<16x32xf32>
    %201 = vector.extract_strided_slice %189 {offsets = [0, 64], sizes = [16, 32], strides = [1, 1]} : vector<16x128xf32> to vector<16x32xf32>
    %202 = arith.addf %201, %25 : vector<16x32xf32>
    %203 = arith.mulf %198, %202 : vector<16x32xf32>
    %204 = arith.addf %200, %203 : vector<16x32xf32>
    %205 = math.tanh %204 : vector<16x32xf32>
    %cst_45 = arith.constant 1.000000e+00 : f32
    %206 = vector.broadcast %cst_45 : f32 to vector<16x32xf32>
    %207 = arith.subf %206, %199 : vector<16x32xf32>
    %208 = arith.mulf %207, %205 : vector<16x32xf32>
    %209 = arith.mulf %199, %187 : vector<16x32xf32>
    %210 = arith.addf %208, %209 : vector<16x32xf32>
    %cst_46 = arith.constant dense<0.000000e+00> : vector<16x32xf32>
    %211 = tpu.matmul %210, %4, %cst_46 {dimension_numbers = #tpu.dot_dimension_numbers<[1], [0], [0], [1], [0, 0, 1, 1], [], []>} : vector<16x32xf32>, vector<32x32xf32>, vector<16x32xf32> -> vector<16x32xf32>
    %212 = arith.mulf %211, %49 : vector<16x32xf32>
    %cst_47 = arith.constant dense<0.000000e+00> : vector<16xf32>
    %213 = vector.multi_reduction <add>, %212, %cst_47 [1] : vector<16x32xf32> to vector<16xf32>
    %214 = vector.shape_cast %213 : vector<16xf32> to vector<16x1xf32>
    %215 = arith.mulf %211, %72 : vector<16x32xf32>
    %cst_48 = arith.constant dense<0.000000e+00> : vector<16xf32>
    %216 = vector.multi_reduction <add>, %215, %cst_48 [1] : vector<16x32xf32> to vector<16xf32>
    %217 = vector.shape_cast %216 : vector<16xf32> to vector<16x1xf32>
    %218 = arith.mulf %211, %95 : vector<16x32xf32>
    %cst_49 = arith.constant dense<0.000000e+00> : vector<16xf32>
    %219 = vector.multi_reduction <add>, %218, %cst_49 [1] : vector<16x32xf32> to vector<16xf32>
    %220 = vector.shape_cast %219 : vector<16xf32> to vector<16x1xf32>
    %221 = arith.mulf %211, %118 : vector<16x32xf32>
    %cst_50 = arith.constant dense<0.000000e+00> : vector<16xf32>
    %222 = vector.multi_reduction <add>, %221, %cst_50 [1] : vector<16x32xf32> to vector<16xf32>
    %223 = vector.shape_cast %222 : vector<16xf32> to vector<16x1xf32>
    %224 = arith.mulf %211, %141 : vector<16x32xf32>
    %cst_51 = arith.constant dense<0.000000e+00> : vector<16xf32>
    %225 = vector.multi_reduction <add>, %224, %cst_51 [1] : vector<16x32xf32> to vector<16xf32>
    %226 = vector.shape_cast %225 : vector<16xf32> to vector<16x1xf32>
    %227 = arith.mulf %211, %164 : vector<16x32xf32>
    %cst_52 = arith.constant dense<0.000000e+00> : vector<16xf32>
    %228 = vector.multi_reduction <add>, %227, %cst_52 [1] : vector<16x32xf32> to vector<16xf32>
    %229 = vector.shape_cast %228 : vector<16xf32> to vector<16x1xf32>
    %230 = arith.mulf %211, %187 : vector<16x32xf32>
    %cst_53 = arith.constant dense<0.000000e+00> : vector<16xf32>
    %231 = vector.multi_reduction <add>, %230, %cst_53 [1] : vector<16x32xf32> to vector<16xf32>
    %232 = vector.shape_cast %231 : vector<16xf32> to vector<16x1xf32>
    %233 = arith.mulf %211, %210 : vector<16x32xf32>
    %cst_54 = arith.constant dense<0.000000e+00> : vector<16xf32>
    %234 = vector.multi_reduction <add>, %233, %cst_54 [1] : vector<16x32xf32> to vector<16xf32>
    %235 = vector.shape_cast %234 : vector<16xf32> to vector<16x1xf32>
    %236 = arith.maximumf %214, %217 : vector<16x1xf32>
    %237 = arith.maximumf %236, %220 : vector<16x1xf32>
    %238 = arith.maximumf %237, %223 : vector<16x1xf32>
    %239 = arith.maximumf %238, %226 : vector<16x1xf32>
    %240 = arith.maximumf %239, %229 : vector<16x1xf32>
    %241 = arith.maximumf %240, %232 : vector<16x1xf32>
    %242 = arith.maximumf %241, %235 : vector<16x1xf32>
    %243 = arith.subf %214, %242 : vector<16x1xf32>
    %244 = math.exp %243 : vector<16x1xf32>
    %245 = arith.subf %217, %242 : vector<16x1xf32>
    %246 = math.exp %245 : vector<16x1xf32>
    %247 = arith.subf %220, %242 : vector<16x1xf32>
    %248 = math.exp %247 : vector<16x1xf32>
    %249 = arith.subf %223, %242 : vector<16x1xf32>
    %250 = math.exp %249 : vector<16x1xf32>
    %251 = arith.subf %226, %242 : vector<16x1xf32>
    %252 = math.exp %251 : vector<16x1xf32>
    %253 = arith.subf %229, %242 : vector<16x1xf32>
    %254 = math.exp %253 : vector<16x1xf32>
    %255 = arith.subf %232, %242 : vector<16x1xf32>
    %256 = math.exp %255 : vector<16x1xf32>
    %257 = arith.subf %235, %242 : vector<16x1xf32>
    %258 = math.exp %257 : vector<16x1xf32>
    %259 = arith.addf %244, %246 : vector<16x1xf32>
    %260 = arith.addf %259, %248 : vector<16x1xf32>
    %261 = arith.addf %260, %250 : vector<16x1xf32>
    %262 = arith.addf %261, %252 : vector<16x1xf32>
    %263 = arith.addf %262, %254 : vector<16x1xf32>
    %264 = arith.addf %263, %256 : vector<16x1xf32>
    %265 = arith.addf %264, %258 : vector<16x1xf32>
    %266 = tpu.reciprocal %265 {approx = true} : vector<16x1xf32> -> vector<16x1xf32>
    %cst_55 = arith.constant 0.000000e+00 : f32
    %267 = vector.broadcast %cst_55 : f32 to vector<16x32xf32>
    %268 = arith.mulf %244, %266 : vector<16x1xf32>
    %269 = vector.extract_strided_slice %19 {offsets = [0, 0], sizes = [16, 1], strides = [1, 1]} : vector<16x8xf32> to vector<16x1xf32>
    %270 = arith.mulf %269, %268 : vector<16x1xf32>
    %271 = vector.broadcast %268 : vector<16x1xf32> to vector<16x32xf32>
    %272 = arith.mulf %271, %49 : vector<16x32xf32>
    %273 = arith.addf %267, %272 : vector<16x32xf32>
    %274 = vector.broadcast %270 : vector<16x1xf32> to vector<16x32xf32>
    %275 = arith.mulf %274, %49 : vector<16x32xf32>
    %cst_56 = arith.constant 0.000000e+00 : f32
    %276 = vector.broadcast %cst_56 : f32 to vector<16x32xf32>
    %277 = arith.maximumf %275, %276 : vector<16x32xf32>
    %278 = arith.addf %273, %277 : vector<16x32xf32>
    %279 = arith.mulf %246, %266 : vector<16x1xf32>
    %280 = vector.extract_strided_slice %19 {offsets = [0, 1], sizes = [16, 1], strides = [1, 1]} : vector<16x8xf32> to vector<16x1xf32>
    %281 = arith.mulf %280, %279 : vector<16x1xf32>
    %282 = vector.broadcast %279 : vector<16x1xf32> to vector<16x32xf32>
    %283 = arith.mulf %282, %72 : vector<16x32xf32>
    %284 = arith.addf %278, %283 : vector<16x32xf32>
    %285 = vector.broadcast %281 : vector<16x1xf32> to vector<16x32xf32>
    %286 = arith.mulf %285, %72 : vector<16x32xf32>
    %cst_57 = arith.constant 0.000000e+00 : f32
    %287 = vector.broadcast %cst_57 : f32 to vector<16x32xf32>
    %288 = arith.maximumf %286, %287 : vector<16x32xf32>
    %289 = arith.addf %284, %288 : vector<16x32xf32>
    %290 = arith.mulf %248, %266 : vector<16x1xf32>
    %291 = vector.extract_strided_slice %19 {offsets = [0, 2], sizes = [16, 1], strides = [1, 1]} : vector<16x8xf32> to vector<16x1xf32>
    %292 = arith.mulf %291, %290 : vector<16x1xf32>
    %293 = vector.broadcast %290 : vector<16x1xf32> to vector<16x32xf32>
    %294 = arith.mulf %293, %95 : vector<16x32xf32>
    %295 = arith.addf %289, %294 : vector<16x32xf32>
    %296 = vector.broadcast %292 : vector<16x1xf32> to vector<16x32xf32>
    %297 = arith.mulf %296, %95 : vector<16x32xf32>
    %cst_58 = arith.constant 0.000000e+00 : f32
    %298 = vector.broadcast %cst_58 : f32 to vector<16x32xf32>
    %299 = arith.maximumf %297, %298 : vector<16x32xf32>
    %300 = arith.addf %295, %299 : vector<16x32xf32>
    %301 = arith.mulf %250, %266 : vector<16x1xf32>
    %302 = vector.extract_strided_slice %19 {offsets = [0, 3], sizes = [16, 1], strides = [1, 1]} : vector<16x8xf32> to vector<16x1xf32>
    %303 = arith.mulf %302, %301 : vector<16x1xf32>
    %304 = vector.broadcast %301 : vector<16x1xf32> to vector<16x32xf32>
    %305 = arith.mulf %304, %118 : vector<16x32xf32>
    %306 = arith.addf %300, %305 : vector<16x32xf32>
    %307 = vector.broadcast %303 : vector<16x1xf32> to vector<16x32xf32>
    %308 = arith.mulf %307, %118 : vector<16x32xf32>
    %cst_59 = arith.constant 0.000000e+00 : f32
    %309 = vector.broadcast %cst_59 : f32 to vector<16x32xf32>
    %310 = arith.maximumf %308, %309 : vector<16x32xf32>
    %311 = arith.addf %306, %310 : vector<16x32xf32>
    %312 = arith.mulf %252, %266 : vector<16x1xf32>
    %313 = vector.extract_strided_slice %19 {offsets = [0, 4], sizes = [16, 1], strides = [1, 1]} : vector<16x8xf32> to vector<16x1xf32>
    %314 = arith.mulf %313, %312 : vector<16x1xf32>
    %315 = vector.broadcast %312 : vector<16x1xf32> to vector<16x32xf32>
    %316 = arith.mulf %315, %141 : vector<16x32xf32>
    %317 = arith.addf %311, %316 : vector<16x32xf32>
    %318 = vector.broadcast %314 : vector<16x1xf32> to vector<16x32xf32>
    %319 = arith.mulf %318, %141 : vector<16x32xf32>
    %cst_60 = arith.constant 0.000000e+00 : f32
    %320 = vector.broadcast %cst_60 : f32 to vector<16x32xf32>
    %321 = arith.maximumf %319, %320 : vector<16x32xf32>
    %322 = arith.addf %317, %321 : vector<16x32xf32>
    %323 = arith.mulf %254, %266 : vector<16x1xf32>
    %324 = vector.extract_strided_slice %19 {offsets = [0, 5], sizes = [16, 1], strides = [1, 1]} : vector<16x8xf32> to vector<16x1xf32>
    %325 = arith.mulf %324, %323 : vector<16x1xf32>
    %326 = vector.broadcast %323 : vector<16x1xf32> to vector<16x32xf32>
    %327 = arith.mulf %326, %164 : vector<16x32xf32>
    %328 = arith.addf %322, %327 : vector<16x32xf32>
    %329 = vector.broadcast %325 : vector<16x1xf32> to vector<16x32xf32>
    %330 = arith.mulf %329, %164 : vector<16x32xf32>
    %cst_61 = arith.constant 0.000000e+00 : f32
    %331 = vector.broadcast %cst_61 : f32 to vector<16x32xf32>
    %332 = arith.maximumf %330, %331 : vector<16x32xf32>
    %333 = arith.addf %328, %332 : vector<16x32xf32>
    %334 = arith.mulf %256, %266 : vector<16x1xf32>
    %335 = vector.extract_strided_slice %19 {offsets = [0, 6], sizes = [16, 1], strides = [1, 1]} : vector<16x8xf32> to vector<16x1xf32>
    %336 = arith.mulf %335, %334 : vector<16x1xf32>
    %337 = vector.broadcast %334 : vector<16x1xf32> to vector<16x32xf32>
    %338 = arith.mulf %337, %187 : vector<16x32xf32>
    %339 = arith.addf %333, %338 : vector<16x32xf32>
    %340 = vector.broadcast %336 : vector<16x1xf32> to vector<16x32xf32>
    %341 = arith.mulf %340, %187 : vector<16x32xf32>
    %cst_62 = arith.constant 0.000000e+00 : f32
    %342 = vector.broadcast %cst_62 : f32 to vector<16x32xf32>
    %343 = arith.maximumf %341, %342 : vector<16x32xf32>
    %344 = arith.addf %339, %343 : vector<16x32xf32>
    %345 = arith.mulf %258, %266 : vector<16x1xf32>
    %346 = vector.extract_strided_slice %19 {offsets = [0, 7], sizes = [16, 1], strides = [1, 1]} : vector<16x8xf32> to vector<16x1xf32>
    %347 = arith.mulf %346, %345 : vector<16x1xf32>
    %348 = vector.broadcast %345 : vector<16x1xf32> to vector<16x32xf32>
    %349 = arith.mulf %348, %210 : vector<16x32xf32>
    %350 = arith.addf %344, %349 : vector<16x32xf32>
    %351 = vector.broadcast %347 : vector<16x1xf32> to vector<16x32xf32>
    %352 = arith.mulf %351, %210 : vector<16x32xf32>
    %cst_63 = arith.constant 0.000000e+00 : f32
    %353 = vector.broadcast %cst_63 : f32 to vector<16x32xf32>
    %354 = arith.maximumf %352, %353 : vector<16x32xf32>
    %355 = arith.addf %350, %354 : vector<16x32xf32>
    %cst_64 = arith.constant dense<0.000000e+00> : vector<16x32xf32>
    %356 = tpu.matmul %355, %5, %cst_64 {dimension_numbers = #tpu.dot_dimension_numbers<[1], [0], [0], [1], [0, 0, 1, 1], [], []>} : vector<16x32xf32>, vector<32x32xf32>, vector<16x32xf32> -> vector<16x32xf32>
    %cst_65 = arith.constant dense<0.000000e+00> : vector<16x32xf32>
    %357 = tpu.matmul %211, %6, %cst_65 {dimension_numbers = #tpu.dot_dimension_numbers<[1], [0], [0], [1], [0, 0, 1, 1], [], []>} : vector<16x32xf32>, vector<32x32xf32>, vector<16x32xf32> -> vector<16x32xf32>
    %358 = arith.addf %356, %357 : vector<16x32xf32>
    %359 = math.tanh %358 : vector<16x32xf32>
    %cst_66 = arith.constant 0.000000e+00 : f32
    %360 = vector.broadcast %cst_66 : f32 to vector<16x8xf32>
    %361 = arith.cmpf ogt, %18, %360 : vector<16x8xf32>
    %cst_67 = arith.constant dense<0.000000e+00> : vector<16xf32>
    %362 = vector.multi_reduction <add>, %18, %cst_67 [1] : vector<16x8xf32> to vector<16xf32>
    %363 = vector.shape_cast %362 : vector<16xf32> to vector<16x1xf32>
    %cst_68 = arith.constant 0.000000e+00 : f32
    %364 = vector.broadcast %cst_68 : f32 to vector<16x1xf32>
    %365 = arith.cmpf ogt, %363, %364 : vector<16x1xf32>
    %cst_69 = arith.constant 1.000000e+00 : f32
    %366 = vector.broadcast %cst_69 : f32 to vector<16x1xf32>
    %367 = arith.divf %366, %363 : vector<16x1xf32>
    %cst_70 = arith.constant 0.000000e+00 : f32
    %368 = vector.broadcast %cst_70 : f32 to vector<16x1xf32>
    %369 = arith.select %365, %367, %368 : vector<16x1xi1>, vector<16x1xf32>
    %cst_71 = arith.constant dense<0.000000e+00> : vector<8xf32>
    %370 = vector.multi_reduction <add>, %18, %cst_71 [0] : vector<16x8xf32> to vector<8xf32>
    %371 = vector.shape_cast %370 : vector<8xf32> to vector<1x8xf32>
    %cst_72 = arith.constant 0.000000e+00 : f32
    %372 = vector.broadcast %cst_72 : f32 to vector<1x8xf32>
    %373 = arith.cmpf ogt, %371, %372 : vector<1x8xf32>
    %cst_73 = arith.constant 1.000000e+00 : f32
    %374 = vector.broadcast %cst_73 : f32 to vector<1x8xf32>
    %375 = arith.divf %374, %371 : vector<1x8xf32>
    %cst_74 = arith.constant 0.000000e+00 : f32
    %376 = vector.broadcast %cst_74 : f32 to vector<1x8xf32>
    %377 = arith.select %373, %375, %376 : vector<1x8xi1>, vector<1x8xf32>
    %cst_75 = arith.constant dense<0.000000e+00> : vector<16x128xf32>
    %378 = tpu.matmul %359, %7, %cst_75 {dimension_numbers = #tpu.dot_dimension_numbers<[1], [0], [0], [1], [0, 0, 1, 1], [], []>} : vector<16x32xf32>, vector<32x128xf32>, vector<16x128xf32> -> vector<16x128xf32>
    %cst_76 = arith.constant dense<0.000000e+00> : vector<16x4xf32>
    %379 = tpu.matmul %378, %8, %cst_76 {dimension_numbers = #tpu.dot_dimension_numbers<[1], [0], [0], [1], [0, 0, 1, 1], [], []>} : vector<16x128xf32>, vector<128x4xf32>, vector<16x4xf32> -> vector<16x4xf32>
    %380 = vector.extract_strided_slice %378 {offsets = [0, 0], sizes = [8, 128], strides = [1, 1]} : vector<16x128xf32> to vector<8x128xf32>
    %cst_77 = arith.constant dense<0.000000e+00> : vector<4x8xf32>
    %381 = tpu.matmul %9, %380, %cst_77 {dimension_numbers = #tpu.dot_dimension_numbers<[1], [1], [0], [0], [0, 0, 1, 0], [], []>} : vector<4x128xf32>, vector<8x128xf32>, vector<4x8xf32> -> vector<4x8xf32>
    %cst_78 = arith.constant 0.000000e+00 : f32
    %382 = vector.broadcast %cst_78 : f32 to vector<16x32xf32>
    %383 = vector.extract_strided_slice %379 {offsets = [0, 0], sizes = [16, 1], strides = [1, 1]} : vector<16x4xf32> to vector<16x1xf32>
    %384 = vector.extract_strided_slice %381 {offsets = [0, 0], sizes = [1, 8], strides = [1, 1]} : vector<4x8xf32> to vector<1x8xf32>
    %385 = vector.broadcast %383 : vector<16x1xf32> to vector<16x8xf32>
    %386 = vector.broadcast %384 : vector<1x8xf32> to vector<16x8xf32>
    %387 = arith.addf %385, %386 : vector<16x8xf32>
    %cst_79 = arith.constant 0.000000e+00 : f32
    %388 = vector.broadcast %cst_79 : f32 to vector<16x8xf32>
    %389 = arith.cmpf oge, %387, %388 : vector<16x8xf32>
    %cst_80 = arith.constant 2.000000e-01 : f32
    %390 = vector.broadcast %cst_80 : f32 to vector<16x8xf32>
    %391 = arith.mulf %390, %387 : vector<16x8xf32>
    %392 = arith.select %389, %387, %391 : vector<16x8xi1>, vector<16x8xf32>
    %cst_81 = arith.constant -1.000000e+30 : f32
    %393 = vector.broadcast %cst_81 : f32 to vector<16x8xf32>
    %394 = arith.select %361, %392, %393 : vector<16x8xi1>, vector<16x8xf32>
    %cst_82 = arith.constant dense<0xFF800000> : vector<16xf32>
    %395 = vector.multi_reduction <maximumf>, %394, %cst_82 [1] : vector<16x8xf32> to vector<16xf32>
    %396 = vector.shape_cast %395 : vector<16xf32> to vector<16x1xf32>
    %397 = vector.broadcast %396 : vector<16x1xf32> to vector<16x8xf32>
    %398 = arith.subf %394, %397 : vector<16x8xf32>
    %399 = math.exp %398 : vector<16x8xf32>
    %cst_83 = arith.constant 0.000000e+00 : f32
    %400 = vector.broadcast %cst_83 : f32 to vector<16x8xf32>
    %401 = arith.select %361, %399, %400 : vector<16x8xi1>, vector<16x8xf32>
    %cst_84 = arith.constant dense<0.000000e+00> : vector<16xf32>
    %402 = vector.multi_reduction <add>, %401, %cst_84 [1] : vector<16x8xf32> to vector<16xf32>
    %403 = vector.shape_cast %402 : vector<16xf32> to vector<16x1xf32>
    %cst_85 = arith.constant 0.000000e+00 : f32
    %404 = vector.broadcast %cst_85 : f32 to vector<16x1xf32>
    %405 = arith.cmpf ogt, %403, %404 : vector<16x1xf32>
    %406 = tpu.reciprocal %403 {approx = true} : vector<16x1xf32> -> vector<16x1xf32>
    %407 = vector.broadcast %406 : vector<16x1xf32> to vector<16x8xf32>
    %408 = arith.mulf %401, %407 : vector<16x8xf32>
    %cst_86 = arith.constant 0.000000e+00 : f32
    %409 = vector.shape_cast %405 : vector<16x1xi1> to vector<16x1xi1>
    %410 = vector.broadcast %409 : vector<16x1xi1> to vector<16x8xi1>
    %411 = vector.broadcast %cst_86 : f32 to vector<16x8xf32>
    %412 = arith.select %410, %408, %411 : vector<16x8xi1>, vector<16x8xf32>
    %413 = vector.extract_strided_slice %378 {offsets = [0, 0], sizes = [16, 32], strides = [1, 1]} : vector<16x128xf32> to vector<16x32xf32>
    %414 = vector.broadcast %377 : vector<1x8xf32> to vector<16x8xf32>
    %415 = arith.mulf %412, %414 : vector<16x8xf32>
    %cst_87 = arith.constant dense<0.000000e+00> : vector<8x32xf32>
    %416 = tpu.matmul %415, %413, %cst_87 {dimension_numbers = #tpu.dot_dimension_numbers<[0], [0], [1], [1], [0, 1, 1, 1], [], []>} : vector<16x8xf32>, vector<16x32xf32>, vector<8x32xf32> -> vector<8x32xf32>
    %cst_88 = arith.constant dense<0.000000e+00> : vector<16x32xf32>
    %417 = tpu.matmul %412, %416, %cst_88 {dimension_numbers = #tpu.dot_dimension_numbers<[1], [0], [0], [1], [0, 0, 1, 1], [], []>} : vector<16x8xf32>, vector<8x32xf32>, vector<16x32xf32> -> vector<16x32xf32>
    %418 = vector.broadcast %369 : vector<16x1xf32> to vector<16x32xf32>
    %419 = arith.mulf %417, %418 : vector<16x32xf32>
    %420 = arith.addf %382, %419 : vector<16x32xf32>
    %421 = vector.extract_strided_slice %379 {offsets = [0, 1], sizes = [16, 1], strides = [1, 1]} : vector<16x4xf32> to vector<16x1xf32>
    %422 = vector.extract_strided_slice %381 {offsets = [1, 0], sizes = [1, 8], strides = [1, 1]} : vector<4x8xf32> to vector<1x8xf32>
    %423 = vector.broadcast %421 : vector<16x1xf32> to vector<16x8xf32>
    %424 = vector.broadcast %422 : vector<1x8xf32> to vector<16x8xf32>
    %425 = arith.addf %423, %424 : vector<16x8xf32>
    %cst_89 = arith.constant 0.000000e+00 : f32
    %426 = vector.broadcast %cst_89 : f32 to vector<16x8xf32>
    %427 = arith.cmpf oge, %425, %426 : vector<16x8xf32>
    %cst_90 = arith.constant 2.000000e-01 : f32
    %428 = vector.broadcast %cst_90 : f32 to vector<16x8xf32>
    %429 = arith.mulf %428, %425 : vector<16x8xf32>
    %430 = arith.select %427, %425, %429 : vector<16x8xi1>, vector<16x8xf32>
    %cst_91 = arith.constant -1.000000e+30 : f32
    %431 = vector.broadcast %cst_91 : f32 to vector<16x8xf32>
    %432 = arith.select %361, %430, %431 : vector<16x8xi1>, vector<16x8xf32>
    %cst_92 = arith.constant dense<0xFF800000> : vector<16xf32>
    %433 = vector.multi_reduction <maximumf>, %432, %cst_92 [1] : vector<16x8xf32> to vector<16xf32>
    %434 = vector.shape_cast %433 : vector<16xf32> to vector<16x1xf32>
    %435 = vector.broadcast %434 : vector<16x1xf32> to vector<16x8xf32>
    %436 = arith.subf %432, %435 : vector<16x8xf32>
    %437 = math.exp %436 : vector<16x8xf32>
    %cst_93 = arith.constant 0.000000e+00 : f32
    %438 = vector.broadcast %cst_93 : f32 to vector<16x8xf32>
    %439 = arith.select %361, %437, %438 : vector<16x8xi1>, vector<16x8xf32>
    %cst_94 = arith.constant dense<0.000000e+00> : vector<16xf32>
    %440 = vector.multi_reduction <add>, %439, %cst_94 [1] : vector<16x8xf32> to vector<16xf32>
    %441 = vector.shape_cast %440 : vector<16xf32> to vector<16x1xf32>
    %cst_95 = arith.constant 0.000000e+00 : f32
    %442 = vector.broadcast %cst_95 : f32 to vector<16x1xf32>
    %443 = arith.cmpf ogt, %441, %442 : vector<16x1xf32>
    %444 = tpu.reciprocal %441 {approx = true} : vector<16x1xf32> -> vector<16x1xf32>
    %445 = vector.broadcast %444 : vector<16x1xf32> to vector<16x8xf32>
    %446 = arith.mulf %439, %445 : vector<16x8xf32>
    %cst_96 = arith.constant 0.000000e+00 : f32
    %447 = vector.shape_cast %443 : vector<16x1xi1> to vector<16x1xi1>
    %448 = vector.broadcast %447 : vector<16x1xi1> to vector<16x8xi1>
    %449 = vector.broadcast %cst_96 : f32 to vector<16x8xf32>
    %450 = arith.select %448, %446, %449 : vector<16x8xi1>, vector<16x8xf32>
    %451 = vector.extract_strided_slice %378 {offsets = [0, 32], sizes = [16, 32], strides = [1, 1]} : vector<16x128xf32> to vector<16x32xf32>
    %452 = vector.broadcast %377 : vector<1x8xf32> to vector<16x8xf32>
    %453 = arith.mulf %450, %452 : vector<16x8xf32>
    %cst_97 = arith.constant dense<0.000000e+00> : vector<8x32xf32>
    %454 = tpu.matmul %453, %451, %cst_97 {dimension_numbers = #tpu.dot_dimension_numbers<[0], [0], [1], [1], [0, 1, 1, 1], [], []>} : vector<16x8xf32>, vector<16x32xf32>, vector<8x32xf32> -> vector<8x32xf32>
    %cst_98 = arith.constant dense<0.000000e+00> : vector<16x32xf32>
    %455 = tpu.matmul %450, %454, %cst_98 {dimension_numbers = #tpu.dot_dimension_numbers<[1], [0], [0], [1], [0, 0, 1, 1], [], []>} : vector<16x8xf32>, vector<8x32xf32>, vector<16x32xf32> -> vector<16x32xf32>
    %456 = vector.broadcast %369 : vector<16x1xf32> to vector<16x32xf32>
    %457 = arith.mulf %455, %456 : vector<16x32xf32>
    %458 = arith.addf %420, %457 : vector<16x32xf32>
    %459 = vector.extract_strided_slice %379 {offsets = [0, 2], sizes = [16, 1], strides = [1, 1]} : vector<16x4xf32> to vector<16x1xf32>
    %460 = vector.extract_strided_slice %381 {offsets = [2, 0], sizes = [1, 8], strides = [1, 1]} : vector<4x8xf32> to vector<1x8xf32>
    %461 = vector.broadcast %459 : vector<16x1xf32> to vector<16x8xf32>
    %462 = vector.broadcast %460 : vector<1x8xf32> to vector<16x8xf32>
    %463 = arith.addf %461, %462 : vector<16x8xf32>
    %cst_99 = arith.constant 0.000000e+00 : f32
    %464 = vector.broadcast %cst_99 : f32 to vector<16x8xf32>
    %465 = arith.cmpf oge, %463, %464 : vector<16x8xf32>
    %cst_100 = arith.constant 2.000000e-01 : f32
    %466 = vector.broadcast %cst_100 : f32 to vector<16x8xf32>
    %467 = arith.mulf %466, %463 : vector<16x8xf32>
    %468 = arith.select %465, %463, %467 : vector<16x8xi1>, vector<16x8xf32>
    %cst_101 = arith.constant -1.000000e+30 : f32
    %469 = vector.broadcast %cst_101 : f32 to vector<16x8xf32>
    %470 = arith.select %361, %468, %469 : vector<16x8xi1>, vector<16x8xf32>
    %cst_102 = arith.constant dense<0xFF800000> : vector<16xf32>
    %471 = vector.multi_reduction <maximumf>, %470, %cst_102 [1] : vector<16x8xf32> to vector<16xf32>
    %472 = vector.shape_cast %471 : vector<16xf32> to vector<16x1xf32>
    %473 = vector.broadcast %472 : vector<16x1xf32> to vector<16x8xf32>
    %474 = arith.subf %470, %473 : vector<16x8xf32>
    %475 = math.exp %474 : vector<16x8xf32>
    %cst_103 = arith.constant 0.000000e+00 : f32
    %476 = vector.broadcast %cst_103 : f32 to vector<16x8xf32>
    %477 = arith.select %361, %475, %476 : vector<16x8xi1>, vector<16x8xf32>
    %cst_104 = arith.constant dense<0.000000e+00> : vector<16xf32>
    %478 = vector.multi_reduction <add>, %477, %cst_104 [1] : vector<16x8xf32> to vector<16xf32>
    %479 = vector.shape_cast %478 : vector<16xf32> to vector<16x1xf32>
    %cst_105 = arith.constant 0.000000e+00 : f32
    %480 = vector.broadcast %cst_105 : f32 to vector<16x1xf32>
    %481 = arith.cmpf ogt, %479, %480 : vector<16x1xf32>
    %482 = tpu.reciprocal %479 {approx = true} : vector<16x1xf32> -> vector<16x1xf32>
    %483 = vector.broadcast %482 : vector<16x1xf32> to vector<16x8xf32>
    %484 = arith.mulf %477, %483 : vector<16x8xf32>
    %cst_106 = arith.constant 0.000000e+00 : f32
    %485 = vector.shape_cast %481 : vector<16x1xi1> to vector<16x1xi1>
    %486 = vector.broadcast %485 : vector<16x1xi1> to vector<16x8xi1>
    %487 = vector.broadcast %cst_106 : f32 to vector<16x8xf32>
    %488 = arith.select %486, %484, %487 : vector<16x8xi1>, vector<16x8xf32>
    %489 = vector.extract_strided_slice %378 {offsets = [0, 64], sizes = [16, 32], strides = [1, 1]} : vector<16x128xf32> to vector<16x32xf32>
    %490 = vector.broadcast %377 : vector<1x8xf32> to vector<16x8xf32>
    %491 = arith.mulf %488, %490 : vector<16x8xf32>
    %cst_107 = arith.constant dense<0.000000e+00> : vector<8x32xf32>
    %492 = tpu.matmul %491, %489, %cst_107 {dimension_numbers = #tpu.dot_dimension_numbers<[0], [0], [1], [1], [0, 1, 1, 1], [], []>} : vector<16x8xf32>, vector<16x32xf32>, vector<8x32xf32> -> vector<8x32xf32>
    %cst_108 = arith.constant dense<0.000000e+00> : vector<16x32xf32>
    %493 = tpu.matmul %488, %492, %cst_108 {dimension_numbers = #tpu.dot_dimension_numbers<[1], [0], [0], [1], [0, 0, 1, 1], [], []>} : vector<16x8xf32>, vector<8x32xf32>, vector<16x32xf32> -> vector<16x32xf32>
    %494 = vector.broadcast %369 : vector<16x1xf32> to vector<16x32xf32>
    %495 = arith.mulf %493, %494 : vector<16x32xf32>
    %496 = arith.addf %458, %495 : vector<16x32xf32>
    %497 = vector.extract_strided_slice %379 {offsets = [0, 3], sizes = [16, 1], strides = [1, 1]} : vector<16x4xf32> to vector<16x1xf32>
    %498 = vector.extract_strided_slice %381 {offsets = [3, 0], sizes = [1, 8], strides = [1, 1]} : vector<4x8xf32> to vector<1x8xf32>
    %499 = vector.broadcast %497 : vector<16x1xf32> to vector<16x8xf32>
    %500 = vector.broadcast %498 : vector<1x8xf32> to vector<16x8xf32>
    %501 = arith.addf %499, %500 : vector<16x8xf32>
    %cst_109 = arith.constant 0.000000e+00 : f32
    %502 = vector.broadcast %cst_109 : f32 to vector<16x8xf32>
    %503 = arith.cmpf oge, %501, %502 : vector<16x8xf32>
    %cst_110 = arith.constant 2.000000e-01 : f32
    %504 = vector.broadcast %cst_110 : f32 to vector<16x8xf32>
    %505 = arith.mulf %504, %501 : vector<16x8xf32>
    %506 = arith.select %503, %501, %505 : vector<16x8xi1>, vector<16x8xf32>
    %cst_111 = arith.constant -1.000000e+30 : f32
    %507 = vector.broadcast %cst_111 : f32 to vector<16x8xf32>
    %508 = arith.select %361, %506, %507 : vector<16x8xi1>, vector<16x8xf32>
    %cst_112 = arith.constant dense<0xFF800000> : vector<16xf32>
    %509 = vector.multi_reduction <maximumf>, %508, %cst_112 [1] : vector<16x8xf32> to vector<16xf32>
    %510 = vector.shape_cast %509 : vector<16xf32> to vector<16x1xf32>
    %511 = vector.broadcast %510 : vector<16x1xf32> to vector<16x8xf32>
    %512 = arith.subf %508, %511 : vector<16x8xf32>
    %513 = math.exp %512 : vector<16x8xf32>
    %cst_113 = arith.constant 0.000000e+00 : f32
    %514 = vector.broadcast %cst_113 : f32 to vector<16x8xf32>
    %515 = arith.select %361, %513, %514 : vector<16x8xi1>, vector<16x8xf32>
    %cst_114 = arith.constant dense<0.000000e+00> : vector<16xf32>
    %516 = vector.multi_reduction <add>, %515, %cst_114 [1] : vector<16x8xf32> to vector<16xf32>
    %517 = vector.shape_cast %516 : vector<16xf32> to vector<16x1xf32>
    %cst_115 = arith.constant 0.000000e+00 : f32
    %518 = vector.broadcast %cst_115 : f32 to vector<16x1xf32>
    %519 = arith.cmpf ogt, %517, %518 : vector<16x1xf32>
    %520 = tpu.reciprocal %517 {approx = true} : vector<16x1xf32> -> vector<16x1xf32>
    %521 = vector.broadcast %520 : vector<16x1xf32> to vector<16x8xf32>
    %522 = arith.mulf %515, %521 : vector<16x8xf32>
    %cst_116 = arith.constant 0.000000e+00 : f32
    %523 = vector.shape_cast %519 : vector<16x1xi1> to vector<16x1xi1>
    %524 = vector.broadcast %523 : vector<16x1xi1> to vector<16x8xi1>
    %525 = vector.broadcast %cst_116 : f32 to vector<16x8xf32>
    %526 = arith.select %524, %522, %525 : vector<16x8xi1>, vector<16x8xf32>
    %527 = vector.extract_strided_slice %378 {offsets = [0, 96], sizes = [16, 32], strides = [1, 1]} : vector<16x128xf32> to vector<16x32xf32>
    %528 = vector.broadcast %377 : vector<1x8xf32> to vector<16x8xf32>
    %529 = arith.mulf %526, %528 : vector<16x8xf32>
    %cst_117 = arith.constant dense<0.000000e+00> : vector<8x32xf32>
    %530 = tpu.matmul %529, %527, %cst_117 {dimension_numbers = #tpu.dot_dimension_numbers<[0], [0], [1], [1], [0, 1, 1, 1], [], []>} : vector<16x8xf32>, vector<16x32xf32>, vector<8x32xf32> -> vector<8x32xf32>
    %cst_118 = arith.constant dense<0.000000e+00> : vector<16x32xf32>
    %531 = tpu.matmul %526, %530, %cst_118 {dimension_numbers = #tpu.dot_dimension_numbers<[1], [0], [0], [1], [0, 0, 1, 1], [], []>} : vector<16x8xf32>, vector<8x32xf32>, vector<16x32xf32> -> vector<16x32xf32>
    %532 = vector.broadcast %369 : vector<16x1xf32> to vector<16x32xf32>
    %533 = arith.mulf %531, %532 : vector<16x32xf32>
    %534 = arith.addf %496, %533 : vector<16x32xf32>
    %cst_119 = arith.constant 2.500000e-01 : f32
    %535 = vector.broadcast %cst_119 : f32 to vector<16x32xf32>
    %536 = arith.mulf %534, %535 : vector<16x32xf32>
    %537 = vector.broadcast %10 : vector<1x32xf32> to vector<16x32xf32>
    %538 = arith.addf %536, %537 : vector<16x32xf32>
    %cst_120 = arith.constant 0.000000e+00 : f32
    %539 = vector.broadcast %cst_120 : f32 to vector<16x32xf32>
    %540 = arith.cmpf oge, %538, %539 : vector<16x32xf32>
    %cst_121 = arith.constant 2.000000e-01 : f32
    %541 = vector.broadcast %cst_121 : f32 to vector<16x32xf32>
    %542 = arith.mulf %541, %538 : vector<16x32xf32>
    %543 = arith.select %540, %538, %542 : vector<16x32xi1>, vector<16x32xf32>
    %cst_122 = arith.constant dense<0.000000e+00> : vector<16x32xf32>
    %544 = tpu.matmul %543, %11, %cst_122 {dimension_numbers = #tpu.dot_dimension_numbers<[1], [0], [0], [1], [0, 0, 1, 1], [], []>} : vector<16x32xf32>, vector<32x32xf32>, vector<16x32xf32> -> vector<16x32xf32>
    %545 = vector.broadcast %12 : vector<1x32xf32> to vector<16x32xf32>
    %546 = arith.mulf %544, %545 : vector<16x32xf32>
    %cst_123 = arith.constant dense<0.000000e+00> : vector<16xf32>
    %547 = vector.multi_reduction <add>, %546, %cst_123 [1] : vector<16x32xf32> to vector<16xf32>
    %548 = vector.shape_cast %547 : vector<16xf32> to vector<16x1xf32>
    %549 = vector.extract_strided_slice %544 {offsets = [0, 0], sizes = [8, 32], strides = [1, 1]} : vector<16x32xf32> to vector<8x32xf32>
    %cst_124 = arith.constant dense<0.000000e+00> : vector<1x8xf32>
    %550 = tpu.matmul %13, %549, %cst_124 {dimension_numbers = #tpu.dot_dimension_numbers<[1], [1], [0], [0], [0, 0, 1, 0], [], []>} : vector<1x32xf32>, vector<8x32xf32>, vector<1x8xf32> -> vector<1x8xf32>
    %cst_125 = arith.constant 0.000000e+00 : f32
    %551 = vector.broadcast %cst_125 : f32 to vector<16x32xf32>
    %552 = vector.broadcast %548 : vector<16x1xf32> to vector<16x8xf32>
    %553 = vector.broadcast %550 : vector<1x8xf32> to vector<16x8xf32>
    %554 = arith.addf %552, %553 : vector<16x8xf32>
    %cst_126 = arith.constant 0.000000e+00 : f32
    %555 = vector.broadcast %cst_126 : f32 to vector<16x8xf32>
    %556 = arith.cmpf oge, %554, %555 : vector<16x8xf32>
    %cst_127 = arith.constant 2.000000e-01 : f32
    %557 = vector.broadcast %cst_127 : f32 to vector<16x8xf32>
    %558 = arith.mulf %557, %554 : vector<16x8xf32>
    %559 = arith.select %556, %554, %558 : vector<16x8xi1>, vector<16x8xf32>
    %cst_128 = arith.constant -1.000000e+30 : f32
    %560 = vector.broadcast %cst_128 : f32 to vector<16x8xf32>
    %561 = arith.select %361, %559, %560 : vector<16x8xi1>, vector<16x8xf32>
    %cst_129 = arith.constant dense<0xFF800000> : vector<16xf32>
    %562 = vector.multi_reduction <maximumf>, %561, %cst_129 [1] : vector<16x8xf32> to vector<16xf32>
    %563 = vector.shape_cast %562 : vector<16xf32> to vector<16x1xf32>
    %564 = vector.broadcast %563 : vector<16x1xf32> to vector<16x8xf32>
    %565 = arith.subf %561, %564 : vector<16x8xf32>
    %566 = math.exp %565 : vector<16x8xf32>
    %cst_130 = arith.constant 0.000000e+00 : f32
    %567 = vector.broadcast %cst_130 : f32 to vector<16x8xf32>
    %568 = arith.select %361, %566, %567 : vector<16x8xi1>, vector<16x8xf32>
    %cst_131 = arith.constant dense<0.000000e+00> : vector<16xf32>
    %569 = vector.multi_reduction <add>, %568, %cst_131 [1] : vector<16x8xf32> to vector<16xf32>
    %570 = vector.shape_cast %569 : vector<16xf32> to vector<16x1xf32>
    %cst_132 = arith.constant 0.000000e+00 : f32
    %571 = vector.broadcast %cst_132 : f32 to vector<16x1xf32>
    %572 = arith.cmpf ogt, %570, %571 : vector<16x1xf32>
    %573 = tpu.reciprocal %570 {approx = true} : vector<16x1xf32> -> vector<16x1xf32>
    %574 = vector.broadcast %573 : vector<16x1xf32> to vector<16x8xf32>
    %575 = arith.mulf %568, %574 : vector<16x8xf32>
    %cst_133 = arith.constant 0.000000e+00 : f32
    %576 = vector.shape_cast %572 : vector<16x1xi1> to vector<16x1xi1>
    %577 = vector.broadcast %576 : vector<16x1xi1> to vector<16x8xi1>
    %578 = vector.broadcast %cst_133 : f32 to vector<16x8xf32>
    %579 = arith.select %577, %575, %578 : vector<16x8xi1>, vector<16x8xf32>
    %580 = vector.broadcast %377 : vector<1x8xf32> to vector<16x8xf32>
    %581 = arith.mulf %579, %580 : vector<16x8xf32>
    %cst_134 = arith.constant dense<0.000000e+00> : vector<8x32xf32>
    %582 = tpu.matmul %581, %544, %cst_134 {dimension_numbers = #tpu.dot_dimension_numbers<[0], [0], [1], [1], [0, 1, 1, 1], [], []>} : vector<16x8xf32>, vector<16x32xf32>, vector<8x32xf32> -> vector<8x32xf32>
    %cst_135 = arith.constant dense<0.000000e+00> : vector<16x32xf32>
    %583 = tpu.matmul %579, %582, %cst_135 {dimension_numbers = #tpu.dot_dimension_numbers<[1], [0], [0], [1], [0, 0, 1, 1], [], []>} : vector<16x8xf32>, vector<8x32xf32>, vector<16x32xf32> -> vector<16x32xf32>
    %584 = vector.broadcast %369 : vector<16x1xf32> to vector<16x32xf32>
    %585 = arith.mulf %583, %584 : vector<16x32xf32>
    %586 = arith.addf %551, %585 : vector<16x32xf32>
    %cst_136 = arith.constant 1.000000e+00 : f32
    %587 = vector.broadcast %cst_136 : f32 to vector<16x32xf32>
    %588 = arith.mulf %586, %587 : vector<16x32xf32>
    %589 = vector.broadcast %14 : vector<1x32xf32> to vector<16x32xf32>
    %590 = arith.addf %588, %589 : vector<16x32xf32>
    %cst_137 = arith.constant 0.000000e+00 : f32
    %591 = vector.broadcast %cst_137 : f32 to vector<16x32xf32>
    %592 = arith.cmpf oge, %590, %591 : vector<16x32xf32>
    %cst_138 = arith.constant 2.000000e-01 : f32
    %593 = vector.broadcast %cst_138 : f32 to vector<16x32xf32>
    %594 = arith.mulf %593, %590 : vector<16x32xf32>
    %595 = arith.select %592, %590, %594 : vector<16x32xi1>, vector<16x32xf32>
    %596 = vector.broadcast %15 : vector<1x32xf32> to vector<16x32xf32>
    %597 = arith.mulf %595, %596 : vector<16x32xf32>
    %cst_139 = arith.constant dense<0.000000e+00> : vector<16xf32>
    %598 = vector.multi_reduction <add>, %597, %cst_139 [1] : vector<16x32xf32> to vector<16xf32>
    %599 = vector.shape_cast %598 : vector<16xf32> to vector<16x1xf32>
    %600 = vector.broadcast %16 : vector<1x1xf32> to vector<16x1xf32>
    %601 = arith.addf %599, %600 : vector<16x1xf32>
    %cst_140 = arith.constant 0.000000e+00 : f32
    %602 = vector.broadcast %cst_140 : f32 to vector<16x1xf32>
    %603 = arith.cmpf oge, %601, %602 : vector<16x1xf32>
    %cst_141 = arith.constant 0.00999999977 : f32
    %604 = vector.broadcast %cst_141 : f32 to vector<16x1xf32>
    %605 = arith.mulf %604, %601 : vector<16x1xf32>
    %606 = arith.select %603, %601, %605 : vector<16x1xi1>, vector<16x1xf32>
    %c0_142 = arith.constant 0 : index
    %c0_143 = arith.constant 0 : index
    %607 = vector.load %arg3[%c0_142, %c0_143] : memref<16x1xf32, #tpu.memory_space<vmem>>, vector<16x1xf32>
    tpu.vector_store %arg3[%c0_142, %c0_143], %606 {strides = array<i32>} : memref<16x1xf32, #tpu.memory_space<vmem>>, vector<16x1xf32>,
    return
  }
}

</mosaic_0001>

<llo_original>
// kernel: hgat_forward.1
$region0: #{hgat_forward.1}
  #allocation0 [shape = 'u32[]', space=smem, size = 0x4, offset = 0x4, fixed_abs, tag = 'smem constant byte address 0x4 - core index']
  #allocation1 [shape = 'u32[144,128]{1,0:T(1,128)}', space=vmem, size = 0x12000, scoped, tag = 'internal scratch']
  %s0 = inlined_call_operand.vmem [shape: f32[128,5], index: 0, kind: input, shape index: {}]
  %s1 = inlined_call_operand.vmem [shape: f32[16,16], index: 1, kind: input, shape index: {}]
  %s2 = inlined_call_operand.vmem [shape: f32[400,128], index: 2, kind: input, shape index: {}]
  %s3 = inlined_call_operand.vmem [shape: f32[16,1], index: 3, kind: output, shape index: {}]
  %s4 = sld [smem:[#allocation0]]
  $region22: #{hgat_forward.1} parent=0
    _
  %s6 = ssub.s32 1, %s4
  %s7 = scalar_select 0, %s6, %s4
  // Predicated region
  $region2: #{hgat_forward.1} parent=0 // pred_check
    _
  $region3: #{hgat_forward.1} parent=0 // pred_check_branch
    %9 = sbr.rel (0) target = $region5
  $region4: #{hgat_forward.1} parent=0 // pred_region
    _
  $region5: #{hgat_forward.1} parent=0 // pred_fallthru
    _
  // Predicated region
  $region6: #{hgat_forward.1} parent=0 // pred_check
    _
  $region7: #{hgat_forward.1} parent=0 // pred_check_branch
    %11 = sbr.rel (0) target = $region9
  $region8: #{hgat_forward.1} parent=0 // pred_region
    _
  $region9: #{hgat_forward.1} parent=0 // pred_fallthru
    _
  // Predicated region
  $region10: #{hgat_forward.1} parent=0 // pred_check
    _
  $region11: #{hgat_forward.1} parent=0 // pred_check_branch
    %13 = sbr.rel (0) target = $region13
  $region12: #{hgat_forward.1} parent=0 // pred_region
    _
  $region13: #{hgat_forward.1} parent=0 // pred_fallthru
    _
  %v14 = vld [vmem:[%s2] sm:$0x1f]
  %v15 = vld [vmem:[%s2 + $0x8] sm:$0xff]
  %v16 = vld [vmem:[%s2 + $0x10] sm:$0xff]
  %v17 = vld [vmem:[%s2 + $0x18] sm:$0xff]
  %v18 = vld [vmem:[%s2 + $0x20] sm:$0xff]
  %v19 = vld [vmem:[%s2 + $0x28] sm:$0x1]
  %v20 = vld [vmem:[%s2 + $0x30] sm:$0x1]
  %v21 = vld [vmem:[%s2 + $0x38] sm:$0xff]
  %v22 = vld [vmem:[%s2 + $0x40] sm:$0xff]
  %v23 = vld [vmem:[%s2 + $0x48] sm:$0xff]
  %v24 = vld [vmem:[%s2 + $0x50] sm:$0xff]
  %v25 = vld [vmem:[%s2 + $0x58] sm:$0xff]
  %v26 = vld [vmem:[%s2 + $0x60] sm:$0xff]
  %v27 = vld [vmem:[%s2 + $0x68] sm:$0xff]
  %v28 = vld [vmem:[%s2 + $0x70] sm:$0xff]
  %v29 = vld [vmem:[%s2 + $0x78] sm:$0xff]
  %v30 = vld [vmem:[%s2 + $0x80] sm:$0xff]
  %v31 = vld [vmem:[%s2 + $0x88] sm:$0xff]
  %v32 = vld [vmem:[%s2 + $0x90] sm:$0xff]
  %v33 = vld [vmem:[%s2 + $0x98] sm:$0xff]
  %v34 = vld [vmem:[%s2 + $0xa0] sm:$0xff]
  %v35 = vld [vmem:[%s2 + $0xa8] sm:$0xff]
  %v36 = vld [vmem:[%s2 + $0xb0] sm:$0xff]
  %v37 = vld [vmem:[%s2 + $0xb8] sm:$0xff]
  %v38 = vld [vmem:[%s2 + $0xc0] sm:$0xff]
  %v39 = vld [vmem:[%s2 + $0xc8] sm:$0xff]
  %v40 = vld [vmem:[%s2 + $0xd0] sm:$0xff]
  %v41 = vld [vmem:[%s2 + $0xd8] sm:$0xff]
  %v42 = vld [vmem:[%s2 + $0xe0] sm:$0xff]
  %v43 = vld [vmem:[%s2 + $0xe8] sm:$0xff]
  %v44 = vld [vmem:[%s2 + $0xf0] sm:$0xff]
  %v45 = vld [vmem:[%s2 + $0xf8] sm:$0xff]
  %v46 = vld [vmem:[%s2 + $0x100] sm:$0xff]
  %v47 = vld [vmem:[%s2 + $0x108] sm:$0xff]
  %v48 = vld [vmem:[%s2 + $0x110] sm:$0xff]
  %v49 = vld [vmem:[%s2 + $0x118] sm:$0xff]
  %v50 = vld [vmem:[%s2 + $0x120] sm:$0xff]
  %v51 = vld [vmem:[%s2 + $0x128] sm:$0xff]
  %v52 = vld [vmem:[%s2 + $0x130] sm:$0xff]
  %v53 = vld [vmem:[%s2 + $0x138] sm:$0xf]
  %v54 = vld [vmem:[%s2 + $0x140] sm:$0x1]
  %v55 = vld [vmem:[%s2 + $0x148] sm:$0xff]
  %v56 = vld [vmem:[%s2 + $0x150] sm:$0xff]
  %v57 = vld [vmem:[%s2 + $0x158] sm:$0xff]
  %v58 = vld [vmem:[%s2 + $0x160] sm:$0xff]
  %v59 = vld [vmem:[%s2 + $0x168] sm:$0x1]
  %v60 = vld [vmem:[%s2 + $0x170] sm:$0x1]
  %v61 = vld [vmem:[%s2 + $0x178] sm:$0x1]
  %v62 = vld [vmem:[%s2 + $0x180] sm:$0x1]
  %v63 = vld [vmem:[%s2 + $0x188] sm:$0x1]
  %v64 = vld [vmem:[%s1] sm:$0xff]
  %v65 = vld [vmem:[%s1 + $0x8] sm:$0xff]
  %v66 = vld [vmem:[%s0] sm:$0xff]
  %v67 = vld [vmem:[%s0 + $0x8] sm:$0xff]
  %v68 = vld [vmem:[%s0 + $0x10] sm:$0xff]
  %v69 = vld [vmem:[%s0 + $0x18] sm:$0xff]
  %v70 = vld [vmem:[%s0 + $0x20] sm:$0xff]
  %v71 = vld [vmem:[%s0 + $0x28] sm:$0xff]
  %v72 = vld [vmem:[%s0 + $0x30] sm:$0xff]
  %v73 = vld [vmem:[%s0 + $0x38] sm:$0xff]
  %v74 = vld [vmem:[%s0 + $0x40] sm:$0xff]
  %v75 = vld [vmem:[%s0 + $0x48] sm:$0xff]
  %v76 = vld [vmem:[%s0 + $0x50] sm:$0xff]
  %v77 = vld [vmem:[%s0 + $0x58] sm:$0xff]
  %v78 = vld [vmem:[%s0 + $0x60] sm:$0xff]
  %v79 = vld [vmem:[%s0 + $0x68] sm:$0xff]
  %v80 = vld [vmem:[%s0 + $0x70] sm:$0xff]
  %v81 = vld [vmem:[%s0 + $0x78] sm:$0xff]
  %v82 = vlaneseq
  %v83 = vshrl.u32 %v82, 7
  %v84 = vsub.s32 0, %v83
  %v85 = vrot.slane %v19, %v84
  %vm86 = vcmask 39936
  %v88 = vsel %vm86, %v66, 0
  %v91 = vsel %vm86, %v67, 0
  %v94 = vsel %vm86, %v68, 0
  %v97 = vsel %vm86, %v69, 0
  %v100 = vsel %vm86, %v70, 0
  %v103 = vsel %vm86, %v71, 0
  %v106 = vsel %vm86, %v72, 0
  %v109 = vsel %vm86, %v73, 0
  %v112 = vsel %vm86, %v74, 0
  %v115 = vsel %vm86, %v75, 0
  %v118 = vsel %vm86, %v76, 0
  %v121 = vsel %vm86, %v77, 0
  %v124 = vsel %vm86, %v78, 0
  %v127 = vsel %vm86, %v79, 0
  %v130 = vsel %vm86, %v80, 0
  %v133 = vsel %vm86, %v81, 0
  %vm135 = vcmask 1044480
  %v137 = vsel %vm135, %v14, 0
  %139 = vmatprep.subr.mxu0 0.0
  %140 = vmatpush1.msra.mxu0 %v137
  %141 = vmatprep.subr.mxu0 0.0
  %142 = vmatpush1.msra.mxu0 0.0
  %143 = vmatprep.subr.mxu0 0.0
  %144 = vmatpush1.msra.mxu0 0.0
  %145 = vmatprep.subr.mxu0 0.0
  %146 = vmatpush1.msra.mxu0 0.0
  %147 = vmatprep.subr.mxu0 0.0
  %148 = vmatpush1.msra.mxu0 0.0
  %149 = vmatprep.subr.mxu0 0.0
  %150 = vmatpush1.msra.mxu0 0.0
  %151 = vmatprep.subr.mxu0 0.0
  %152 = vmatpush1.msra.mxu0 0.0
  %153 = vmatprep.subr.mxu0 0.0
  %154 = vmatpush1.msra.mxu0 0.0
  %155 = vmatprep.subr.mxu0 0.0
  %156 = vmatpush1.msra.mxu0 0.0
  %157 = vmatprep.subr.mxu0 0.0
  %158 = vmatpush1.msra.mxu0 0.0
  %159 = vmatprep.subr.mxu0 0.0
  %160 = vmatpush1.msra.mxu0 0.0
  %161 = vmatprep.subr.mxu0 0.0
  %162 = vmatpush1.msra.mxu0 0.0
  %163 = vmatprep.subr.mxu0 0.0
  %164 = vmatpush1.msra.mxu0 0.0
  %165 = vmatprep.subr.mxu0 0.0
  %166 = vmatpush1.msra.mxu0 0.0
  %167 = vmatprep.subr.mxu0 0.0
  %168 = vmatpush1.msra.mxu0 0.0
  %169 = vmatprep.subr.mxu0 0.0
  %170 = vmatpush1.msra.mxu0 0.0
  %171 = vmatprep.subr.mxu0 0.0
  %172 = vmatpush1.msra.mxu0 0.0
  %173 = vmatprep.subr.mxu0 0.0
  %174 = vmatpush1.msra.mxu0 0.0
  %175 = vmatprep.subr.mxu0 0.0
  %176 = vmatpush1.msra.mxu0 0.0
  %177 = vmatprep.subr.mxu0 0.0
  %178 = vmatpush1.msra.mxu0 0.0
  %179 = vmatprep.subr.mxu0 0.0
  %180 = vmatpush1.msra.mxu0 0.0
  %181 = vmatprep.subr.mxu0 0.0
  %182 = vmatpush1.msra.mxu0 0.0
  %183 = vmatprep.subr.mxu0 0.0
  %184 = vmatpush1.msra.mxu0 0.0
  %185 = vmatprep.subr.mxu0 0.0
  %186 = vmatpush1.msra.mxu0 0.0
  %187 = vmatprep.subr.mxu0 0.0
  %188 = vmatpush1.msra.mxu0 0.0
  %189 = vmatprep.subr.mxu0 0.0
  %190 = vmatpush1.msra.mxu0 0.0
  %191 = vmatprep.subr.mxu0 0.0
  %192 = vmatpush1.msra.mxu0 0.0
  %193 = vmatprep.subr.mxu0 0.0
  %194 = vmatpush1.msra.mxu0 0.0
  %195 = vmatprep.subr.mxu0 0.0
  %196 = vmatpush1.msra.mxu0 0.0
  %197 = vmatprep.subr.mxu0 0.0
  %198 = vmatpush1.msra.mxu0 0.0
  %199 = vmatprep.subr.mxu0 0.0
  %200 = vmatpush1.msra.mxu0 0.0
  %201 = vmatprep.subr.mxu0 0.0
  %202 = vmatpush1.msra.mxu0 0.0
  %203 = vmatprep.mubr.f32.mxu0 0.0
  %204 = vmatmul.mubr.f32.gmra.mrb[0].mxu0 %v88
  %v205 = vpop.f32.mrb[0].mxu0
  %v206 = vadd.f32 %v85, %v205
  %v207 = vpop.f32.mrb[0].mxu0
  %208 = vmatprep.mubr.f32.mxu0 0.0
  %209 = vmatmul.mubr.f32.gmra.mrb[0].mxu0 %v91
  %v210 = vpop.f32.mrb[0].mxu0
  %v211 = vadd.f32 %v85, %v210
  %v212 = vpop.f32.mrb[0].mxu0
  %213 = vmatprep.mubr.f32.mxu0 0.0
  %214 = vmatmul.mubr.f32.gmra.mrb[0].mxu0 %v94
  %v215 = vpop.f32.mrb[0].mxu0
  %v216 = vadd.f32 %v85, %v215
  %v217 = vpop.f32.mrb[0].mxu0
  %218 = vmatprep.mubr.f32.mxu0 0.0
  %219 = vmatmul.mubr.f32.gmra.mrb[0].mxu0 %v97
  %v220 = vpop.f32.mrb[0].mxu0
  %v221 = vadd.f32 %v85, %v220
  %v222 = vpop.f32.mrb[0].mxu0
  %223 = vmatprep.mubr.f32.mxu0 0.0
  %224 = vmatmul.mubr.f32.gmra.mrb[0].mxu0 %v100
  %v225 = vpop.f32.mrb[0].mxu0
  %v226 = vadd.f32 %v85, %v225
  %v227 = vpop.f32.mrb[0].mxu0
  %228 = vmatprep.mubr.f32.mxu0 0.0
  %229 = vmatmul.mubr.f32.gmra.mrb[0].mxu0 %v103
  %v230 = vpop.f32.mrb[0].mxu0
  %v231 = vadd.f32 %v85, %v230
  %v232 = vpop.f32.mrb[0].mxu0
  %233 = vmatprep.mubr.f32.mxu0 0.0
  %234 = vmatmul.mubr.f32.gmra.mrb[0].mxu0 %v106
  %v235 = vpop.f32.mrb[0].mxu0
  %v236 = vadd.f32 %v85, %v235
  %v237 = vpop.f32.mrb[0].mxu0
  %238 = vmatprep.mubr.f32.mxu0 0.0
  %239 = vmatmul.mubr.f32.gmra.mrb[0].mxu0 %v109
  %v240 = vpop.f32.mrb[0].mxu0
  %v241 = vadd.f32 %v85, %v240
  %v242 = vpop.f32.mrb[0].mxu0
  %243 = vmatprep.mubr.f32.mxu0 0.0
  %244 = vmatmul.mubr.f32.gmra.mrb[0].mxu0 %v112
  %v245 = vpop.f32.mrb[0].mxu0
  %v246 = vadd.f32 %v85, %v245
  %v247 = vpop.f32.mrb[0].mxu0
  %248 = vmatprep.mubr.f32.mxu0 0.0
  %249 = vmatmul.mubr.f32.gmra.mrb[0].mxu0 %v115
  %v250 = vpop.f32.mrb[0].mxu0
  %v251 = vadd.f32 %v85, %v250
  %v252 = vpop.f32.mrb[0].mxu0
  %253 = vmatprep.mubr.f32.mxu0 0.0
  %254 = vmatmul.mubr.f32.gmra.mrb[0].mxu0 %v118
  %v255 = vpop.f32.mrb[0].mxu0
  %v256 = vadd.f32 %v85, %v255
  %v257 = vpop.f32.mrb[0].mxu0
  %258 = vmatprep.mubr.f32.mxu0 0.0
  %259 = vmatmul.mubr.f32.gmra.mrb[0].mxu0 %v121
  %v260 = vpop.f32.mrb[0].mxu0
  %v261 = vadd.f32 %v85, %v260
  %v262 = vpop.f32.mrb[0].mxu0
  %263 = vmatprep.mubr.f32.mxu0 0.0
  %264 = vmatmul.mubr.f32.gmra.mrb[0].mxu0 %v124
  %v265 = vpop.f32.mrb[0].mxu0
  %v266 = vadd.f32 %v85, %v265
  %v267 = vpop.f32.mrb[0].mxu0
  %268 = vmatprep.mubr.f32.mxu0 0.0
  %269 = vmatmul.mubr.f32.gmra.mrb[0].mxu0 %v127
  %v270 = vpop.f32.mrb[0].mxu0
  %v271 = vadd.f32 %v85, %v270
  %v272 = vpop.f32.mrb[0].mxu0
  %273 = vmatprep.mubr.f32.mxu0 0.0
  %274 = vmatmul.mubr.f32.gmra.mrb[0].mxu0 %v130
  %v275 = vpop.f32.mrb[0].mxu0
  %v276 = vadd.f32 %v85, %v275
  %v277 = vpop.f32.mrb[0].mxu0
  %278 = vmatprep.mubr.f32.mxu0 0.0
  %279 = vmatmul.mubr.f32.gmra.mrb[0].mxu0 %v133
  %v280 = vpop.f32.mrb[0].mxu0
  %v281 = vadd.f32 %v85, %v280
  %v282 = vpop.f32.mrb[0].mxu0
  %283 = vdwg.mxu0
  %v284 = vlaneseq
  %v285 = vshrl.u32 %v284, 7
  %v286 = vsub.s32 0, %v285
  %v287 = vrot.slane %v20, %v286
  %vm288 = vcmask 261120
  %v290 = vsel %vm288, 0.0, 0
  %292 = vmatprep.subr.mxu0 0.0
  %293 = vmatpush1.msra.mxu0 %v15
  %294 = vmatprep.subr.mxu0 0.0
  %295 = vmatpush1.msra.mxu0 %v16
  %296 = vmatprep.subr.mxu0 0.0
  %297 = vmatpush1.msra.mxu0 %v17
  %298 = vmatprep.subr.mxu0 0.0
  %299 = vmatpush1.msra.mxu0 %v18
  %300 = vmatprep.subr.mxu0 0.0
  %301 = vmatpush1.msra.mxu0 0.0
  %302 = vmatprep.subr.mxu0 0.0
  %303 = vmatpush1.msra.mxu0 0.0
  %304 = vmatprep.subr.mxu0 0.0
  %305 = vmatpush1.msra.mxu0 0.0
  %306 = vmatprep.subr.mxu0 0.0
  %307 = vmatpush1.msra.mxu0 0.0
  %308 = vmatprep.subr.mxu0 0.0
  %309 = vmatpush1.msra.mxu0 0.0
  %310 = vmatprep.subr.mxu0 0.0
  %311 = vmatpush1.msra.mxu0 0.0
  %312 = vmatprep.subr.mxu0 0.0
  %313 = vmatpush1.msra.mxu0 0.0
  %314 = vmatprep.subr.mxu0 0.0
  %315 = vmatpush1.msra.mxu0 0.0
  %316 = vmatprep.subr.mxu0 0.0
  %317 = vmatpush1.msra.mxu0 0.0
  %318 = vmatprep.subr.mxu0 0.0
  %319 = vmatpush1.msra.mxu0 0.0
  %320 = vmatprep.subr.mxu0 0.0
  %321 = vmatpush1.msra.mxu0 0.0
  %322 = vmatprep.subr.mxu0 0.0
  %323 = vmatpush1.msra.mxu0 0.0
  %324 = vmatprep.subr.mxu0 0.0
  %325 = vmatpush1.msra.mxu0 0.0
  %326 = vmatprep.subr.mxu0 0.0
  %327 = vmatpush1.msra.mxu0 0.0
  %328 = vmatprep.subr.mxu0 0.0
  %329 = vmatpush1.msra.mxu0 0.0
  %330 = vmatprep.subr.mxu0 0.0
  %331 = vmatpush1.msra.mxu0 0.0
  %332 = vmatprep.subr.mxu0 0.0
  %333 = vmatpush1.msra.mxu0 0.0
  %334 = vmatprep.subr.mxu0 0.0
  %335 = vmatpush1.msra.mxu0 0.0
  %336 = vmatprep.subr.mxu0 0.0
  %337 = vmatpush1.msra.mxu0 0.0
  %338 = vmatprep.subr.mxu0 0.0
  %339 = vmatpush1.msra.mxu0 0.0
  %340 = vmatprep.subr.mxu0 0.0
  %341 = vmatpush1.msra.mxu0 0.0
  %342 = vmatprep.subr.mxu0 0.0
  %343 = vmatpush1.msra.mxu0 0.0
  %344 = vmatprep.subr.mxu0 0.0
  %345 = vmatpush1.msra.mxu0 0.0
  %346 = vmatprep.subr.mxu0 0.0
  %347 = vmatpush1.msra.mxu0 0.0
  %348 = vmatprep.subr.mxu0 0.0
  %349 = vmatpush1.msra.mxu0 0.0
  %350 = vmatprep.subr.mxu0 0.0
  %351 = vmatpush1.msra.mxu0 0.0
  %352 = vmatprep.subr.mxu0 0.0
  %353 = vmatpush1.msra.mxu0 0.0
  %354 = vmatprep.subr.mxu0 0.0
  %355 = vmatpush1.msra.mxu0 0.0
  %356 = vmatprep.mubr.f32.mxu0 0.0
  %357 = vmatmul.mubr.f32.gmra.mrb[0].mxu0 %v290
  %v358 = vpop.f32.mrb[0].mxu0
  %v359 = vadd.f32 0.0, %v358
  %v360 = vpop.f32.mrb[0].mxu0
  %361 = vmatprep.mubr.f32.mxu0 0.0
  %362 = vmatmul.mubr.f32.gmra.mrb[0].mxu0 %v290
  %v363 = vpop.f32.mrb[0].mxu0
  %v364 = vadd.f32 0.0, %v363
  %v365 = vpop.f32.mrb[0].mxu0
  %366 = vdwg.mxu0
  %v367 = vadd.f32 %v206, %v359
  %v368 = vadd.f32 %v211, %v364
  %v369 = vxor.u32 %v367, 2147483648
  %v370 = vxor.u32 %v368, 2147483648
  %v371 = vmul.f32 %v369, 1.442695
  %v372 = vpow.pop %v371
  %v373 = vmul.f32 %v370, 1.442695
  %v374 = vpow.pop %v373
  %v375 = vadd.f32 %v372, 1.0
  %v376 = vadd.f32 %v374, 1.0
  %v377 = vrcp.pop %v375
  %v378 = vmul.f32 1.0, %v377
  %v379 = vrcp.pop %v376
  %v380 = vmul.f32 1.0, %v379
  %382 = vrot.lane.b32.xlu0 %v287, 64
  %v383 = vpop.permute.xlu0 %382
  %v385 = vadd.f32 %v359, %v383
  %v386 = vadd.f32 %v364, %v383
  %389 = vrot.lane.b32.xlu0 %v385, 64
  %v390 = vpop.permute.xlu0 %389
  %391 = vrot.lane.b32.xlu0 %v386, 64
  %v392 = vpop.permute.xlu0 %391
  %v395 = vmul.f32 %v378, %v390
  %v396 = vmul.f32 %v380, %v392
  %399 = vrot.lane.b32.xlu0 %v395, 64
  %v400 = vpop.permute.xlu0 %399
  %401 = vrot.lane.b32.xlu0 %v396, 64
  %v402 = vpop.permute.xlu0 %401
  %v405 = vadd.f32 %v206, %v400
  %v406 = vadd.f32 %v211, %v402
  %v407 = vtanh.pop %v405
  %v408 = vtanh.pop %v406
  %v409 = vsub.f32 1.0, %v378
  %v410 = vsub.f32 1.0, %v380
  %413 = vrot.lane.b32.xlu0 %v407, 96
  %v414 = vpop.permute.xlu0 %413
  %415 = vrot.lane.b32.xlu0 %v408, 96
  %v416 = vpop.permute.xlu0 %415
  %v419 = vmul.f32 %v409, %v414
  %v420 = vmul.f32 %v410, %v416
  %v421 = vmul.f32 %v378, 0.0
  %v422 = vmul.f32 %v380, 0.0
  %v423 = vadd.f32 %v419, %v421
  %v424 = vadd.f32 %v420, %v422
  %427 = vrot.lane.b32.xlu0 %v423, 96
  %v428 = vpop.permute.xlu0 %427
  %429 = vrot.lane.b32.xlu0 %v424, 96
  %v430 = vpop.permute.xlu0 %429
  %v431 = vsel %vm288, %v428, 0
  %v433 = vsel %vm288, %v430, 0
  %435 = vmatprep.subr.mxu0 0.0
  %436 = vmatpush1.msra.mxu0 %v15
  %437 = vmatprep.subr.mxu0 0.0
  %438 = vmatpush1.msra.mxu0 %v16
  %439 = vmatprep.subr.mxu0 0.0
  %440 = vmatpush1.msra.mxu0 %v17
  %441 = vmatprep.subr.mxu0 0.0
  %442 = vmatpush1.msra.mxu0 %v18
  %443 = vmatprep.subr.mxu0 0.0
  %444 = vmatpush1.msra.mxu0 0.0
  %445 = vmatprep.subr.mxu0 0.0
  %446 = vmatpush1.msra.mxu0 0.0
  %447 = vmatprep.subr.mxu0 0.0
  %448 = vmatpush1.msra.mxu0 0.0
  %449 = vmatprep.subr.mxu0 0.0
  %450 = vmatpush1.msra.mxu0 0.0
  %451 = vmatprep.subr.mxu0 0.0
  %452 = vmatpush1.msra.mxu0 0.0
  %453 = vmatprep.subr.mxu0 0.0
  %454 = vmatpush1.msra.mxu0 0.0
  %455 = vmatprep.subr.mxu0 0.0
  %456 = vmatpush1.msra.mxu0 0.0
  %457 = vmatprep.subr.mxu0 0.0
  %458 = vmatpush1.msra.mxu0 0.0
  %459 = vmatprep.subr.mxu0 0.0
  %460 = vmatpush1.msra.mxu0 0.0
  %461 = vmatprep.subr.mxu0 0.0
  %462 = vmatpush1.msra.mxu0 0.0
  %463 = vmatprep.subr.mxu0 0.0
  %464 = vmatpush1.msra.mxu0 0.0
  %465 = vmatprep.subr.mxu0 0.0
  %466 = vmatpush1.msra.mxu0 0.0
  %467 = vmatprep.subr.mxu0 0.0
  %468 = vmatpush1.msra.mxu0 0.0
  %469 = vmatprep.subr.mxu0 0.0
  %470 = vmatpush1.msra.mxu0 0.0
  %471 = vmatprep.subr.mxu0 0.0
  %472 = vmatpush1.msra.mxu0 0.0
  %473 = vmatprep.subr.mxu0 0.0
  %474 = vmatpush1.msra.mxu0 0.0
  %475 = vmatprep.subr.mxu0 0.0
  %476 = vmatpush1.msra.mxu0 0.0
  %477 = vmatprep.subr.mxu0 0.0
  %478 = vmatpush1.msra.mxu0 0.0
  %479 = vmatprep.subr.mxu0 0.0
  %480 = vmatpush1.msra.mxu0 0.0
  %481 = vmatprep.subr.mxu0 0.0
  %482 = vmatpush1.msra.mxu0 0.0
  %483 = vmatprep.subr.mxu0 0.0
  %484 = vmatpush1.msra.mxu0 0.0
  %485 = vmatprep.subr.mxu0 0.0
  %486 = vmatpush1.msra.mxu0 0.0
  %487 = vmatprep.subr.mxu0 0.0
  %488 = vmatpush1.msra.mxu0 0.0
  %489 = vmatprep.subr.mxu0 0.0
  %490 = vmatpush1.msra.mxu0 0.0
  %491 = vmatprep.subr.mxu0 0.0
  %492 = vmatpush1.msra.mxu0 0.0
  %493 = vmatprep.subr.mxu0 0.0
  %494 = vmatpush1.msra.mxu0 0.0
  %495 = vmatprep.subr.mxu0 0.0
  %496 = vmatpush1.msra.mxu0 0.0
  %497 = vmatprep.subr.mxu0 0.0
  %498 = vmatpush1.msra.mxu0 0.0
  %499 = vmatprep.mubr.f32.mxu0 0.0
  %500 = vmatmul.mubr.f32.gmra.mrb[0].mxu0 %v431
  %v501 = vpop.f32.mrb[0].mxu0
  %v502 = vadd.f32 0.0, %v501
  %v503 = vpop.f32.mrb[0].mxu0
  %504 = vmatprep.mubr.f32.mxu0 0.0
  %505 = vmatmul.mubr.f32.gmra.mrb[0].mxu0 %v433
  %v506 = vpop.f32.mrb[0].mxu0
  %v507 = vadd.f32 0.0, %v506
  %v508 = vpop.f32.mrb[0].mxu0
  %509 = vdwg.mxu0
  %v510 = vadd.f32 %v216, %v502
  %v511 = vadd.f32 %v221, %v507
  %v512 = vxor.u32 %v510, 2147483648
  %v513 = vxor.u32 %v511, 2147483648
  %v514 = vmul.f32 %v512, 1.442695
  %v515 = vpow.pop %v514
  %v516 = vmul.f32 %v513, 1.442695
  %v517 = vpow.pop %v516
  %v518 = vadd.f32 %v515, 1.0
  %v519 = vadd.f32 %v517, 1.0
  %v520 = vrcp.pop %v518
  %v521 = vmul.f32 1.0, %v520
  %v522 = vrcp.pop %v519
  %v523 = vmul.f32 1.0, %v522
  %v524 = vadd.f32 %v502, %v383
  %v525 = vadd.f32 %v507, %v383
  %528 = vrot.lane.b32.xlu0 %v524, 64
  %v529 = vpop.permute.xlu0 %528
  %530 = vrot.lane.b32.xlu0 %v525, 64
  %v531 = vpop.permute.xlu0 %530
  %v534 = vmul.f32 %v521, %v529
  %v535 = vmul.f32 %v523, %v531
  %538 = vrot.lane.b32.xlu0 %v534, 64
  %v539 = vpop.permute.xlu0 %538
  %540 = vrot.lane.b32.xlu0 %v535, 64
  %v541 = vpop.permute.xlu0 %540
  %v544 = vadd.f32 %v216, %v539
  %v545 = vadd.f32 %v221, %v541
  %v546 = vtanh.pop %v544
  %v547 = vtanh.pop %v545
  %v548 = vsub.f32 1.0, %v521
  %v549 = vsub.f32 1.0, %v523
  %552 = vrot.lane.b32.xlu0 %v546, 96
  %v553 = vpop.permute.xlu0 %552
  %554 = vrot.lane.b32.xlu0 %v547, 96
  %v555 = vpop.permute.xlu0 %554
  %v558 = vmul.f32 %v548, %v553
  %v559 = vmul.f32 %v549, %v555
  %v560 = vmul.f32 %v521, %v423
  %v561 = vmul.f32 %v523, %v424
  %v562 = vadd.f32 %v558, %v560
  %v563 = vadd.f32 %v559, %v561
  %566 = vrot.lane.b32.xlu0 %v562, 96
  %v567 = vpop.permute.xlu0 %566
  %568 = vrot.lane.b32.xlu0 %v563, 96
  %v569 = vpop.permute.xlu0 %568
  %v570 = vsel %vm288, %v567, 0
  %v572 = vsel %vm288, %v569, 0
  %574 = vmatprep.subr.mxu0 0.0
  %575 = vmatpush1.msra.mxu0 %v15
  %576 = vmatprep.subr.mxu0 0.0
  %577 = vmatpush1.msra.mxu0 %v16
  %578 = vmatprep.subr.mxu0 0.0
  %579 = vmatpush1.msra.mxu0 %v17
  %580 = vmatprep.subr.mxu0 0.0
  %581 = vmatpush1.msra.mxu0 %v18
  %582 = vmatprep.subr.mxu0 0.0
  %583 = vmatpush1.msra.mxu0 0.0
  %584 = vmatprep.subr.mxu0 0.0
  %585 = vmatpush1.msra.mxu0 0.0
  %586 = vmatprep.subr.mxu0 0.0
  %587 = vmatpush1.msra.mxu0 0.0
  %588 = vmatprep.subr.mxu0 0.0
  %589 = vmatpush1.msra.mxu0 0.0
  %590 = vmatprep.subr.mxu0 0.0
  %591 = vmatpush1.msra.mxu0 0.0
  %592 = vmatprep.subr.mxu0 0.0
  %593 = vmatpush1.msra.mxu0 0.0
  %594 = vmatprep.subr.mxu0 0.0
  %595 = vmatpush1.msra.mxu0 0.0
  %596 = vmatprep.subr.mxu0 0.0
  %597 = vmatpush1.msra.mxu0 0.0
  %598 = vmatprep.subr.mxu0 0.0
  %599 = vmatpush1.msra.mxu0 0.0
  %600 = vmatprep.subr.mxu0 0.0
  %601 = vmatpush1.msra.mxu0 0.0
  %602 = vmatprep.subr.mxu0 0.0
  %603 = vmatpush1.msra.mxu0 0.0
  %604 = vmatprep.subr.mxu0 0.0
  %605 = vmatpush1.msra.mxu0 0.0
  %606 = vmatprep.subr.mxu0 0.0
  %607 = vmatpush1.msra.mxu0 0.0
  %608 = vmatprep.subr.mxu0 0.0
  %609 = vmatpush1.msra.mxu0 0.0
  %610 = vmatprep.subr.mxu0 0.0
  %611 = vmatpush1.msra.mxu0 0.0
  %612 = vmatprep.subr.mxu0 0.0
  %613 = vmatpush1.msra.mxu0 0.0
  %614 = vmatprep.subr.mxu0 0.0
  %615 = vmatpush1.msra.mxu0 0.0
  %616 = vmatprep.subr.mxu0 0.0
  %617 = vmatpush1.msra.mxu0 0.0
  %618 = vmatprep.subr.mxu0 0.0
  %619 = vmatpush1.msra.mxu0 0.0
  %620 = vmatprep.subr.mxu0 0.0
  %621 = vmatpush1.msra.mxu0 0.0
  %622 = vmatprep.subr.mxu0 0.0
  %623 = vmatpush1.msra.mxu0 0.0
  %624 = vmatprep.subr.mxu0 0.0
  %625 = vmatpush1.msra.mxu0 0.0
  %626 = vmatprep.subr.mxu0 0.0
  %627 = vmatpush1.msra.mxu0 0.0
  %628 = vmatprep.subr.mxu0 0.0
  %629 = vmatpush1.msra.mxu0 0.0
  %630 = vmatprep.subr.mxu0 0.0
  %631 = vmatpush1.msra.mxu0 0.0
  %632 = vmatprep.subr.mxu0 0.0
  %633 = vmatpush1.msra.mxu0 0.0
  %634 = vmatprep.subr.mxu0 0.0
  %635 = vmatpush1.msra.mxu0 0.0
  %636 = vmatprep.subr.mxu0 0.0
  %637 = vmatpush1.msra.mxu0 0.0
  %638 = vmatprep.mubr.f32.mxu0 0.0
  %639 = vmatmul.mubr.f32.gmra.mrb[0].mxu0 %v570
  %v640 = vpop.f32.mrb[0].mxu0
  %v641 = vadd.f32 0.0, %v640
  %v642 = vpop.f32.mrb[0].mxu0
  %643 = vmatprep.mubr.f32.mxu0 0.0
  %644 = vmatmul.mubr.f32.gmra.mrb[0].mxu0 %v572
  %v645 = vpop.f32.mrb[0].mxu0
  %v646 = vadd.f32 0.0, %v645
  %v647 = vpop.f32.mrb[0].mxu0
  %648 = vdwg.mxu0
  %v649 = vadd.f32 %v226, %v641
  %v650 = vadd.f32 %v231, %v646
  %v651 = vxor.u32 %v649, 2147483648
  %v652 = vxor.u32 %v650, 2147483648
  %v653 = vmul.f32 %v651, 1.442695
  %v654 = vpow.pop %v653
  %v655 = vmul.f32 %v652, 1.442695
  %v656 = vpow.pop %v655
  %v657 = vadd.f32 %v654, 1.0
  %v658 = vadd.f32 %v656, 1.0
  %v659 = vrcp.pop %v657
  %v660 = vmul.f32 1.0, %v659
  %v661 = vrcp.pop %v658
  %v662 = vmul.f32 1.0, %v661
  %v663 = vadd.f32 %v641, %v383
  %v664 = vadd.f32 %v646, %v383
  %667 = vrot.lane.b32.xlu0 %v663, 64
  %v668 = vpop.permute.xlu0 %667
  %669 = vrot.lane.b32.xlu0 %v664, 64
  %v670 = vpop.permute.xlu0 %669
  %v673 = vmul.f32 %v660, %v668
  %v674 = vmul.f32 %v662, %v670
  %677 = vrot.lane.b32.xlu0 %v673, 64
  %v678 = vpop.permute.xlu0 %677
  %679 = vrot.lane.b32.xlu0 %v674, 64
  %v680 = vpop.permute.xlu0 %679
  %v683 = vadd.f32 %v226, %v678
  %v684 = vadd.f32 %v231, %v680
  %v685 = vtanh.pop %v683
  %v686 = vtanh.pop %v684
  %v687 = vsub.f32 1.0, %v660
  %v688 = vsub.f32 1.0, %v662
  %691 = vrot.lane.b32.xlu0 %v685, 96
  %v692 = vpop.permute.xlu0 %691
  %693 = vrot.lane.b32.xlu0 %v686, 96
  %v694 = vpop.permute.xlu0 %693
  %v697 = vmul.f32 %v687, %v692
  %v698 = vmul.f32 %v688, %v694
  %v699 = vmul.f32 %v660, %v562
  %v700 = vmul.f32 %v662, %v563
  %v701 = vadd.f32 %v697, %v699
  %v702 = vadd.f32 %v698, %v700
  %705 = vrot.lane.b32.xlu0 %v701, 96
  %v706 = vpop.permute.xlu0 %705
  %707 = vrot.lane.b32.xlu0 %v702, 96
  %v708 = vpop.permute.xlu0 %707
  %v709 = vsel %vm288, %v706, 0
  %v711 = vsel %vm288, %v708, 0
  %713 = vmatprep.subr.mxu0 0.0
  %714 = vmatpush1.msra.mxu0 %v15
  %715 = vmatprep.subr.mxu0 0.0
  %716 = vmatpush1.msra.mxu0 %v16
  %717 = vmatprep.subr.mxu0 0.0
  %718 = vmatpush1.msra.mxu0 %v17
  %719 = vmatprep.subr.mxu0 0.0
  %720 = vmatpush1.msra.mxu0 %v18
  %721 = vmatprep.subr.mxu0 0.0
  %722 = vmatpush1.msra.mxu0 0.0
  %723 = vmatprep.subr.mxu0 0.0
  %724 = vmatpush1.msra.mxu0 0.0
  %725 = vmatprep.subr.mxu0 0.0
  %726 = vmatpush1.msra.mxu0 0.0
  %727 = vmatprep.subr.mxu0 0.0
  %728 = vmatpush1.msra.mxu0 0.0
  %729 = vmatprep.subr.mxu0 0.0
  %730 = vmatpush1.msra.mxu0 0.0
  %731 = vmatprep.subr.mxu0 0.0
  %732 = vmatpush1.msra.mxu0 0.0
  %733 = vmatprep.subr.mxu0 0.0
  %734 = vmatpush1.msra.mxu0 0.0
  %735 = vmatprep.subr.mxu0 0.0
  %736 = vmatpush1.msra.mxu0 0.0
  %737 = vmatprep.subr.mxu0 0.0
  %738 = vmatpush1.msra.mxu0 0.0
  %739 = vmatprep.subr.mxu0 0.0
  %740 = vmatpush1.msra.mxu0 0.0
  %741 = vmatprep.subr.mxu0 0.0
  %742 = vmatpush1.msra.mxu0 0.0
  %743 = vmatprep.subr.mxu0 0.0
  %744 = vmatpush1.msra.mxu0 0.0
  %745 = vmatprep.subr.mxu0 0.0
  %746 = vmatpush1.msra.mxu0 0.0
  %747 = vmatprep.subr.mxu0 0.0
  %748 = vmatpush1.msra.mxu0 0.0
  %749 = vmatprep.subr.mxu0 0.0
  %750 = vmatpush1.msra.mxu0 0.0
  %751 = vmatprep.subr.mxu0 0.0
  %752 = vmatpush1.msra.mxu0 0.0
  %753 = vmatprep.subr.mxu0 0.0
  %754 = vmatpush1.msra.mxu0 0.0
  %755 = vmatprep.subr.mxu0 0.0
  %756 = vmatpush1.msra.mxu0 0.0
  %757 = vmatprep.subr.mxu0 0.0
  %758 = vmatpush1.msra.mxu0 0.0
  %759 = vmatprep.subr.mxu0 0.0
  %760 = vmatpush1.msra.mxu0 0.0
  %761 = vmatprep.subr.mxu0 0.0
  %762 = vmatpush1.msra.mxu0 0.0
  %763 = vmatprep.subr.mxu0 0.0
  %764 = vmatpush1.msra.mxu0 0.0
  %765 = vmatprep.subr.mxu0 0.0
  %766 = vmatpush1.msra.mxu0 0.0
  %767 = vmatprep.subr.mxu0 0.0
  %768 = vmatpush1.msra.mxu0 0.0
  %769 = vmatprep.subr.mxu0 0.0
  %770 = vmatpush1.msra.mxu0 0.0
  %771 = vmatprep.subr.mxu0 0.0
  %772 = vmatpush1.msra.mxu0 0.0
  %773 = vmatprep.subr.mxu0 0.0
  %774 = vmatpush1.msra.mxu0 0.0
  %775 = vmatprep.subr.mxu0 0.0
  %776 = vmatpush1.msra.mxu0 0.0
  %777 = vmatprep.mubr.f32.mxu0 0.0
  %778 = vmatmul.mubr.f32.gmra.mrb[0].mxu0 %v709
  %v779 = vpop.f32.mrb[0].mxu0
  %v780 = vadd.f32 0.0, %v779
  %v781 = vpop.f32.mrb[0].mxu0
  %782 = vmatprep.mubr.f32.mxu0 0.0
  %783 = vmatmul.mubr.f32.gmra.mrb[0].mxu0 %v711
  %v784 = vpop.f32.mrb[0].mxu0
  %v785 = vadd.f32 0.0, %v784
  %v786 = vpop.f32.mrb[0].mxu0
  %787 = vdwg.mxu0
  %v788 = vadd.f32 %v236, %v780
  %v789 = vadd.f32 %v241, %v785
  %v790 = vxor.u32 %v788, 2147483648
  %v791 = vxor.u32 %v789, 2147483648
  %v792 = vmul.f32 %v790, 1.442695
  %v793 = vpow.pop %v792
  %v794 = vmul.f32 %v791, 1.442695
  %v795 = vpow.pop %v794
  %v796 = vadd.f32 %v793, 1.0
  %v797 = vadd.f32 %v795, 1.0
  %v798 = vrcp.pop %v796
  %v799 = vmul.f32 1.0, %v798
  %v800 = vrcp.pop %v797
  %v801 = vmul.f32 1.0, %v800
  %v802 = vadd.f32 %v780, %v383
  %v803 = vadd.f32 %v785, %v383
  %806 = vrot.lane.b32.xlu0 %v802, 64
  %v807 = vpop.permute.xlu0 %806
  %808 = vrot.lane.b32.xlu0 %v803, 64
  %v809 = vpop.permute.xlu0 %808
  %v812 = vmul.f32 %v799, %v807
  %v813 = vmul.f32 %v801, %v809
  %816 = vrot.lane.b32.xlu0 %v812, 64
  %v817 = vpop.permute.xlu0 %816
  %818 = vrot.lane.b32.xlu0 %v813, 64
  %v819 = vpop.permute.xlu0 %818
  %v822 = vadd.f32 %v236, %v817
  %v823 = vadd.f32 %v241, %v819
  %v824 = vtanh.pop %v822
  %v825 = vtanh.pop %v823
  %v826 = vsub.f32 1.0, %v799
  %v827 = vsub.f32 1.0, %v801
  %830 = vrot.lane.b32.xlu0 %v824, 96
  %v831 = vpop.permute.xlu0 %830
  %832 = vrot.lane.b32.xlu0 %v825, 96
  %v833 = vpop.permute.xlu0 %832
  %v836 = vmul.f32 %v826, %v831
  %v837 = vmul.f32 %v827, %v833
  %v838 = vmul.f32 %v799, %v701
  %v839 = vmul.f32 %v801, %v702
  %v840 = vadd.f32 %v836, %v838
  %v841 = vadd.f32 %v837, %v839
  %844 = vrot.lane.b32.xlu0 %v840, 96
  %v845 = vpop.permute.xlu0 %844
  %846 = vrot.lane.b32.xlu0 %v841, 96
  %v847 = vpop.permute.xlu0 %846
  %v848 = vsel %vm288, %v845, 0
  %v850 = vsel %vm288, %v847, 0
  %852 = vmatprep.subr.mxu0 0.0
  %853 = vmatpush1.msra.mxu0 %v15
  %854 = vmatprep.subr.mxu0 0.0
  %855 = vmatpush1.msra.mxu0 %v16
  %856 = vmatprep.subr.mxu0 0.0
  %857 = vmatpush1.msra.mxu0 %v17
  %858 = vmatprep.subr.mxu0 0.0
  %859 = vmatpush1.msra.mxu0 %v18
  %860 = vmatprep.subr.mxu0 0.0
  %861 = vmatpush1.msra.mxu0 0.0
  %862 = vmatprep.subr.mxu0 0.0
  %863 = vmatpush1.msra.mxu0 0.0
  %864 = vmatprep.subr.mxu0 0.0
  %865 = vmatpush1.msra.mxu0 0.0
  %866 = vmatprep.subr.mxu0 0.0
  %867 = vmatpush1.msra.mxu0 0.0
  %868 = vmatprep.subr.mxu0 0.0
  %869 = vmatpush1.msra.mxu0 0.0
  %870 = vmatprep.subr.mxu0 0.0
  %871 = vmatpush1.msra.mxu0 0.0
  %872 = vmatprep.subr.mxu0 0.0
  %873 = vmatpush1.msra.mxu0 0.0
  %874 = vmatprep.subr.mxu0 0.0
  %875 = vmatpush1.msra.mxu0 0.0
  %876 = vmatprep.subr.mxu0 0.0
  %877 = vmatpush1.msra.mxu0 0.0
  %878 = vmatprep.subr.mxu0 0.0
  %879 = vmatpush1.msra.mxu0 0.0
  %880 = vmatprep.subr.mxu0 0.0
  %881 = vmatpush1.msra.mxu0 0.0
  %882 = vmatprep.subr.mxu0 0.0
  %883 = vmatpush1.msra.mxu0 0.0
  %884 = vmatprep.subr.mxu0 0.0
  %885 = vmatpush1.msra.mxu0 0.0
  %886 = vmatprep.subr.mxu0 0.0
  %887 = vmatpush1.msra.mxu0 0.0
  %888 = vmatprep.subr.mxu0 0.0
  %889 = vmatpush1.msra.mxu0 0.0
  %890 = vmatprep.subr.mxu0 0.0
  %891 = vmatpush1.msra.mxu0 0.0
  %892 = vmatprep.subr.mxu0 0.0
  %893 = vmatpush1.msra.mxu0 0.0
  %894 = vmatprep.subr.mxu0 0.0
  %895 = vmatpush1.msra.mxu0 0.0
  %896 = vmatprep.subr.mxu0 0.0
  %897 = vmatpush1.msra.mxu0 0.0
  %898 = vmatprep.subr.mxu0 0.0
  %899 = vmatpush1.msra.mxu0 0.0
  %900 = vmatprep.subr.mxu0 0.0
  %901 = vmatpush1.msra.mxu0 0.0
  %902 = vmatprep.subr.mxu0 0.0
  %903 = vmatpush1.msra.mxu0 0.0
  %904 = vmatprep.subr.mxu0 0.0
  %905 = vmatpush1.msra.mxu0 0.0
  %906 = vmatprep.subr.mxu0 0.0
  %907 = vmatpush1.msra.mxu0 0.0
  %908 = vmatprep.subr.mxu0 0.0
  %909 = vmatpush1.msra.mxu0 0.0
  %910 = vmatprep.subr.mxu0 0.0
  %911 = vmatpush1.msra.mxu0 0.0
  %912 = vmatprep.subr.mxu0 0.0
  %913 = vmatpush1.msra.mxu0 0.0
  %914 = vmatprep.subr.mxu0 0.0
  %915 = vmatpush1.msra.mxu0 0.0
  %916 = vmatprep.mubr.f32.mxu0 0.0
  %917 = vmatmul.mubr.f32.gmra.mrb[0].mxu0 %v848
  %v918 = vpop.f32.mrb[0].mxu0
  %v919 = vadd.f32 0.0, %v918
  %v920 = vpop.f32.mrb[0].mxu0
  %921 = vmatprep.mubr.f32.mxu0 0.0
  %922 = vmatmul.mubr.f32.gmra.mrb[0].mxu0 %v850
  %v923 = vpop.f32.mrb[0].mxu0
  %v924 = vadd.f32 0.0, %v923
  %v925 = vpop.f32.mrb[0].mxu0
  %926 = vdwg.mxu0
  %v927 = vadd.f32 %v246, %v919
  %v928 = vadd.f32 %v251, %v924
  %v929 = vxor.u32 %v927, 2147483648
  %v930 = vxor.u32 %v928, 2147483648
  %v931 = vmul.f32 %v929, 1.442695
  %v932 = vpow.pop %v931
  %v933 = vmul.f32 %v930, 1.442695
  %v934 = vpow.pop %v933
  %v935 = vadd.f32 %v932, 1.0
  %v936 = vadd.f32 %v934, 1.0
  %v937 = vrcp.pop %v935
  %v938 = vmul.f32 1.0, %v937
  %v939 = vrcp.pop %v936
  %v940 = vmul.f32 1.0, %v939
  %v941 = vadd.f32 %v919, %v383
  %v942 = vadd.f32 %v924, %v383
  %945 = vrot.lane.b32.xlu0 %v941, 64
  %v946 = vpop.permute.xlu0 %945
  %947 = vrot.lane.b32.xlu0 %v942, 64
  %v948 = vpop.permute.xlu0 %947
  %v951 = vmul.f32 %v938, %v946
  %v952 = vmul.f32 %v940, %v948
  %955 = vrot.lane.b32.xlu0 %v951, 64
  %v956 = vpop.permute.xlu0 %955
  %957 = vrot.lane.b32.xlu0 %v952, 64
  %v958 = vpop.permute.xlu0 %957
  %v961 = vadd.f32 %v246, %v956
  %v962 = vadd.f32 %v251, %v958
  %v963 = vtanh.pop %v961
  %v964 = vtanh.pop %v962
  %v965 = vsub.f32 1.0, %v938
  %v966 = vsub.f32 1.0, %v940
  %969 = vrot.lane.b32.xlu0 %v963, 96
  %v970 = vpop.permute.xlu0 %969
  %971 = vrot.lane.b32.xlu0 %v964, 96
  %v972 = vpop.permute.xlu0 %971
  %v975 = vmul.f32 %v965, %v970
  %v976 = vmul.f32 %v966, %v972
  %v977 = vmul.f32 %v938, %v840
  %v978 = vmul.f32 %v940, %v841
  %v979 = vadd.f32 %v975, %v977
  %v980 = vadd.f32 %v976, %v978
  %983 = vrot.lane.b32.xlu0 %v979, 96
  %v984 = vpop.permute.xlu0 %983
  %985 = vrot.lane.b32.xlu0 %v980, 96
  %v986 = vpop.permute.xlu0 %985
  %v987 = vsel %vm288, %v984, 0
  %v989 = vsel %vm288, %v986, 0
  %991 = vmatprep.subr.mxu0 0.0
  %992 = vmatpush1.msra.mxu0 %v15
  %993 = vmatprep.subr.mxu0 0.0
  %994 = vmatpush1.msra.mxu0 %v16
  %995 = vmatprep.subr.mxu0 0.0
  %996 = vmatpush1.msra.mxu0 %v17
  %997 = vmatprep.subr.mxu0 0.0
  %998 = vmatpush1.msra.mxu0 %v18
  %999 = vmatprep.subr.mxu0 0.0
  %1000 = vmatpush1.msra.mxu0 0.0
  %1001 = vmatprep.subr.mxu0 0.0
  %1002 = vmatpush1.msra.mxu0 0.0
  %1003 = vmatprep.subr.mxu0 0.0
  %1004 = vmatpush1.msra.mxu0 0.0
  %1005 = vmatprep.subr.mxu0 0.0
  %1006 = vmatpush1.msra.mxu0 0.0
  %1007 = vmatprep.subr.mxu0 0.0
  %1008 = vmatpush1.msra.mxu0 0.0
  %1009 = vmatprep.subr.mxu0 0.0
  %1010 = vmatpush1.msra.mxu0 0.0
  %1011 = vmatprep.subr.mxu0 0.0
  %1012 = vmatpush1.msra.mxu0 0.0
  %1013 = vmatprep.subr.mxu0 0.0
  %1014 = vmatpush1.msra.mxu0 0.0
  %1015 = vmatprep.subr.mxu0 0.0
  %1016 = vmatpush1.msra.mxu0 0.0
  %1017 = vmatprep.subr.mxu0 0.0
  %1018 = vmatpush1.msra.mxu0 0.0
  %1019 = vmatprep.subr.mxu0 0.0
  %1020 = vmatpush1.msra.mxu0 0.0
  %1021 = vmatprep.subr.mxu0 0.0
  %1022 = vmatpush1.msra.mxu0 0.0
  %1023 = vmatprep.subr.mxu0 0.0
  %1024 = vmatpush1.msra.mxu0 0.0
  %1025 = vmatprep.subr.mxu0 0.0
  %1026 = vmatpush1.msra.mxu0 0.0
  %1027 = vmatprep.subr.mxu0 0.0
  %1028 = vmatpush1.msra.mxu0 0.0
  %1029 = vmatprep.subr.mxu0 0.0
  %1030 = vmatpush1.msra.mxu0 0.0
  %1031 = vmatprep.subr.mxu0 0.0
  %1032 = vmatpush1.msra.mxu0 0.0
  %1033 = vmatprep.subr.mxu0 0.0
  %1034 = vmatpush1.msra.mxu0 0.0
  %1035 = vmatprep.subr.mxu0 0.0
  %1036 = vmatpush1.msra.mxu0 0.0
  %1037 = vmatprep.subr.mxu0 0.0
  %1038 = vmatpush1.msra.mxu0 0.0
  %1039 = vmatprep.subr.mxu0 0.0
  %1040 = vmatpush1.msra.mxu0 0.0
  %1041 = vmatprep.subr.mxu0 0.0
  %1042 = vmatpush1.msra.mxu0 0.0
  %1043 = vmatprep.subr.mxu0 0.0
  %1044 = vmatpush1.msra.mxu0 0.0
  %1045 = vmatprep.subr.mxu0 0.0
  %1046 = vmatpush1.msra.mxu0 0.0
  %1047 = vmatprep.subr.mxu0 0.0
  %1048 = vmatpush1.msra.mxu0 0.0
  %1049 = vmatprep.subr.mxu0 0.0
  %1050 = vmatpush1.msra.mxu0 0.0
  %1051 = vmatprep.subr.mxu0 0.0
  %1052 = vmatpush1.msra.mxu0 0.0
  %1053 = vmatprep.subr.mxu0 0.0
  %1054 = vmatpush1.msra.mxu0 0.0
  %1055 = vmatprep.mubr.f32.mxu0 0.0
  %1056 = vmatmul.mubr.f32.gmra.mrb[0].mxu0 %v987
  %v1057 = vpop.f32.mrb[0].mxu0
  %v1058 = vadd.f32 0.0, %v1057
  %v1059 = vpop.f32.mrb[0].mxu0
  %1060 = vmatprep.mubr.f32.mxu0 0.0
  %1061 = vmatmul.mubr.f32.gmra.mrb[0].mxu0 %v989
  %v1062 = vpop.f32.mrb[0].mxu0
  %v1063 = vadd.f32 0.0, %v1062
  %v1064 = vpop.f32.mrb[0].mxu0
  %1065 = vdwg.mxu0
  %v1066 = vadd.f32 %v256, %v1058
  %v1067 = vadd.f32 %v261, %v1063
  %v1068 = vxor.u32 %v1066, 2147483648
  %v1069 = vxor.u32 %v1067, 2147483648
  %v1070 = vmul.f32 %v1068, 1.442695
  %v1071 = vpow.pop %v1070
  %v1072 = vmul.f32 %v1069, 1.442695
  %v1073 = vpow.pop %v1072
  %v1074 = vadd.f32 %v1071, 1.0
  %v1075 = vadd.f32 %v1073, 1.0
  %v1076 = vrcp.pop %v1074
  %v1077 = vmul.f32 1.0, %v1076
  %v1078 = vrcp.pop %v1075
  %v1079 = vmul.f32 1.0, %v1078
  %v1080 = vadd.f32 %v1058, %v383
  %v1081 = vadd.f32 %v1063, %v383
  %1084 = vrot.lane.b32.xlu0 %v1080, 64
  %v1085 = vpop.permute.xlu0 %1084
  %1086 = vrot.lane.b32.xlu0 %v1081, 64
  %v1087 = vpop.permute.xlu0 %1086
  %v1090 = vmul.f32 %v1077, %v1085
  %v1091 = vmul.f32 %v1079, %v1087
  %1094 = vrot.lane.b32.xlu0 %v1090, 64
  %v1095 = vpop.permute.xlu0 %1094
  %1096 = vrot.lane.b32.xlu0 %v1091, 64
  %v1097 = vpop.permute.xlu0 %1096
  %v1100 = vadd.f32 %v256, %v1095
  %v1101 = vadd.f32 %v261, %v1097
  %v1102 = vtanh.pop %v1100
  %v1103 = vtanh.pop %v1101
  %v1104 = vsub.f32 1.0, %v1077
  %v1105 = vsub.f32 1.0, %v1079
  %1108 = vrot.lane.b32.xlu0 %v1102, 96
  %v1109 = vpop.permute.xlu0 %1108
  %1110 = vrot.lane.b32.xlu0 %v1103, 96
  %v1111 = vpop.permute.xlu0 %1110
  %v1114 = vmul.f32 %v1104, %v1109
  %v1115 = vmul.f32 %v1105, %v1111
  %v1116 = vmul.f32 %v1077, %v979
  %v1117 = vmul.f32 %v1079, %v980
  %v1118 = vadd.f32 %v1114, %v1116
  %v1119 = vadd.f32 %v1115, %v1117
  %1122 = vrot.lane.b32.xlu0 %v1118, 96
  %v1123 = vpop.permute.xlu0 %1122
  %1124 = vrot.lane.b32.xlu0 %v1119, 96
  %v1125 = vpop.permute.xlu0 %1124
  %v1126 = vsel %vm288, %v1123, 0
  %v1128 = vsel %vm288, %v1125, 0
  %1130 = vmatprep.subr.mxu0 0.0
  %1131 = vmatpush1.msra.mxu0 %v15
  %1132 = vmatprep.subr.mxu0 0.0
  %1133 = vmatpush1.msra.mxu0 %v16
  %1134 = vmatprep.subr.mxu0 0.0
  %1135 = vmatpush1.msra.mxu0 %v17
  %1136 = vmatprep.subr.mxu0 0.0
  %1137 = vmatpush1.msra.mxu0 %v18
  %1138 = vmatprep.subr.mxu0 0.0
  %1139 = vmatpush1.msra.mxu0 0.0
  %1140 = vmatprep.subr.mxu0 0.0
  %1141 = vmatpush1.msra.mxu0 0.0
  %1142 = vmatprep.subr.mxu0 0.0
  %1143 = vmatpush1.msra.mxu0 0.0
  %1144 = vmatprep.subr.mxu0 0.0
  %1145 = vmatpush1.msra.mxu0 0.0
  %1146 = vmatprep.subr.mxu0 0.0
  %1147 = vmatpush1.msra.mxu0 0.0
  %1148 = vmatprep.subr.mxu0 0.0
  %1149 = vmatpush1.msra.mxu0 0.0
  %1150 = vmatprep.subr.mxu0 0.0
  %1151 = vmatpush1.msra.mxu0 0.0
  %1152 = vmatprep.subr.mxu0 0.0
  %1153 = vmatpush1.msra.mxu0 0.0
  %1154 = vmatprep.subr.mxu0 0.0
  %1155 = vmatpush1.msra.mxu0 0.0
  %1156 = vmatprep.subr.mxu0 0.0
  %1157 = vmatpush1.msra.mxu0 0.0
  %1158 = vmatprep.subr.mxu0 0.0
  %1159 = vmatpush1.msra.mxu0 0.0
  %1160 = vmatprep.subr.mxu0 0.0
  %1161 = vmatpush1.msra.mxu0 0.0
  %1162 = vmatprep.subr.mxu0 0.0
  %1163 = vmatpush1.msra.mxu0 0.0
  %1164 = vmatprep.subr.mxu0 0.0
  %1165 = vmatpush1.msra.mxu0 0.0
  %1166 = vmatprep.subr.mxu0 0.0
  %1167 = vmatpush1.msra.mxu0 0.0
  %1168 = vmatprep.subr.mxu0 0.0
  %1169 = vmatpush1.msra.mxu0 0.0
  %1170 = vmatprep.subr.mxu0 0.0
  %1171 = vmatpush1.msra.mxu0 0.0
  %1172 = vmatprep.subr.mxu0 0.0
  %1173 = vmatpush1.msra.mxu0 0.0
  %1174 = vmatprep.subr.mxu0 0.0
  %1175 = vmatpush1.msra.mxu0 0.0
  %1176 = vmatprep.subr.mxu0 0.0
  %1177 = vmatpush1.msra.mxu0 0.0
  %1178 = vmatprep.subr.mxu0 0.0
  %1179 = vmatpush1.msra.mxu0 0.0
  %1180 = vmatprep.subr.mxu0 0.0
  %1181 = vmatpush1.msra.mxu0 0.0
  %1182 = vmatprep.subr.mxu0 0.0
  %1183 = vmatpush1.msra.mxu0 0.0
  %1184 = vmatprep.subr.mxu0 0.0
  %1185 = vmatpush1.msra.mxu0 0.0
  %1186 = vmatprep.subr.mxu0 0.0
  %1187 = vmatpush1.msra.mxu0 0.0
  %1188 = vmatprep.subr.mxu0 0.0
  %1189 = vmatpush1.msra.mxu0 0.0
  %1190 = vmatprep.subr.mxu0 0.0
  %1191 = vmatpush1.msra.mxu0 0.0
  %1192 = vmatprep.subr.mxu0 0.0
  %1193 = vmatpush1.msra.mxu0 0.0
  %1194 = vmatprep.mubr.f32.mxu0 0.0
  %1195 = vmatmul.mubr.f32.gmra.mrb[0].mxu0 %v1126
  %v1196 = vpop.f32.mrb[0].mxu0
  %v1197 = vadd.f32 0.0, %v1196
  %v1198 = vpop.f32.mrb[0].mxu0
  %1199 = vmatprep.mubr.f32.mxu0 0.0
  %1200 = vmatmul.mubr.f32.gmra.mrb[0].mxu0 %v1128
  %v1201 = vpop.f32.mrb[0].mxu0
  %v1202 = vadd.f32 0.0, %v1201
  %v1203 = vpop.f32.mrb[0].mxu0
  %1204 = vdwg.mxu0
  %v1205 = vadd.f32 %v266, %v1197
  %v1206 = vadd.f32 %v271, %v1202
  %v1207 = vxor.u32 %v1205, 2147483648
  %v1208 = vxor.u32 %v1206, 2147483648
  %v1209 = vmul.f32 %v1207, 1.442695
  %v1210 = vpow.pop %v1209
  %v1211 = vmul.f32 %v1208, 1.442695
  %v1212 = vpow.pop %v1211
  %v1213 = vadd.f32 %v1210, 1.0
  %v1214 = vadd.f32 %v1212, 1.0
  %v1215 = vrcp.pop %v1213
  %v1216 = vmul.f32 1.0, %v1215
  %v1217 = vrcp.pop %v1214
  %v1218 = vmul.f32 1.0, %v1217
  %v1219 = vadd.f32 %v1197, %v383
  %v1220 = vadd.f32 %v1202, %v383
  %1223 = vrot.lane.b32.xlu0 %v1219, 64
  %v1224 = vpop.permute.xlu0 %1223
  %1225 = vrot.lane.b32.xlu0 %v1220, 64
  %v1226 = vpop.permute.xlu0 %1225
  %v1229 = vmul.f32 %v1216, %v1224
  %v1230 = vmul.f32 %v1218, %v1226
  %1233 = vrot.lane.b32.xlu0 %v1229, 64
  %v1234 = vpop.permute.xlu0 %1233
  %1235 = vrot.lane.b32.xlu0 %v1230, 64
  %v1236 = vpop.permute.xlu0 %1235
  %v1239 = vadd.f32 %v266, %v1234
  %v1240 = vadd.f32 %v271, %v1236
  %v1241 = vtanh.pop %v1239
  %v1242 = vtanh.pop %v1240
  %v1243 = vsub.f32 1.0, %v1216
  %v1244 = vsub.f32 1.0, %v1218
  %1247 = vrot.lane.b32.xlu0 %v1241, 96
  %v1248 = vpop.permute.xlu0 %1247
  %1249 = vrot.lane.b32.xlu0 %v1242, 96
  %v1250 = vpop.permute.xlu0 %1249
  %v1253 = vmul.f32 %v1243, %v1248
  %v1254 = vmul.f32 %v1244, %v1250
  %v1255 = vmul.f32 %v1216, %v1118
  %v1256 = vmul.f32 %v1218, %v1119
  %v1257 = vadd.f32 %v1253, %v1255
  %v1258 = vadd.f32 %v1254, %v1256
  %1261 = vrot.lane.b32.xlu0 %v1257, 96
  %v1262 = vpop.permute.xlu0 %1261
  %1263 = vrot.lane.b32.xlu0 %v1258, 96
  %v1264 = vpop.permute.xlu0 %1263
  %v1265 = vsel %vm288, %v1262, 0
  %v1267 = vsel %vm288, %v1264, 0
  %1269 = vmatprep.subr.mxu0 0.0
  %1270 = vmatpush1.msra.mxu0 %v15
  %1271 = vmatprep.subr.mxu0 0.0
  %1272 = vmatpush1.msra.mxu0 %v16
  %1273 = vmatprep.subr.mxu0 0.0
  %1274 = vmatpush1.msra.mxu0 %v17
  %1275 = vmatprep.subr.mxu0 0.0
  %1276 = vmatpush1.msra.mxu0 %v18
  %1277 = vmatprep.subr.mxu0 0.0
  %1278 = vmatpush1.msra.mxu0 0.0
  %1279 = vmatprep.subr.mxu0 0.0
  %1280 = vmatpush1.msra.mxu0 0.0
  %1281 = vmatprep.subr.mxu0 0.0
  %1282 = vmatpush1.msra.mxu0 0.0
  %1283 = vmatprep.subr.mxu0 0.0
  %1284 = vmatpush1.msra.mxu0 0.0
  %1285 = vmatprep.subr.mxu0 0.0
  %1286 = vmatpush1.msra.mxu0 0.0
  %1287 = vmatprep.subr.mxu0 0.0
  %1288 = vmatpush1.msra.mxu0 0.0
  %1289 = vmatprep.subr.mxu0 0.0
  %1290 = vmatpush1.msra.mxu0 0.0
  %1291 = vmatprep.subr.mxu0 0.0
  %1292 = vmatpush1.msra.mxu0 0.0
  %1293 = vmatprep.subr.mxu0 0.0
  %1294 = vmatpush1.msra.mxu0 0.0
  %1295 = vmatprep.subr.mxu0 0.0
  %1296 = vmatpush1.msra.mxu0 0.0
  %1297 = vmatprep.subr.mxu0 0.0
  %1298 = vmatpush1.msra.mxu0 0.0
  %1299 = vmatprep.subr.mxu0 0.0
  %1300 = vmatpush1.msra.mxu0 0.0
  %1301 = vmatprep.subr.mxu0 0.0
  %1302 = vmatpush1.msra.mxu0 0.0
  %1303 = vmatprep.subr.mxu0 0.0
  %1304 = vmatpush1.msra.mxu0 0.0
  %1305 = vmatprep.subr.mxu0 0.0
  %1306 = vmatpush1.msra.mxu0 0.0
  %1307 = vmatprep.subr.mxu0 0.0
  %1308 = vmatpush1.msra.mxu0 0.0
  %1309 = vmatprep.subr.mxu0 0.0
  %1310 = vmatpush1.msra.mxu0 0.0
  %1311 = vmatprep.subr.mxu0 0.0
  %1312 = vmatpush1.msra.mxu0 0.0
  %1313 = vmatprep.subr.mxu0 0.0
  %1314 = vmatpush1.msra.mxu0 0.0
  %1315 = vmatprep.subr.mxu0 0.0
  %1316 = vmatpush1.msra.mxu0 0.0
  %1317 = vmatprep.subr.mxu0 0.0
  %1318 = vmatpush1.msra.mxu0 0.0
  %1319 = vmatprep.subr.mxu0 0.0
  %1320 = vmatpush1.msra.mxu0 0.0
  %1321 = vmatprep.subr.mxu0 0.0
  %1322 = vmatpush1.msra.mxu0 0.0
  %1323 = vmatprep.subr.mxu0 0.0
  %1324 = vmatpush1.msra.mxu0 0.0
  %1325 = vmatprep.subr.mxu0 0.0
  %1326 = vmatpush1.msra.mxu0 0.0
  %1327 = vmatprep.subr.mxu0 0.0
  %1328 = vmatpush1.msra.mxu0 0.0
  %1329 = vmatprep.subr.mxu0 0.0
  %1330 = vmatpush1.msra.mxu0 0.0
  %1331 = vmatprep.subr.mxu0 0.0
  %1332 = vmatpush1.msra.mxu0 0.0
  %1333 = vmatprep.mubr.f32.mxu0 0.0
  %1334 = vmatmul.mubr.f32.gmra.mrb[0].mxu0 %v1265
  %v1335 = vpop.f32.mrb[0].mxu0
  %v1336 = vadd.f32 0.0, %v1335
  %v1337 = vpop.f32.mrb[0].mxu0
  %1338 = vmatprep.mubr.f32.mxu0 0.0
  %1339 = vmatmul.mubr.f32.gmra.mrb[0].mxu0 %v1267
  %v1340 = vpop.f32.mrb[0].mxu0
  %v1341 = vadd.f32 0.0, %v1340
  %v1342 = vpop.f32.mrb[0].mxu0
  %1343 = vdwg.mxu0
  %v1344 = vadd.f32 %v276, %v1336
  %v1345 = vadd.f32 %v281, %v1341
  %v1346 = vxor.u32 %v1344, 2147483648
  %v1347 = vxor.u32 %v1345, 2147483648
  %v1348 = vmul.f32 %v1346, 1.442695
  %v1349 = vpow.pop %v1348
  %v1350 = vmul.f32 %v1347, 1.442695
  %v1351 = vpow.pop %v1350
  %v1352 = vadd.f32 %v1349, 1.0
  %v1353 = vadd.f32 %v1351, 1.0
  %v1354 = vrcp.pop %v1352
  %v1355 = vmul.f32 1.0, %v1354
  %v1356 = vrcp.pop %v1353
  %v1357 = vmul.f32 1.0, %v1356
  %v1358 = vadd.f32 %v1336, %v383
  %v1359 = vadd.f32 %v1341, %v383
  %1362 = vrot.lane.b32.xlu0 %v1358, 64
  %v1363 = vpop.permute.xlu0 %1362
  %1364 = vrot.lane.b32.xlu0 %v1359, 64
  %v1365 = vpop.permute.xlu0 %1364
  %v1368 = vmul.f32 %v1355, %v1363
  %v1369 = vmul.f32 %v1357, %v1365
  %1372 = vrot.lane.b32.xlu0 %v1368, 64
  %v1373 = vpop.permute.xlu0 %1372
  %1374 = vrot.lane.b32.xlu0 %v1369, 64
  %v1375 = vpop.permute.xlu0 %1374
  %v1378 = vadd.f32 %v276, %v1373
  %v1379 = vadd.f32 %v281, %v1375
  %v1380 = vtanh.pop %v1378
  %v1381 = vtanh.pop %v1379
  %v1382 = vsub.f32 1.0, %v1355
  %v1383 = vsub.f32 1.0, %v1357
  %1386 = vrot.lane.b32.xlu0 %v1380, 96
  %v1387 = vpop.permute.xlu0 %1386
  %1388 = vrot.lane.b32.xlu0 %v1381, 96
  %v1389 = vpop.permute.xlu0 %1388
  %v1392 = vmul.f32 %v1382, %v1387
  %v1393 = vmul.f32 %v1383, %v1389
  %v1394 = vmul.f32 %v1355, %v1257
  %v1395 = vmul.f32 %v1357, %v1258
  %v1396 = vadd.f32 %v1392, %v1394
  %v1397 = vadd.f32 %v1393, %v1395
  %1400 = vrot.lane.b32.xlu0 %v1396, 96
  %v1401 = vpop.permute.xlu0 %1400
  %1402 = vrot.lane.b32.xlu0 %v1397, 96
  %v1403 = vpop.permute.xlu0 %1402
  %v1404 = vsel %vm288, %v1401, 0
  %v1406 = vsel %vm288, %v1403, 0
  %1408 = vmatprep.subr.mxu0 0.0
  %1409 = vmatpush1.msra.mxu0 %v21
  %1410 = vmatprep.subr.mxu0 0.0
  %1411 = vmatpush1.msra.mxu0 %v22
  %1412 = vmatprep.subr.mxu0 0.0
  %1413 = vmatpush1.msra.mxu0 %v23
  %1414 = vmatprep.subr.mxu0 0.0
  %1415 = vmatpush1.msra.mxu0 %v24
  %1416 = vmatprep.subr.mxu0 0.0
  %1417 = vmatpush1.msra.mxu0 0.0
  %1418 = vmatprep.subr.mxu0 0.0
  %1419 = vmatpush1.msra.mxu0 0.0
  %1420 = vmatprep.subr.mxu0 0.0
  %1421 = vmatpush1.msra.mxu0 0.0
  %1422 = vmatprep.subr.mxu0 0.0
  %1423 = vmatpush1.msra.mxu0 0.0
  %1424 = vmatprep.subr.mxu0 0.0
  %1425 = vmatpush1.msra.mxu0 0.0
  %1426 = vmatprep.subr.mxu0 0.0
  %1427 = vmatpush1.msra.mxu0 0.0
  %1428 = vmatprep.subr.mxu0 0.0
  %1429 = vmatpush1.msra.mxu0 0.0
  %1430 = vmatprep.subr.mxu0 0.0
  %1431 = vmatpush1.msra.mxu0 0.0
  %1432 = vmatprep.subr.mxu0 0.0
  %1433 = vmatpush1.msra.mxu0 0.0
  %1434 = vmatprep.subr.mxu0 0.0
  %1435 = vmatpush1.msra.mxu0 0.0
  %1436 = vmatprep.subr.mxu0 0.0
  %1437 = vmatpush1.msra.mxu0 0.0
  %1438 = vmatprep.subr.mxu0 0.0
  %1439 = vmatpush1.msra.mxu0 0.0
  %1440 = vmatprep.subr.mxu0 0.0
  %1441 = vmatpush1.msra.mxu0 0.0
  %1442 = vmatprep.subr.mxu0 0.0
  %1443 = vmatpush1.msra.mxu0 0.0
  %1444 = vmatprep.subr.mxu0 0.0
  %1445 = vmatpush1.msra.mxu0 0.0
  %1446 = vmatprep.subr.mxu0 0.0
  %1447 = vmatpush1.msra.mxu0 0.0
  %1448 = vmatprep.subr.mxu0 0.0
  %1449 = vmatpush1.msra.mxu0 0.0
  %1450 = vmatprep.subr.mxu0 0.0
  %1451 = vmatpush1.msra.mxu0 0.0
  %1452 = vmatprep.subr.mxu0 0.0
  %1453 = vmatpush1.msra.mxu0 0.0
  %1454 = vmatprep.subr.mxu0 0.0
  %1455 = vmatpush1.msra.mxu0 0.0
  %1456 = vmatprep.subr.mxu0 0.0
  %1457 = vmatpush1.msra.mxu0 0.0
  %1458 = vmatprep.subr.mxu0 0.0
  %1459 = vmatpush1.msra.mxu0 0.0
  %1460 = vmatprep.subr.mxu0 0.0
  %1461 = vmatpush1.msra.mxu0 0.0
  %1462 = vmatprep.subr.mxu0 0.0
  %1463 = vmatpush1.msra.mxu0 0.0
  %1464 = vmatprep.subr.mxu0 0.0
  %1465 = vmatpush1.msra.mxu0 0.0
  %1466 = vmatprep.subr.mxu0 0.0
  %1467 = vmatpush1.msra.mxu0 0.0
  %1468 = vmatprep.subr.mxu0 0.0
  %1469 = vmatpush1.msra.mxu0 0.0
  %1470 = vmatprep.subr.mxu0 0.0
  %1471 = vmatpush1.msra.mxu0 0.0
  %1472 = vmatprep.mubr.f32.mxu0 0.0
  %1473 = vmatmul.mubr.f32.gmra.mrb[0].mxu0 %v1404
  %v1474 = vpop.f32.mrb[0].mxu0
  %v1475 = vadd.f32 0.0, %v1474
  %v1476 = vpop.f32.mrb[0].mxu0
  %1477 = vmatprep.mubr.f32.mxu0 0.0
  %1478 = vmatmul.mubr.f32.gmra.mrb[0].mxu0 %v1406
  %v1479 = vpop.f32.mrb[0].mxu0
  %v1480 = vadd.f32 0.0, %v1479
  %v1481 = vpop.f32.mrb[0].mxu0
  %1482 = vdwg.mxu0
  %v1485 = vmul.f32 %v1475, %v428
  %v1486 = vmul.f32 %v1480, %v430
  %v1487 = vsel %vm288, %v1485, 0.0
  %1488 = vadd.xlane.f32.xlu0 %v1487
  %v1489 = vpop.xlane.xlu0 %1488
  %v1490 = vsel %vm288, %v1486, 0.0
  %1491 = vadd.xlane.f32.xlu0 %v1490
  %v1492 = vpop.xlane.xlu0 %1491
  %v1495 = vmul.f32 %v1475, %v567
  %v1496 = vmul.f32 %v1480, %v569
  %v1497 = vsel %vm288, %v1495, 0.0
  %1498 = vadd.xlane.f32.xlu0 %v1497
  %v1499 = vpop.xlane.xlu0 %1498
  %v1500 = vsel %vm288, %v1496, 0.0
  %1501 = vadd.xlane.f32.xlu0 %v1500
  %v1502 = vpop.xlane.xlu0 %1501
  %v1505 = vmul.f32 %v1475, %v706
  %v1506 = vmul.f32 %v1480, %v708
  %v1507 = vsel %vm288, %v1505, 0.0
  %1508 = vadd.xlane.f32.xlu0 %v1507
  %v1509 = vpop.xlane.xlu0 %1508
  %v1510 = vsel %vm288, %v1506, 0.0
  %1511 = vadd.xlane.f32.xlu0 %v1510
  %v1512 = vpop.xlane.xlu0 %1511
  %v1515 = vmul.f32 %v1475, %v845
  %v1516 = vmul.f32 %v1480, %v847
  %v1517 = vsel %vm288, %v1515, 0.0
  %1518 = vadd.xlane.f32.xlu0 %v1517
  %v1519 = vpop.xlane.xlu0 %1518
  %v1520 = vsel %vm288, %v1516, 0.0
  %1521 = vadd.xlane.f32.xlu0 %v1520
  %v1522 = vpop.xlane.xlu0 %1521
  %v1525 = vmul.f32 %v1475, %v984
  %v1526 = vmul.f32 %v1480, %v986
  %v1527 = vsel %vm288, %v1525, 0.0
  %1528 = vadd.xlane.f32.xlu0 %v1527
  %v1529 = vpop.xlane.xlu0 %1528
  %v1530 = vsel %vm288, %v1526, 0.0
  %1531 = vadd.xlane.f32.xlu0 %v1530
  %v1532 = vpop.xlane.xlu0 %1531
  %v1535 = vmul.f32 %v1475, %v1123
  %v1536 = vmul.f32 %v1480, %v1125
  %v1537 = vsel %vm288, %v1535, 0.0
  %1538 = vadd.xlane.f32.xlu0 %v1537
  %v1539 = vpop.xlane.xlu0 %1538
  %v1540 = vsel %vm288, %v1536, 0.0
  %1541 = vadd.xlane.f32.xlu0 %v1540
  %v1542 = vpop.xlane.xlu0 %1541
  %v1545 = vmul.f32 %v1475, %v1262
  %v1546 = vmul.f32 %v1480, %v1264
  %v1547 = vsel %vm288, %v1545, 0.0
  %1548 = vadd.xlane.f32.xlu0 %v1547
  %v1549 = vpop.xlane.xlu0 %1548
  %v1550 = vsel %vm288, %v1546, 0.0
  %1551 = vadd.xlane.f32.xlu0 %v1550
  %v1552 = vpop.xlane.xlu0 %1551
  %v1555 = vmul.f32 %v1475, %v1401
  %v1556 = vmul.f32 %v1480, %v1403
  %v1557 = vsel %vm288, %v1555, 0.0
  %1558 = vadd.xlane.f32.xlu0 %v1557
  %v1559 = vpop.xlane.xlu0 %1558
  %v1560 = vsel %vm288, %v1556, 0.0
  %1561 = vadd.xlane.f32.xlu0 %v1560
  %v1562 = vpop.xlane.xlu0 %1561
  %v1563 = vmax.f32 %v1489, %v1499
  %v1564 = vmax.f32 %v1492, %v1502
  %v1565 = vmax.f32 %v1563, %v1509
  %v1566 = vmax.f32 %v1564, %v1512
  %v1567 = vmax.f32 %v1565, %v1519
  %v1568 = vmax.f32 %v1566, %v1522
  %v1569 = vmax.f32 %v1567, %v1529
  %v1570 = vmax.f32 %v1568, %v1532
  %v1571 = vmax.f32 %v1569, %v1539
  %v1572 = vmax.f32 %v1570, %v1542
  %v1573 = vmax.f32 %v1571, %v1549
  %v1574 = vmax.f32 %v1572, %v1552
  %v1575 = vmax.f32 %v1573, %v1559
  %v1576 = vmax.f32 %v1574, %v1562
  %v1577 = vsub.f32 %v1489, %v1575
  %v1578 = vsub.f32 %v1492, %v1576
  %v1579 = vmul.f32 %v1577, 1.442695
  %v1580 = vpow.pop %v1579
  %v1581 = vmul.f32 %v1578, 1.442695
  %v1582 = vpow.pop %v1581
  %v1583 = vsub.f32 %v1499, %v1575
  %v1584 = vsub.f32 %v1502, %v1576
  %v1585 = vmul.f32 %v1583, 1.442695
  %v1586 = vpow.pop %v1585
  %v1587 = vmul.f32 %v1584, 1.442695
  %v1588 = vpow.pop %v1587
  %v1589 = vsub.f32 %v1509, %v1575
  %v1590 = vsub.f32 %v1512, %v1576
  %v1591 = vmul.f32 %v1589, 1.442695
  %v1592 = vpow.pop %v1591
  %v1593 = vmul.f32 %v1590, 1.442695
  %v1594 = vpow.pop %v1593
  %v1595 = vsub.f32 %v1519, %v1575
  %v1596 = vsub.f32 %v1522, %v1576
  %v1597 = vmul.f32 %v1595, 1.442695
  %v1598 = vpow.pop %v1597
  %v1599 = vmul.f32 %v1596, 1.442695
  %v1600 = vpow.pop %v1599
  %v1601 = vsub.f32 %v1529, %v1575
  %v1602 = vsub.f32 %v1532, %v1576
  %v1603 = vmul.f32 %v1601, 1.442695
  %v1604 = vpow.pop %v1603
  %v1605 = vmul.f32 %v1602, 1.442695
  %v1606 = vpow.pop %v1605
  %v1607 = vsub.f32 %v1539, %v1575
  %v1608 = vsub.f32 %v1542, %v1576
  %v1609 = vmul.f32 %v1607, 1.442695
  %v1610 = vpow.pop %v1609
  %v1611 = vmul.f32 %v1608, 1.442695
  %v1612 = vpow.pop %v1611
  %v1613 = vsub.f32 %v1549, %v1575
  %v1614 = vsub.f32 %v1552, %v1576
  %v1615 = vmul.f32 %v1613, 1.442695
  %v1616 = vpow.pop %v1615
  %v1617 = vmul.f32 %v1614, 1.442695
  %v1618 = vpow.pop %v1617
  %v1619 = vsub.f32 %v1559, %v1575
  %v1620 = vsub.f32 %v1562, %v1576
  %v1621 = vmul.f32 %v1619, 1.442695
  %v1622 = vpow.pop %v1621
  %v1623 = vmul.f32 %v1620, 1.442695
  %v1624 = vpow.pop %v1623
  %v1625 = vadd.f32 %v1580, %v1586
  %v1626 = vadd.f32 %v1582, %v1588
  %v1627 = vadd.f32 %v1625, %v1592
  %v1628 = vadd.f32 %v1626, %v1594
  %v1629 = vadd.f32 %v1627, %v1598
  %v1630 = vadd.f32 %v1628, %v1600
  %v1631 = vadd.f32 %v1629, %v1604
  %v1632 = vadd.f32 %v1630, %v1606
  %v1633 = vadd.f32 %v1631, %v1610
  %v1634 = vadd.f32 %v1632, %v1612
  %v1635 = vadd.f32 %v1633, %v1616
  %v1636 = vadd.f32 %v1634, %v1618
  %v1637 = vadd.f32 %v1635, %v1622
  %v1638 = vadd.f32 %v1636, %v1624
  %v1639 = vrcp.pop %v1637
  %v1640 = vrcp.pop %v1638
  %v1641 = vmul.f32 %v1580, %v1639
  %v1642 = vmul.f32 %v1582, %v1640
  %v1643 = vmul.f32 %v64, %v1641
  %v1644 = vmul.f32 %v65, %v1642
  %v1645 = vmul.f32 %v1641, %v423
  %v1646 = vmul.f32 %v1642, %v424
  %v1647 = vadd.f32 %v1645, 0.0
  %v1648 = vadd.f32 %v1646, 0.0
  %1650 = vset.pattern.permute.xlu0 8
  %1651 = vperm.xlu0 %1650, %v1643
  %v1652 = vpop.permute.xlu0 %1651
  %1655 = vset.pattern.permute.xlu0 8
  %1656 = vperm.xlu0 %1655, %v1644
  %v1657 = vpop.permute.xlu0 %1656
  %v1659 = vmul.f32 %v1652, %v423
  %v1660 = vmul.f32 %v1657, %v424
  %v1661 = vmax.f32 %v1659, 0.0
  %v1662 = vmax.f32 %v1660, 0.0
  %v1663 = vadd.f32 %v1647, %v1661
  %v1664 = vadd.f32 %v1648, %v1662
  %v1665 = vmul.f32 %v1586, %v1639
  %v1666 = vmul.f32 %v1588, %v1640
  %v1667 = vmul.f32 %v64, %v1665
  %v1668 = vmul.f32 %v65, %v1666
  %v1669 = vmul.f32 %v1665, %v562
  %v1670 = vmul.f32 %v1666, %v563
  %v1671 = vadd.f32 %v1663, %v1669
  %v1672 = vadd.f32 %v1664, %v1670
  %1674 = vset.pattern.permute.xlu0 9
  %1675 = vperm.xlu0 %1674, %v1667
  %v1676 = vpop.permute.xlu0 %1675
  %1679 = vset.pattern.permute.xlu0 9
  %1680 = vperm.xlu0 %1679, %v1668
  %v1681 = vpop.permute.xlu0 %1680
  %v1683 = vmul.f32 %v1676, %v562
  %v1684 = vmul.f32 %v1681, %v563
  %v1685 = vmax.f32 %v1683, 0.0
  %v1686 = vmax.f32 %v1684, 0.0
  %v1687 = vadd.f32 %v1671, %v1685
  %v1688 = vadd.f32 %v1672, %v1686
  %v1689 = vmul.f32 %v1592, %v1639
  %v1690 = vmul.f32 %v1594, %v1640
  %v1691 = vmul.f32 %v64, %v1689
  %v1692 = vmul.f32 %v65, %v1690
  %v1693 = vmul.f32 %v1689, %v701
  %v1694 = vmul.f32 %v1690, %v702
  %v1695 = vadd.f32 %v1687, %v1693
  %v1696 = vadd.f32 %v1688, %v1694
  %1698 = vset.pattern.permute.xlu0 10
  %1699 = vperm.xlu0 %1698, %v1691
  %v1700 = vpop.permute.xlu0 %1699
  %1703 = vset.pattern.permute.xlu0 10
  %1704 = vperm.xlu0 %1703, %v1692
  %v1705 = vpop.permute.xlu0 %1704
  %v1707 = vmul.f32 %v1700, %v701
  %v1708 = vmul.f32 %v1705, %v702
  %v1709 = vmax.f32 %v1707, 0.0
  %v1710 = vmax.f32 %v1708, 0.0
  %v1711 = vadd.f32 %v1695, %v1709
  %v1712 = vadd.f32 %v1696, %v1710
  %v1713 = vmul.f32 %v1598, %v1639
  %v1714 = vmul.f32 %v1600, %v1640
  %v1715 = vmul.f32 %v64, %v1713
  %v1716 = vmul.f32 %v65, %v1714
  %v1717 = vmul.f32 %v1713, %v840
  %v1718 = vmul.f32 %v1714, %v841
  %v1719 = vadd.f32 %v1711, %v1717
  %v1720 = vadd.f32 %v1712, %v1718
  %1722 = vset.pattern.permute.xlu0 11
  %1723 = vperm.xlu0 %1722, %v1715
  %v1724 = vpop.permute.xlu0 %1723
  %1727 = vset.pattern.permute.xlu0 11
  %1728 = vperm.xlu0 %1727, %v1716
  %v1729 = vpop.permute.xlu0 %1728
  %v1731 = vmul.f32 %v1724, %v840
  %v1732 = vmul.f32 %v1729, %v841
  %v1733 = vmax.f32 %v1731, 0.0
  %v1734 = vmax.f32 %v1732, 0.0
  %v1735 = vadd.f32 %v1719, %v1733
  %v1736 = vadd.f32 %v1720, %v1734
  %v1737 = vmul.f32 %v1604, %v1639
  %v1738 = vmul.f32 %v1606, %v1640
  %v1739 = vmul.f32 %v64, %v1737
  %v1740 = vmul.f32 %v65, %v1738
  %v1741 = vmul.f32 %v1737, %v979
  %v1742 = vmul.f32 %v1738, %v980
  %v1743 = vadd.f32 %v1735, %v1741
  %v1744 = vadd.f32 %v1736, %v1742
  %1746 = vset.pattern.permute.xlu0 12
  %1747 = vperm.xlu0 %1746, %v1739
  %v1748 = vpop.permute.xlu0 %1747
  %1751 = vset.pattern.permute.xlu0 12
  %1752 = vperm.xlu0 %1751, %v1740
  %v1753 = vpop.permute.xlu0 %1752
  %v1755 = vmul.f32 %v1748, %v979
  %v1756 = vmul.f32 %v1753, %v980
  %v1757 = vmax.f32 %v1755, 0.0
  %v1758 = vmax.f32 %v1756, 0.0
  %v1759 = vadd.f32 %v1743, %v1757
  %v1760 = vadd.f32 %v1744, %v1758
  %v1761 = vmul.f32 %v1610, %v1639
  %v1762 = vmul.f32 %v1612, %v1640
  %v1763 = vmul.f32 %v64, %v1761
  %v1764 = vmul.f32 %v65, %v1762
  %v1765 = vmul.f32 %v1761, %v1118
  %v1766 = vmul.f32 %v1762, %v1119
  %v1767 = vadd.f32 %v1759, %v1765
  %v1768 = vadd.f32 %v1760, %v1766
  %1770 = vset.pattern.permute.xlu0 13
  %1771 = vperm.xlu0 %1770, %v1763
  %v1772 = vpop.permute.xlu0 %1771
  %1775 = vset.pattern.permute.xlu0 13
  %1776 = vperm.xlu0 %1775, %v1764
  %v1777 = vpop.permute.xlu0 %1776
  %v1779 = vmul.f32 %v1772, %v1118
  %v1780 = vmul.f32 %v1777, %v1119
  %v1781 = vmax.f32 %v1779, 0.0
  %v1782 = vmax.f32 %v1780, 0.0
  %v1783 = vadd.f32 %v1767, %v1781
  %v1784 = vadd.f32 %v1768, %v1782
  %v1785 = vmul.f32 %v1616, %v1639
  %v1786 = vmul.f32 %v1618, %v1640
  %v1787 = vmul.f32 %v64, %v1785
  %v1788 = vmul.f32 %v65, %v1786
  %v1789 = vmul.f32 %v1785, %v1257
  %v1790 = vmul.f32 %v1786, %v1258
  %v1791 = vadd.f32 %v1783, %v1789
  %v1792 = vadd.f32 %v1784, %v1790
  %1794 = vset.pattern.permute.xlu0 14
  %1795 = vperm.xlu0 %1794, %v1787
  %v1796 = vpop.permute.xlu0 %1795
  %1799 = vset.pattern.permute.xlu0 14
  %1800 = vperm.xlu0 %1799, %v1788
  %v1801 = vpop.permute.xlu0 %1800
  %v1803 = vmul.f32 %v1796, %v1257
  %v1804 = vmul.f32 %v1801, %v1258
  %v1805 = vmax.f32 %v1803, 0.0
  %v1806 = vmax.f32 %v1804, 0.0
  %v1807 = vadd.f32 %v1791, %v1805
  %v1808 = vadd.f32 %v1792, %v1806
  %v1809 = vmul.f32 %v1622, %v1639
  %v1810 = vmul.f32 %v1624, %v1640
  %v1811 = vmul.f32 %v64, %v1809
  %v1812 = vmul.f32 %v65, %v1810
  %v1813 = vmul.f32 %v1809, %v1396
  %v1814 = vmul.f32 %v1810, %v1397
  %v1815 = vadd.f32 %v1807, %v1813
  %v1816 = vadd.f32 %v1808, %v1814
  %1818 = vset.pattern.permute.xlu0 15
  %1819 = vperm.xlu0 %1818, %v1811
  %v1820 = vpop.permute.xlu0 %1819
  %1823 = vset.pattern.permute.xlu0 15
  %1824 = vperm.xlu0 %1823, %v1812
  %v1825 = vpop.permute.xlu0 %1824
  %v1827 = vmul.f32 %v1820, %v1396
  %v1828 = vmul.f32 %v1825, %v1397
  %v1829 = vmax.f32 %v1827, 0.0
  %v1830 = vmax.f32 %v1828, 0.0
  %v1831 = vadd.f32 %v1815, %v1829
  %v1832 = vadd.f32 %v1816, %v1830
  %v1834 = vsel %vm288, %v1475, 0
  %v1837 = vsel %vm288, %v1480, 0
  %1839 = vmatprep.subr.mxu0 0.0
  %1840 = vmatpush1.msra.mxu0 %v29
  %1841 = vmatprep.subr.mxu0 0.0
  %1842 = vmatpush1.msra.mxu0 %v30
  %1843 = vmatprep.subr.mxu0 0.0
  %1844 = vmatpush1.msra.mxu0 %v31
  %1845 = vmatprep.subr.mxu0 0.0
  %1846 = vmatpush1.msra.mxu0 %v32
  %1847 = vmatprep.subr.mxu0 0.0
  %1848 = vmatpush1.msra.mxu0 0.0
  %1849 = vmatprep.subr.mxu0 0.0
  %1850 = vmatpush1.msra.mxu0 0.0
  %1851 = vmatprep.subr.mxu0 0.0
  %1852 = vmatpush1.msra.mxu0 0.0
  %1853 = vmatprep.subr.mxu0 0.0
  %1854 = vmatpush1.msra.mxu0 0.0
  %1855 = vmatprep.subr.mxu0 0.0
  %1856 = vmatpush1.msra.mxu0 0.0
  %1857 = vmatprep.subr.mxu0 0.0
  %1858 = vmatpush1.msra.mxu0 0.0
  %1859 = vmatprep.subr.mxu0 0.0
  %1860 = vmatpush1.msra.mxu0 0.0
  %1861 = vmatprep.subr.mxu0 0.0
  %1862 = vmatpush1.msra.mxu0 0.0
  %1863 = vmatprep.subr.mxu0 0.0
  %1864 = vmatpush1.msra.mxu0 0.0
  %1865 = vmatprep.subr.mxu0 0.0
  %1866 = vmatpush1.msra.mxu0 0.0
  %1867 = vmatprep.subr.mxu0 0.0
  %1868 = vmatpush1.msra.mxu0 0.0
  %1869 = vmatprep.subr.mxu0 0.0
  %1870 = vmatpush1.msra.mxu0 0.0
  %1871 = vmatprep.subr.mxu0 0.0
  %1872 = vmatpush1.msra.mxu0 0.0
  %1873 = vmatprep.subr.mxu0 0.0
  %1874 = vmatpush1.msra.mxu0 0.0
  %1875 = vmatprep.subr.mxu0 0.0
  %1876 = vmatpush1.msra.mxu0 0.0
  %1877 = vmatprep.subr.mxu0 0.0
  %1878 = vmatpush1.msra.mxu0 0.0
  %1879 = vmatprep.subr.mxu0 0.0
  %1880 = vmatpush1.msra.mxu0 0.0
  %1881 = vmatprep.subr.mxu0 0.0
  %1882 = vmatpush1.msra.mxu0 0.0
  %1883 = vmatprep.subr.mxu0 0.0
  %1884 = vmatpush1.msra.mxu0 0.0
  %1885 = vmatprep.subr.mxu0 0.0
  %1886 = vmatpush1.msra.mxu0 0.0
  %1887 = vmatprep.subr.mxu0 0.0
  %1888 = vmatpush1.msra.mxu0 0.0
  %1889 = vmatprep.subr.mxu0 0.0
  %1890 = vmatpush1.msra.mxu0 0.0
  %1891 = vmatprep.subr.mxu0 0.0
  %1892 = vmatpush1.msra.mxu0 0.0
  %1893 = vmatprep.subr.mxu0 0.0
  %1894 = vmatpush1.msra.mxu0 0.0
  %1895 = vmatprep.subr.mxu0 0.0
  %1896 = vmatpush1.msra.mxu0 0.0
  %1897 = vmatprep.subr.mxu0 0.0
  %1898 = vmatpush1.msra.mxu0 0.0
  %1899 = vmatprep.subr.mxu0 0.0
  %1900 = vmatpush1.msra.mxu0 0.0
  %1901 = vmatprep.subr.mxu0 0.0
  %1902 = vmatpush1.msra.mxu0 0.0
  %1903 = vmatprep.mubr.f32.mxu0 0.0
  %1904 = vmatmul.mubr.f32.gmra.mrb[0].mxu0 %v1834
  %v1905 = vpop.f32.mrb[0].mxu0
  %v1906 = vadd.f32 0.0, %v1905
  %v1907 = vpop.f32.mrb[0].mxu0
  %1908 = vmatprep.mubr.f32.mxu0 0.0
  %1909 = vmatmul.mubr.f32.gmra.mrb[0].mxu0 %v1837
  %v1910 = vpop.f32.mrb[0].mxu0
  %v1911 = vadd.f32 0.0, %v1910
  %v1912 = vpop.f32.mrb[0].mxu0
  %1913 = vdwg.mxu0
  %1916 = vrot.lane.b32.xlu0 %v1831, 96
  %v1917 = vpop.permute.xlu0 %1916
  %1918 = vrot.lane.b32.xlu0 %v1832, 96
  %v1919 = vpop.permute.xlu0 %1918
  %v1920 = vsel %vm288, %v1917, 0
  %v1922 = vsel %vm288, %v1919, 0
  %1924 = vmatprep.subr.mxu0 0.0
  %1925 = vmatpush1.msra.mxu0 %v25
  %1926 = vmatprep.subr.mxu0 0.0
  %1927 = vmatpush1.msra.mxu0 %v26
  %1928 = vmatprep.subr.mxu0 0.0
  %1929 = vmatpush1.msra.mxu0 %v27
  %1930 = vmatprep.subr.mxu0 0.0
  %1931 = vmatpush1.msra.mxu0 %v28
  %1932 = vmatprep.subr.mxu0 0.0
  %1933 = vmatpush1.msra.mxu0 0.0
  %1934 = vmatprep.subr.mxu0 0.0
  %1935 = vmatpush1.msra.mxu0 0.0
  %1936 = vmatprep.subr.mxu0 0.0
  %1937 = vmatpush1.msra.mxu0 0.0
  %1938 = vmatprep.subr.mxu0 0.0
  %1939 = vmatpush1.msra.mxu0 0.0
  %1940 = vmatprep.subr.mxu0 0.0
  %1941 = vmatpush1.msra.mxu0 0.0
  %1942 = vmatprep.subr.mxu0 0.0
  %1943 = vmatpush1.msra.mxu0 0.0
  %1944 = vmatprep.subr.mxu0 0.0
  %1945 = vmatpush1.msra.mxu0 0.0
  %1946 = vmatprep.subr.mxu0 0.0
  %1947 = vmatpush1.msra.mxu0 0.0
  %1948 = vmatprep.subr.mxu0 0.0
  %1949 = vmatpush1.msra.mxu0 0.0
  %1950 = vmatprep.subr.mxu0 0.0
  %1951 = vmatpush1.msra.mxu0 0.0
  %1952 = vmatprep.subr.mxu0 0.0
  %1953 = vmatpush1.msra.mxu0 0.0
  %1954 = vmatprep.subr.mxu0 0.0
  %1955 = vmatpush1.msra.mxu0 0.0
  %1956 = vmatprep.subr.mxu0 0.0
  %1957 = vmatpush1.msra.mxu0 0.0
  %1958 = vmatprep.subr.mxu0 0.0
  %1959 = vmatpush1.msra.mxu0 0.0
  %1960 = vmatprep.subr.mxu0 0.0
  %1961 = vmatpush1.msra.mxu0 0.0
  %1962 = vmatprep.subr.mxu0 0.0
  %1963 = vmatpush1.msra.mxu0 0.0
  %1964 = vmatprep.subr.mxu0 0.0
  %1965 = vmatpush1.msra.mxu0 0.0
  %1966 = vmatprep.subr.mxu0 0.0
  %1967 = vmatpush1.msra.mxu0 0.0
  %1968 = vmatprep.subr.mxu0 0.0
  %1969 = vmatpush1.msra.mxu0 0.0
  %1970 = vmatprep.subr.mxu0 0.0
  %1971 = vmatpush1.msra.mxu0 0.0
  %1972 = vmatprep.subr.mxu0 0.0
  %1973 = vmatpush1.msra.mxu0 0.0
  %1974 = vmatprep.subr.mxu0 0.0
  %1975 = vmatpush1.msra.mxu0 0.0
  %1976 = vmatprep.subr.mxu0 0.0
  %1977 = vmatpush1.msra.mxu0 0.0
  %1978 = vmatprep.subr.mxu0 0.0
  %1979 = vmatpush1.msra.mxu0 0.0
  %1980 = vmatprep.subr.mxu0 0.0
  %1981 = vmatpush1.msra.mxu0 0.0
  %1982 = vmatprep.subr.mxu0 0.0
  %1983 = vmatpush1.msra.mxu0 0.0
  %1984 = vmatprep.subr.mxu0 0.0
  %1985 = vmatpush1.msra.mxu0 0.0
  %1986 = vmatprep.subr.mxu0 0.0
  %1987 = vmatpush1.msra.mxu0 0.0
  %1988 = vmatprep.mubr.f32.mxu0 0.0
  %1989 = vmatmul.mubr.f32.gmra.mrb[0].mxu0 %v1920
  %v1990 = vpop.f32.mrb[0].mxu0
  %v1991 = vadd.f32 %v1906, %v1990
  %v1992 = vpop.f32.mrb[0].mxu0
  %1993 = vmatprep.mubr.f32.mxu0 0.0
  %1994 = vmatmul.mubr.f32.gmra.mrb[0].mxu0 %v1922
  %v1995 = vpop.f32.mrb[0].mxu0
  %v1996 = vadd.f32 %v1911, %v1995
  %v1997 = vpop.f32.mrb[0].mxu0
  %1998 = vdwg.mxu0
  %v1999 = vtanh.pop %v1991
  %v2000 = vtanh.pop %v1996
  %vm2001 = vcmp.gt.f32.partialorder %v64, 0.0
  %vm2002 = vcmp.gt.f32.partialorder %v65, 0.0
  %vm2003 = vcmask 64512
  %v2004 = vsel %vm2003, %v64, 0.0
  %2005 = vadd.xlane.f32.xlu0 %v2004
  %v2006 = vpop.xlane.xlu0 %2005
  %v2007 = vsel %vm2003, %v65, 0.0
  %2008 = vadd.xlane.f32.xlu0 %v2007
  %v2009 = vpop.xlane.xlu0 %2008
  %vm2010 = vcmp.gt.f32.partialorder %v2006, 0.0
  %vm2011 = vcmp.gt.f32.partialorder %v2009, 0.0
  %v2012 = vrcp.pop %v2006
  %v2013 = vmul.f32 1.0, %v2012
  %v2014 = vrcp.pop %v2009
  %v2015 = vmul.f32 1.0, %v2014
  %v2016 = vsel %vm2010, %v2013, 0.0
  %v2017 = vsel %vm2011, %v2015, 0.0
  %v2018 = vadd.f32 %v2004, %v2007
  %v2019 = vrot.slane %v2018, 4
  %v2020 = vadd.f32 %v2018, %v2019
  %v2021 = vrot.slane %v2020, 2
  %v2022 = vadd.f32 %v2020, %v2021
  %v2023 = vrot.slane %v2022, 1
  %v2024 = vadd.f32 %v2022, %v2023
  %vm2025 = vcmp.gt.f32.partialorder %v2024, 0.0
  %v2026 = vrcp.pop %v2024
  %v2027 = vmul.f32 1.0, %v2026
  %v2028 = vsel %vm2025, %v2027, 0.0
  %v2030 = vsel %vm288, %v1999, 0
  %v2033 = vsel %vm288, %v2000, 0
  %2035 = vmatprep.subr.mxu0 0.0
  %2036 = vmatpush1.msra.mxu0 %v33
  %2037 = vmatprep.subr.mxu0 0.0
  %2038 = vmatpush1.msra.mxu0 %v34
  %2039 = vmatprep.subr.mxu0 0.0
  %2040 = vmatpush1.msra.mxu0 %v35
  %2041 = vmatprep.subr.mxu0 0.0
  %2042 = vmatpush1.msra.mxu0 %v36
  %2043 = vmatprep.subr.mxu0 0.0
  %2044 = vmatpush1.msra.mxu0 0.0
  %2045 = vmatprep.subr.mxu0 0.0
  %2046 = vmatpush1.msra.mxu0 0.0
  %2047 = vmatprep.subr.mxu0 0.0
  %2048 = vmatpush1.msra.mxu0 0.0
  %2049 = vmatprep.subr.mxu0 0.0
  %2050 = vmatpush1.msra.mxu0 0.0
  %2051 = vmatprep.subr.mxu0 0.0
  %2052 = vmatpush1.msra.mxu0 0.0
  %2053 = vmatprep.subr.mxu0 0.0
  %2054 = vmatpush1.msra.mxu0 0.0
  %2055 = vmatprep.subr.mxu0 0.0
  %2056 = vmatpush1.msra.mxu0 0.0
  %2057 = vmatprep.subr.mxu0 0.0
  %2058 = vmatpush1.msra.mxu0 0.0
  %2059 = vmatprep.subr.mxu0 0.0
  %2060 = vmatpush1.msra.mxu0 0.0
  %2061 = vmatprep.subr.mxu0 0.0
  %2062 = vmatpush1.msra.mxu0 0.0
  %2063 = vmatprep.subr.mxu0 0.0
  %2064 = vmatpush1.msra.mxu0 0.0
  %2065 = vmatprep.subr.mxu0 0.0
  %2066 = vmatpush1.msra.mxu0 0.0
  %2067 = vmatprep.subr.mxu0 0.0
  %2068 = vmatpush1.msra.mxu0 0.0
  %2069 = vmatprep.subr.mxu0 0.0
  %2070 = vmatpush1.msra.mxu0 0.0
  %2071 = vmatprep.subr.mxu0 0.0
  %2072 = vmatpush1.msra.mxu0 0.0
  %2073 = vmatprep.subr.mxu0 0.0
  %2074 = vmatpush1.msra.mxu0 0.0
  %2075 = vmatprep.subr.mxu0 0.0
  %2076 = vmatpush1.msra.mxu0 0.0
  %2077 = vmatprep.subr.mxu0 0.0
  %2078 = vmatpush1.msra.mxu0 0.0
  %2079 = vmatprep.subr.mxu0 0.0
  %2080 = vmatpush1.msra.mxu0 0.0
  %2081 = vmatprep.subr.mxu0 0.0
  %2082 = vmatpush1.msra.mxu0 0.0
  %2083 = vmatprep.subr.mxu0 0.0
  %2084 = vmatpush1.msra.mxu0 0.0
  %2085 = vmatprep.subr.mxu0 0.0
  %2086 = vmatpush1.msra.mxu0 0.0
  %2087 = vmatprep.subr.mxu0 0.0
  %2088 = vmatpush1.msra.mxu0 0.0
  %2089 = vmatprep.subr.mxu0 0.0
  %2090 = vmatpush1.msra.mxu0 0.0
  %2091 = vmatprep.subr.mxu0 0.0
  %2092 = vmatpush1.msra.mxu0 0.0
  %2093 = vmatprep.subr.mxu0 0.0
  %2094 = vmatpush1.msra.mxu0 0.0
  %2095 = vmatprep.subr.mxu0 0.0
  %2096 = vmatpush1.msra.mxu0 0.0
  %2097 = vmatprep.subr.mxu0 0.0
  %2098 = vmatpush1.msra.mxu0 0.0
  %2099 = vmatprep.mubr.f32.mxu0 0.0
  %2100 = vmatmul.mubr.f32.gmra.mrb[0].mxu0 %v2030
  %v2101 = vpop.f32.mrb[0].mxu0
  %v2102 = vadd.f32 0.0, %v2101
  %v2103 = vpop.f32.mrb[0].mxu0
  %2104 = vmatprep.mubr.f32.mxu0 0.0
  %2105 = vmatmul.mubr.f32.gmra.mrb[0].mxu0 %v2033
  %v2106 = vpop.f32.mrb[0].mxu0
  %v2107 = vadd.f32 0.0, %v2106
  %v2108 = vpop.f32.mrb[0].mxu0
  %2109 = vdwg.mxu0
  %2110 = vmatprep.subr.mxu0 0.0
  %2111 = vmatpush1.msra.mxu0 %v37
  %2112 = vmatprep.subr.mxu0 0.0
  %2113 = vmatpush1.msra.mxu0 %v38
  %2114 = vmatprep.subr.mxu0 0.0
  %2115 = vmatpush1.msra.mxu0 %v39
  %2116 = vmatprep.subr.mxu0 0.0
  %2117 = vmatpush1.msra.mxu0 %v40
  %2118 = vmatprep.subr.mxu0 0.0
  %2119 = vmatpush1.msra.mxu0 %v41
  %2120 = vmatprep.subr.mxu0 0.0
  %2121 = vmatpush1.msra.mxu0 %v42
  %2122 = vmatprep.subr.mxu0 0.0
  %2123 = vmatpush1.msra.mxu0 %v43
  %2124 = vmatprep.subr.mxu0 0.0
  %2125 = vmatpush1.msra.mxu0 %v44
  %2126 = vmatprep.subr.mxu0 0.0
  %2127 = vmatpush1.msra.mxu0 %v45
  %2128 = vmatprep.subr.mxu0 0.0
  %2129 = vmatpush1.msra.mxu0 %v46
  %2130 = vmatprep.subr.mxu0 0.0
  %2131 = vmatpush1.msra.mxu0 %v47
  %2132 = vmatprep.subr.mxu0 0.0
  %2133 = vmatpush1.msra.mxu0 %v48
  %2134 = vmatprep.subr.mxu0 0.0
  %2135 = vmatpush1.msra.mxu0 %v49
  %2136 = vmatprep.subr.mxu0 0.0
  %2137 = vmatpush1.msra.mxu0 %v50
  %2138 = vmatprep.subr.mxu0 0.0
  %2139 = vmatpush1.msra.mxu0 %v51
  %2140 = vmatprep.subr.mxu0 0.0
  %2141 = vmatpush1.msra.mxu0 %v52
  %2142 = vmatprep.subr.mxu0 0.0
  %2143 = vmatpush1.msra.mxu0 0.0
  %2144 = vmatprep.subr.mxu0 0.0
  %2145 = vmatpush1.msra.mxu0 0.0
  %2146 = vmatprep.subr.mxu0 0.0
  %2147 = vmatpush1.msra.mxu0 0.0
  %2148 = vmatprep.subr.mxu0 0.0
  %2149 = vmatpush1.msra.mxu0 0.0
  %2150 = vmatprep.subr.mxu0 0.0
  %2151 = vmatpush1.msra.mxu0 0.0
  %2152 = vmatprep.subr.mxu0 0.0
  %2153 = vmatpush1.msra.mxu0 0.0
  %2154 = vmatprep.subr.mxu0 0.0
  %2155 = vmatpush1.msra.mxu0 0.0
  %2156 = vmatprep.subr.mxu0 0.0
  %2157 = vmatpush1.msra.mxu0 0.0
  %2158 = vmatprep.subr.mxu0 0.0
  %2159 = vmatpush1.msra.mxu0 0.0
  %2160 = vmatprep.subr.mxu0 0.0
  %2161 = vmatpush1.msra.mxu0 0.0
  %2162 = vmatprep.subr.mxu0 0.0
  %2163 = vmatpush1.msra.mxu0 0.0
  %2164 = vmatprep.subr.mxu0 0.0
  %2165 = vmatpush1.msra.mxu0 0.0
  %2166 = vmatprep.subr.mxu0 0.0
  %2167 = vmatpush1.msra.mxu0 0.0
  %2168 = vmatprep.subr.mxu0 0.0
  %2169 = vmatpush1.msra.mxu0 0.0
  %2170 = vmatprep.subr.mxu0 0.0
  %2171 = vmatpush1.msra.mxu0 0.0
  %2172 = vmatprep.subr.mxu0 0.0
  %2173 = vmatpush1.msra.mxu0 0.0
  %2174 = vmatprep.mubr.f32.mxu0 0.0
  %2175 = vmatmul.mubr.f32.gmra.mrb[0].mxu0 %v2102
  %v2176 = vpop.f32.mrb[0].mxu0
  %v2177 = vadd.f32 0.0, %v2176
  %v2178 = vpop.f32.mrb[0].mxu0
  %2179 = vmatprep.mubr.f32.mxu0 0.0
  %2180 = vmatmul.mubr.f32.gmra.mrb[0].mxu0 %v2107
  %v2181 = vpop.f32.mrb[0].mxu0
  %v2182 = vadd.f32 0.0, %v2181
  %v2183 = vpop.f32.mrb[0].mxu0
  %2184 = vdwg.mxu0
  %2185 = vmatprep.subr.mxu0 0.0
  %2186 = vmatpush1.xpose.msra.mxu0 %v2102
  %2187 = vmatprep.subr.mxu0 0.0
  %2188 = vmatpush1.xpose.msra.mxu0 0.0
  %2189 = vmatprep.subr.mxu0 0.0
  %2190 = vmatpush1.xpose.msra.mxu0 0.0
  %2191 = vmatprep.subr.mxu0 0.0
  %2192 = vmatpush1.xpose.msra.mxu0 0.0
  %2193 = vmatprep.subr.mxu0 0.0
  %2194 = vmatpush1.xpose.msra.mxu0 0.0
  %2195 = vmatprep.subr.mxu0 0.0
  %2196 = vmatpush1.xpose.msra.mxu0 0.0
  %2197 = vmatprep.subr.mxu0 0.0
  %2198 = vmatpush1.xpose.msra.mxu0 0.0
  %2199 = vmatprep.subr.mxu0 0.0
  %2200 = vmatpush1.xpose.msra.mxu0 0.0
  %2201 = vmatprep.subr.mxu0 0.0
  %2202 = vmatpush1.xpose.msra.mxu0 0.0
  %2203 = vmatprep.subr.mxu0 0.0
  %2204 = vmatpush1.xpose.msra.mxu0 0.0
  %2205 = vmatprep.subr.mxu0 0.0
  %2206 = vmatpush1.xpose.msra.mxu0 0.0
  %2207 = vmatprep.subr.mxu0 0.0
  %2208 = vmatpush1.xpose.msra.mxu0 0.0
  %2209 = vmatprep.subr.mxu0 0.0
  %2210 = vmatpush1.xpose.msra.mxu0 0.0
  %2211 = vmatprep.subr.mxu0 0.0
  %2212 = vmatpush1.xpose.msra.mxu0 0.0
  %2213 = vmatprep.subr.mxu0 0.0
  %2214 = vmatpush1.xpose.msra.mxu0 0.0
  %2215 = vmatprep.subr.mxu0 0.0
  %2216 = vmatpush1.xpose.msra.mxu0 0.0
  %2217 = vmatprep.subr.mxu0 0.0
  %2218 = vmatpush1.xpose.msra.mxu0 0.0
  %2219 = vmatprep.subr.mxu0 0.0
  %2220 = vmatpush1.xpose.msra.mxu0 0.0
  %2221 = vmatprep.subr.mxu0 0.0
  %2222 = vmatpush1.xpose.msra.mxu0 0.0
  %2223 = vmatprep.subr.mxu0 0.0
  %2224 = vmatpush1.xpose.msra.mxu0 0.0
  %2225 = vmatprep.subr.mxu0 0.0
  %2226 = vmatpush1.xpose.msra.mxu0 0.0
  %2227 = vmatprep.subr.mxu0 0.0
  %2228 = vmatpush1.xpose.msra.mxu0 0.0
  %2229 = vmatprep.subr.mxu0 0.0
  %2230 = vmatpush1.xpose.msra.mxu0 0.0
  %2231 = vmatprep.subr.mxu0 0.0
  %2232 = vmatpush1.xpose.msra.mxu0 0.0
  %2233 = vmatprep.subr.mxu0 0.0
  %2234 = vmatpush1.xpose.msra.mxu0 0.0
  %2235 = vmatprep.subr.mxu0 0.0
  %2236 = vmatpush1.xpose.msra.mxu0 0.0
  %2237 = vmatprep.subr.mxu0 0.0
  %2238 = vmatpush1.xpose.msra.mxu0 0.0
  %2239 = vmatprep.subr.mxu0 0.0
  %2240 = vmatpush1.xpose.msra.mxu0 0.0
  %2241 = vmatprep.subr.mxu0 0.0
  %2242 = vmatpush1.xpose.msra.mxu0 0.0
  %2243 = vmatprep.subr.mxu0 0.0
  %2244 = vmatpush1.xpose.msra.mxu0 0.0
  %2245 = vmatprep.subr.mxu0 0.0
  %2246 = vmatpush1.xpose.msra.mxu0 0.0
  %2247 = vmatprep.subr.mxu0 0.0
  %2248 = vmatpush1.xpose.msra.mxu0 0.0
  %2249 = vmatprep.mubr.f32.mxu0 0.0
  %2250 = vmatmul.mubr.f32.gmra.mrb[0].mxu0 %v53
  %v2251 = vpop.f32.mrb[0].mxu0
  %v2252 = vadd.f32 0.0, %v2251
  %v2253 = vpop.f32.mrb[0].mxu0
  %2254 = vdwg.mxu0
  %2256 = vset.pattern.permute.xlu0 0
  %2257 = vperm.xlu0 %2256, %v2177
  %v2258 = vpop.permute.xlu0 %2257
  %2261 = vset.pattern.permute.xlu0 0
  %2262 = vperm.xlu0 %2261, %v2182
  %v2263 = vpop.permute.xlu0 %2262
  %v2265 = vlaneseq
  %v2266 = vshrl.u32 %v2265, 7
  %v2267 = vsub.s32 0, %v2266
  %v2268 = vrot.slane %v2252, %v2267
  %v2269 = vadd.f32 %v2258, %v2268
  %v2270 = vadd.f32 %v2263, %v2268
  %vm2271 = vcmp.ge.f32.partialorder %v2269, 0.0
  %vm2272 = vcmp.ge.f32.partialorder %v2270, 0.0
  %v2273 = vmul.f32 %v2269, 0.2
  %v2274 = vmul.f32 %v2270, 0.2
  %v2275 = vsel %vm2271, %v2269, %v2273
  %v2276 = vsel %vm2272, %v2270, %v2274
  %v2277 = vsel %vm2001, %v2275, -1e+30
  %v2278 = vsel %vm2002, %v2276, -1e+30
  %v2279 = vsel %vm2003, %v2277, -inf
  %2280 = vmax.xlane.f32.xlu0 %v2279
  %v2281 = vpop.xlane.xlu0 %2280
  %v2282 = vsel %vm2003, %v2278, -inf
  %2283 = vmax.xlane.f32.xlu0 %v2282
  %v2284 = vpop.xlane.xlu0 %2283
  %v2285 = vsub.f32 %v2277, %v2281
  %v2286 = vsub.f32 %v2278, %v2284
  %v2287 = vmul.f32 %v2285, 1.442695
  %v2288 = vpow.pop %v2287
  %v2289 = vmul.f32 %v2286, 1.442695
  %v2290 = vpow.pop %v2289
  %v2291 = vsel %vm2001, %v2288, 0.0
  %v2292 = vsel %vm2002, %v2290, 0.0
  %v2293 = vsel %vm2003, %v2291, 0.0
  %2294 = vadd.xlane.f32.xlu0 %v2293
  %v2295 = vpop.xlane.xlu0 %2294
  %v2296 = vsel %vm2003, %v2292, 0.0
  %2297 = vadd.xlane.f32.xlu0 %v2296
  %v2298 = vpop.xlane.xlu0 %2297
  %vm2299 = vcmp.gt.f32.partialorder %v2295, 0.0
  %vm2300 = vcmp.gt.f32.partialorder %v2298, 0.0
  %v2301 = vrcp.pop %v2295
  %v2302 = vrcp.pop %v2298
  %v2303 = vmul.f32 %v2291, %v2301
  %v2304 = vmul.f32 %v2292, %v2302
  %v2305 = vsel %vm2299, 1, 0
  %v2306 = vsel %vm2300, 1, 0
  %vm2307 = vcmp.eq.s32.totalorder %v2305, 1
  %vm2308 = vcmp.eq.s32.totalorder %v2306, 1
  %v2309 = vsel %vm2307, %v2303, 0.0
  %v2310 = vsel %vm2308, %v2304, 0.0
  %v2311 = vmul.f32 %v2309, %v2028
  %v2312 = vmul.f32 %v2310, %v2028
  %2313 = vxpose.xlu0.b32.start [1/16] %v2311, 128
  %2314 = vxpose.xlu0.b32.cont [2/16] %v2312, 128
  %2315 = vxpose.xlu0.b32.cont [3/16] 0.0, 128
  %2316 = vxpose.xlu0.b32.cont [4/16] 0.0, 128
  %2317 = vxpose.xlu0.b32.cont [5/16] 0.0, 128
  %2318 = vxpose.xlu0.b32.cont [6/16] 0.0, 128
  %2319 = vxpose.xlu0.b32.cont [7/16] 0.0, 128
  %2320 = vxpose.xlu0.b32.cont [8/16] 0.0, 128
  %2321 = vxpose.xlu0.b32.cont [9/16] 0.0, 128
  %2322 = vxpose.xlu0.b32.cont [10/16] 0.0, 128
  %2323 = vxpose.xlu0.b32.cont [11/16] 0.0, 128
  %2324 = vxpose.xlu0.b32.cont [12/16] 0.0, 128
  %2325 = vxpose.xlu0.b32.cont [13/16] 0.0, 128
  %2326 = vxpose.xlu0.b32.cont [14/16] 0.0, 128
  %2327 = vxpose.xlu0.b32.cont [15/16] 0.0, 128
  %2328 = vxpose.xlu0.b32.end [16/16] 0.0, 128
  %v2329 = vpop.trf.xlu0
  %v2330 = vpop.trf.xlu0
  %v2331 = vpop.trf.xlu0
  %v2332 = vpop.trf.xlu0
  %v2333 = vpop.trf.xlu0
  %v2334 = vpop.trf.xlu0
  %v2335 = vpop.trf.xlu0
  %v2336 = vpop.trf.xlu0
  %v2337 = vpop.trf.xlu0
  %v2338 = vpop.trf.xlu0
  %v2339 = vpop.trf.xlu0
  %v2340 = vpop.trf.xlu0
  %v2341 = vpop.trf.xlu0
  %v2342 = vpop.trf.xlu0
  %v2343 = vpop.trf.xlu0
  %v2344 = vpop.trf.xlu0
  %vm2345 = vcmask 130048
  %v2347 = vsel %vm2345, %v2329, 0
  %2349 = vmatprep.subr.mxu0 0.0
  %2350 = vmatpush1.msra.mxu0 %v2102
  %2351 = vmatprep.subr.mxu0 0.0
  %2352 = vmatpush1.msra.mxu0 %v2107
  %2353 = vmatprep.subr.mxu0 0.0
  %2354 = vmatpush1.msra.mxu0 0.0
  %2355 = vmatprep.subr.mxu0 0.0
  %2356 = vmatpush1.msra.mxu0 0.0
  %2357 = vmatprep.subr.mxu0 0.0
  %2358 = vmatpush1.msra.mxu0 0.0
  %2359 = vmatprep.subr.mxu0 0.0
  %2360 = vmatpush1.msra.mxu0 0.0
  %2361 = vmatprep.subr.mxu0 0.0
  %2362 = vmatpush1.msra.mxu0 0.0
  %2363 = vmatprep.subr.mxu0 0.0
  %2364 = vmatpush1.msra.mxu0 0.0
  %2365 = vmatprep.subr.mxu0 0.0
  %2366 = vmatpush1.msra.mxu0 0.0
  %2367 = vmatprep.subr.mxu0 0.0
  %2368 = vmatpush1.msra.mxu0 0.0
  %2369 = vmatprep.subr.mxu0 0.0
  %2370 = vmatpush1.msra.mxu0 0.0
  %2371 = vmatprep.subr.mxu0 0.0
  %2372 = vmatpush1.msra.mxu0 0.0
  %2373 = vmatprep.subr.mxu0 0.0
  %2374 = vmatpush1.msra.mxu0 0.0
  %2375 = vmatprep.subr.mxu0 0.0
  %2376 = vmatpush1.msra.mxu0 0.0
  %2377 = vmatprep.subr.mxu0 0.0
  %2378 = vmatpush1.msra.mxu0 0.0
  %2379 = vmatprep.subr.mxu0 0.0
  %2380 = vmatpush1.msra.mxu0 0.0
  %2381 = vmatprep.subr.mxu0 0.0
  %2382 = vmatpush1.msra.mxu0 0.0
  %2383 = vmatprep.subr.mxu0 0.0
  %2384 = vmatpush1.msra.mxu0 0.0
  %2385 = vmatprep.subr.mxu0 0.0
  %2386 = vmatpush1.msra.mxu0 0.0
  %2387 = vmatprep.subr.mxu0 0.0
  %2388 = vmatpush1.msra.mxu0 0.0
  %2389 = vmatprep.subr.mxu0 0.0
  %2390 = vmatpush1.msra.mxu0 0.0
  %2391 = vmatprep.subr.mxu0 0.0
  %2392 = vmatpush1.msra.mxu0 0.0
  %2393 = vmatprep.subr.mxu0 0.0
  %2394 = vmatpush1.msra.mxu0 0.0
  %2395 = vmatprep.subr.mxu0 0.0
  %2396 = vmatpush1.msra.mxu0 0.0
  %2397 = vmatprep.subr.mxu0 0.0
  %2398 = vmatpush1.msra.mxu0 0.0
  %2399 = vmatprep.subr.mxu0 0.0
  %2400 = vmatpush1.msra.mxu0 0.0
  %2401 = vmatprep.subr.mxu0 0.0
  %2402 = vmatpush1.msra.mxu0 0.0
  %2403 = vmatprep.subr.mxu0 0.0
  %2404 = vmatpush1.msra.mxu0 0.0
  %2405 = vmatprep.subr.mxu0 0.0
  %2406 = vmatpush1.msra.mxu0 0.0
  %2407 = vmatprep.subr.mxu0 0.0
  %2408 = vmatpush1.msra.mxu0 0.0
  %2409 = vmatprep.subr.mxu0 0.0
  %2410 = vmatpush1.msra.mxu0 0.0
  %2411 = vmatprep.subr.mxu0 0.0
  %2412 = vmatpush1.msra.mxu0 0.0
  %2413 = vmatprep.mubr.f32.mxu0 0.0
  %2414 = vmatmul.mubr.f32.gmra.mrb[0].mxu0 %v2347
  %v2415 = vpop.f32.mrb[0].mxu0
  %v2416 = vadd.f32 0.0, %v2415
  %v2417 = vpop.f32.mrb[0].mxu0
  %2418 = vdwg.mxu0
  %v2420 = vsel %vm2003, %v2309, 0
  %v2423 = vsel %vm2003, %v2310, 0
  %2425 = vmatprep.subr.mxu0 0.0
  %2426 = vmatpush1.msra.mxu0 %v2416
  %2427 = vmatprep.subr.mxu0 0.0
  %2428 = vmatpush1.msra.mxu0 0.0
  %2429 = vmatprep.subr.mxu0 0.0
  %2430 = vmatpush1.msra.mxu0 0.0
  %2431 = vmatprep.subr.mxu0 0.0
  %2432 = vmatpush1.msra.mxu0 0.0
  %2433 = vmatprep.subr.mxu0 0.0
  %2434 = vmatpush1.msra.mxu0 0.0
  %2435 = vmatprep.subr.mxu0 0.0
  %2436 = vmatpush1.msra.mxu0 0.0
  %2437 = vmatprep.subr.mxu0 0.0
  %2438 = vmatpush1.msra.mxu0 0.0
  %2439 = vmatprep.subr.mxu0 0.0
  %2440 = vmatpush1.msra.mxu0 0.0
  %2441 = vmatprep.subr.mxu0 0.0
  %2442 = vmatpush1.msra.mxu0 0.0
  %2443 = vmatprep.subr.mxu0 0.0
  %2444 = vmatpush1.msra.mxu0 0.0
  %2445 = vmatprep.subr.mxu0 0.0
  %2446 = vmatpush1.msra.mxu0 0.0
  %2447 = vmatprep.subr.mxu0 0.0
  %2448 = vmatpush1.msra.mxu0 0.0
  %2449 = vmatprep.subr.mxu0 0.0
  %2450 = vmatpush1.msra.mxu0 0.0
  %2451 = vmatprep.subr.mxu0 0.0
  %2452 = vmatpush1.msra.mxu0 0.0
  %2453 = vmatprep.subr.mxu0 0.0
  %2454 = vmatpush1.msra.mxu0 0.0
  %2455 = vmatprep.subr.mxu0 0.0
  %2456 = vmatpush1.msra.mxu0 0.0
  %2457 = vmatprep.subr.mxu0 0.0
  %2458 = vmatpush1.msra.mxu0 0.0
  %2459 = vmatprep.subr.mxu0 0.0
  %2460 = vmatpush1.msra.mxu0 0.0
  %2461 = vmatprep.subr.mxu0 0.0
  %2462 = vmatpush1.msra.mxu0 0.0
  %2463 = vmatprep.subr.mxu0 0.0
  %2464 = vmatpush1.msra.mxu0 0.0
  %2465 = vmatprep.subr.mxu0 0.0
  %2466 = vmatpush1.msra.mxu0 0.0
  %2467 = vmatprep.subr.mxu0 0.0
  %2468 = vmatpush1.msra.mxu0 0.0
  %2469 = vmatprep.subr.mxu0 0.0
  %2470 = vmatpush1.msra.mxu0 0.0
  %2471 = vmatprep.subr.mxu0 0.0
  %2472 = vmatpush1.msra.mxu0 0.0
  %2473 = vmatprep.subr.mxu0 0.0
  %2474 = vmatpush1.msra.mxu0 0.0
  %2475 = vmatprep.subr.mxu0 0.0
  %2476 = vmatpush1.msra.mxu0 0.0
  %2477 = vmatprep.subr.mxu0 0.0
  %2478 = vmatpush1.msra.mxu0 0.0
  %2479 = vmatprep.subr.mxu0 0.0
  %2480 = vmatpush1.msra.mxu0 0.0
  %2481 = vmatprep.subr.mxu0 0.0
  %2482 = vmatpush1.msra.mxu0 0.0
  %2483 = vmatprep.subr.mxu0 0.0
  %2484 = vmatpush1.msra.mxu0 0.0
  %2485 = vmatprep.subr.mxu0 0.0
  %2486 = vmatpush1.msra.mxu0 0.0
  %2487 = vmatprep.subr.mxu0 0.0
  %2488 = vmatpush1.msra.mxu0 0.0
  %2489 = vmatprep.mubr.f32.mxu0 0.0
  %2490 = vmatmul.mubr.f32.gmra.mrb[0].mxu0 %v2420
  %v2491 = vpop.f32.mrb[0].mxu0
  %v2492 = vadd.f32 0.0, %v2491
  %v2493 = vpop.f32.mrb[0].mxu0
  %2494 = vmatprep.mubr.f32.mxu0 0.0
  %2495 = vmatmul.mubr.f32.gmra.mrb[0].mxu0 %v2423
  %v2496 = vpop.f32.mrb[0].mxu0
  %v2497 = vadd.f32 0.0, %v2496
  %v2498 = vpop.f32.mrb[0].mxu0
  %2499 = vdwg.mxu0
  %v2500 = vmul.f32 %v2492, %v2016
  %v2501 = vmul.f32 %v2497, %v2017
  %v2502 = vadd.f32 %v2500, 0.0
  %v2503 = vadd.f32 %v2501, 0.0
  %2504 = vset.pattern.permute.xlu0 1
  %2505 = vperm.xlu0 %2504, %v2177
  %v2506 = vpop.permute.xlu0 %2505
  %2508 = vset.pattern.permute.xlu0 1
  %2509 = vperm.xlu0 %2508, %v2182
  %v2510 = vpop.permute.xlu0 %2509
  %v2512 = vlaneseq
  %v2513 = vshrl.u32 %v2512, 7
  %v2514 = vsub.s32 1, %v2513
  %v2515 = vrot.slane %v2252, %v2514
  %v2516 = vadd.f32 %v2506, %v2515
  %v2517 = vadd.f32 %v2510, %v2515
  %vm2518 = vcmp.ge.f32.partialorder %v2516, 0.0
  %vm2519 = vcmp.ge.f32.partialorder %v2517, 0.0
  %v2520 = vmul.f32 %v2516, 0.2
  %v2521 = vmul.f32 %v2517, 0.2
  %v2522 = vsel %vm2518, %v2516, %v2520
  %v2523 = vsel %vm2519, %v2517, %v2521
  %v2524 = vsel %vm2001, %v2522, -1e+30
  %v2525 = vsel %vm2002, %v2523, -1e+30
  %v2526 = vsel %vm2003, %v2524, -inf
  %2527 = vmax.xlane.f32.xlu0 %v2526
  %v2528 = vpop.xlane.xlu0 %2527
  %v2529 = vsel %vm2003, %v2525, -inf
  %2530 = vmax.xlane.f32.xlu0 %v2529
  %v2531 = vpop.xlane.xlu0 %2530
  %v2532 = vsub.f32 %v2524, %v2528
  %v2533 = vsub.f32 %v2525, %v2531
  %v2534 = vmul.f32 %v2532, 1.442695
  %v2535 = vpow.pop %v2534
  %v2536 = vmul.f32 %v2533, 1.442695
  %v2537 = vpow.pop %v2536
  %v2538 = vsel %vm2001, %v2535, 0.0
  %v2539 = vsel %vm2002, %v2537, 0.0
  %v2540 = vsel %vm2003, %v2538, 0.0
  %2541 = vadd.xlane.f32.xlu0 %v2540
  %v2542 = vpop.xlane.xlu0 %2541
  %v2543 = vsel %vm2003, %v2539, 0.0
  %2544 = vadd.xlane.f32.xlu0 %v2543
  %v2545 = vpop.xlane.xlu0 %2544
  %vm2546 = vcmp.gt.f32.partialorder %v2542, 0.0
  %vm2547 = vcmp.gt.f32.partialorder %v2545, 0.0
  %v2548 = vrcp.pop %v2542
  %v2549 = vrcp.pop %v2545
  %v2550 = vmul.f32 %v2538, %v2548
  %v2551 = vmul.f32 %v2539, %v2549
  %v2552 = vsel %vm2546, 1, 0
  %v2553 = vsel %vm2547, 1, 0
  %vm2554 = vcmp.eq.s32.totalorder %v2552, 1
  %vm2555 = vcmp.eq.s32.totalorder %v2553, 1
  %v2556 = vsel %vm2554, %v2550, 0.0
  %v2557 = vsel %vm2555, %v2551, 0.0
  %v2558 = vmul.f32 %v2556, %v2028
  %v2559 = vmul.f32 %v2557, %v2028
  %2560 = vxpose.xlu0.b32.start [1/16] %v2558, 128
  %2561 = vxpose.xlu0.b32.cont [2/16] %v2559, 128
  %2562 = vxpose.xlu0.b32.cont [3/16] 0.0, 128
  %2563 = vxpose.xlu0.b32.cont [4/16] 0.0, 128
  %2564 = vxpose.xlu0.b32.cont [5/16] 0.0, 128
  %2565 = vxpose.xlu0.b32.cont [6/16] 0.0, 128
  %2566 = vxpose.xlu0.b32.cont [7/16] 0.0, 128
  %2567 = vxpose.xlu0.b32.cont [8/16] 0.0, 128
  %2568 = vxpose.xlu0.b32.cont [9/16] 0.0, 128
  %2569 = vxpose.xlu0.b32.cont [10/16] 0.0, 128
  %2570 = vxpose.xlu0.b32.cont [11/16] 0.0, 128
  %2571 = vxpose.xlu0.b32.cont [12/16] 0.0, 128
  %2572 = vxpose.xlu0.b32.cont [13/16] 0.0, 128
  %2573 = vxpose.xlu0.b32.cont [14/16] 0.0, 128
  %2574 = vxpose.xlu0.b32.cont [15/16] 0.0, 128
  %2575 = vxpose.xlu0.b32.end [16/16] 0.0, 128
  %v2576 = vpop.trf.xlu0
  %v2577 = vpop.trf.xlu0
  %v2578 = vpop.trf.xlu0
  %v2579 = vpop.trf.xlu0
  %v2580 = vpop.trf.xlu0
  %v2581 = vpop.trf.xlu0
  %v2582 = vpop.trf.xlu0
  %v2583 = vpop.trf.xlu0
  %v2584 = vpop.trf.xlu0
  %v2585 = vpop.trf.xlu0
  %v2586 = vpop.trf.xlu0
  %v2587 = vpop.trf.xlu0
  %v2588 = vpop.trf.xlu0
  %v2589 = vpop.trf.xlu0
  %v2590 = vpop.trf.xlu0
  %v2591 = vpop.trf.xlu0
  %2594 = vrot.lane.b32.xlu0 %v2102, 96
  %v2595 = vpop.permute.xlu0 %2594
  %2596 = vrot.lane.b32.xlu0 %v2107, 96
  %v2597 = vpop.permute.xlu0 %2596
  %v2601 = vsel %vm2345, %v2576, 0
  %2603 = vmatprep.subr.mxu0 0.0
  %2604 = vmatpush1.msra.mxu0 %v2595
  %2605 = vmatprep.subr.mxu0 0.0
  %2606 = vmatpush1.msra.mxu0 %v2597
  %2607 = vmatprep.subr.mxu0 0.0
  %2608 = vmatpush1.msra.mxu0 0.0
  %2609 = vmatprep.subr.mxu0 0.0
  %2610 = vmatpush1.msra.mxu0 0.0
  %2611 = vmatprep.subr.mxu0 0.0
  %2612 = vmatpush1.msra.mxu0 0.0
  %2613 = vmatprep.subr.mxu0 0.0
  %2614 = vmatpush1.msra.mxu0 0.0
  %2615 = vmatprep.subr.mxu0 0.0
  %2616 = vmatpush1.msra.mxu0 0.0
  %2617 = vmatprep.subr.mxu0 0.0
  %2618 = vmatpush1.msra.mxu0 0.0
  %2619 = vmatprep.subr.mxu0 0.0
  %2620 = vmatpush1.msra.mxu0 0.0
  %2621 = vmatprep.subr.mxu0 0.0
  %2622 = vmatpush1.msra.mxu0 0.0
  %2623 = vmatprep.subr.mxu0 0.0
  %2624 = vmatpush1.msra.mxu0 0.0
  %2625 = vmatprep.subr.mxu0 0.0
  %2626 = vmatpush1.msra.mxu0 0.0
  %2627 = vmatprep.subr.mxu0 0.0
  %2628 = vmatpush1.msra.mxu0 0.0
  %2629 = vmatprep.subr.mxu0 0.0
  %2630 = vmatpush1.msra.mxu0 0.0
  %2631 = vmatprep.subr.mxu0 0.0
  %2632 = vmatpush1.msra.mxu0 0.0
  %2633 = vmatprep.subr.mxu0 0.0
  %2634 = vmatpush1.msra.mxu0 0.0
  %2635 = vmatprep.subr.mxu0 0.0
  %2636 = vmatpush1.msra.mxu0 0.0
  %2637 = vmatprep.subr.mxu0 0.0
  %2638 = vmatpush1.msra.mxu0 0.0
  %2639 = vmatprep.subr.mxu0 0.0
  %2640 = vmatpush1.msra.mxu0 0.0
  %2641 = vmatprep.subr.mxu0 0.0
  %2642 = vmatpush1.msra.mxu0 0.0
  %2643 = vmatprep.subr.mxu0 0.0
  %2644 = vmatpush1.msra.mxu0 0.0
  %2645 = vmatprep.subr.mxu0 0.0
  %2646 = vmatpush1.msra.mxu0 0.0
  %2647 = vmatprep.subr.mxu0 0.0
  %2648 = vmatpush1.msra.mxu0 0.0
  %2649 = vmatprep.subr.mxu0 0.0
  %2650 = vmatpush1.msra.mxu0 0.0
  %2651 = vmatprep.subr.mxu0 0.0
  %2652 = vmatpush1.msra.mxu0 0.0
  %2653 = vmatprep.subr.mxu0 0.0
  %2654 = vmatpush1.msra.mxu0 0.0
  %2655 = vmatprep.subr.mxu0 0.0
  %2656 = vmatpush1.msra.mxu0 0.0
  %2657 = vmatprep.subr.mxu0 0.0
  %2658 = vmatpush1.msra.mxu0 0.0
  %2659 = vmatprep.subr.mxu0 0.0
  %2660 = vmatpush1.msra.mxu0 0.0
  %2661 = vmatprep.subr.mxu0 0.0
  %2662 = vmatpush1.msra.mxu0 0.0
  %2663 = vmatprep.subr.mxu0 0.0
  %2664 = vmatpush1.msra.mxu0 0.0
  %2665 = vmatprep.subr.mxu0 0.0
  %2666 = vmatpush1.msra.mxu0 0.0
  %2667 = vmatprep.mubr.f32.mxu0 0.0
  %2668 = vmatmul.mubr.f32.gmra.mrb[0].mxu0 %v2601
  %v2669 = vpop.f32.mrb[0].mxu0
  %v2670 = vadd.f32 0.0, %v2669
  %v2671 = vpop.f32.mrb[0].mxu0
  %2672 = vdwg.mxu0
  %v2674 = vsel %vm2003, %v2556, 0
  %v2677 = vsel %vm2003, %v2557, 0
  %2679 = vmatprep.subr.mxu0 0.0
  %2680 = vmatpush1.msra.mxu0 %v2670
  %2681 = vmatprep.subr.mxu0 0.0
  %2682 = vmatpush1.msra.mxu0 0.0
  %2683 = vmatprep.subr.mxu0 0.0
  %2684 = vmatpush1.msra.mxu0 0.0
  %2685 = vmatprep.subr.mxu0 0.0
  %2686 = vmatpush1.msra.mxu0 0.0
  %2687 = vmatprep.subr.mxu0 0.0
  %2688 = vmatpush1.msra.mxu0 0.0
  %2689 = vmatprep.subr.mxu0 0.0
  %2690 = vmatpush1.msra.mxu0 0.0
  %2691 = vmatprep.subr.mxu0 0.0
  %2692 = vmatpush1.msra.mxu0 0.0
  %2693 = vmatprep.subr.mxu0 0.0
  %2694 = vmatpush1.msra.mxu0 0.0
  %2695 = vmatprep.subr.mxu0 0.0
  %2696 = vmatpush1.msra.mxu0 0.0
  %2697 = vmatprep.subr.mxu0 0.0
  %2698 = vmatpush1.msra.mxu0 0.0
  %2699 = vmatprep.subr.mxu0 0.0
  %2700 = vmatpush1.msra.mxu0 0.0
  %2701 = vmatprep.subr.mxu0 0.0
  %2702 = vmatpush1.msra.mxu0 0.0
  %2703 = vmatprep.subr.mxu0 0.0
  %2704 = vmatpush1.msra.mxu0 0.0
  %2705 = vmatprep.subr.mxu0 0.0
  %2706 = vmatpush1.msra.mxu0 0.0
  %2707 = vmatprep.subr.mxu0 0.0
  %2708 = vmatpush1.msra.mxu0 0.0
  %2709 = vmatprep.subr.mxu0 0.0
  %2710 = vmatpush1.msra.mxu0 0.0
  %2711 = vmatprep.subr.mxu0 0.0
  %2712 = vmatpush1.msra.mxu0 0.0
  %2713 = vmatprep.subr.mxu0 0.0
  %2714 = vmatpush1.msra.mxu0 0.0
  %2715 = vmatprep.subr.mxu0 0.0
  %2716 = vmatpush1.msra.mxu0 0.0
  %2717 = vmatprep.subr.mxu0 0.0
  %2718 = vmatpush1.msra.mxu0 0.0
  %2719 = vmatprep.subr.mxu0 0.0
  %2720 = vmatpush1.msra.mxu0 0.0
  %2721 = vmatprep.subr.mxu0 0.0
  %2722 = vmatpush1.msra.mxu0 0.0
  %2723 = vmatprep.subr.mxu0 0.0
  %2724 = vmatpush1.msra.mxu0 0.0
  %2725 = vmatprep.subr.mxu0 0.0
  %2726 = vmatpush1.msra.mxu0 0.0
  %2727 = vmatprep.subr.mxu0 0.0
  %2728 = vmatpush1.msra.mxu0 0.0
  %2729 = vmatprep.subr.mxu0 0.0
  %2730 = vmatpush1.msra.mxu0 0.0
  %2731 = vmatprep.subr.mxu0 0.0
  %2732 = vmatpush1.msra.mxu0 0.0
  %2733 = vmatprep.subr.mxu0 0.0
  %2734 = vmatpush1.msra.mxu0 0.0
  %2735 = vmatprep.subr.mxu0 0.0
  %2736 = vmatpush1.msra.mxu0 0.0
  %2737 = vmatprep.subr.mxu0 0.0
  %2738 = vmatpush1.msra.mxu0 0.0
  %2739 = vmatprep.subr.mxu0 0.0
  %2740 = vmatpush1.msra.mxu0 0.0
  %2741 = vmatprep.subr.mxu0 0.0
  %2742 = vmatpush1.msra.mxu0 0.0
  %2743 = vmatprep.mubr.f32.mxu0 0.0
  %2744 = vmatmul.mubr.f32.gmra.mrb[0].mxu0 %v2674
  %v2745 = vpop.f32.mrb[0].mxu0
  %v2746 = vadd.f32 0.0, %v2745
  %v2747 = vpop.f32.mrb[0].mxu0
  %2748 = vmatprep.mubr.f32.mxu0 0.0
  %2749 = vmatmul.mubr.f32.gmra.mrb[0].mxu0 %v2677
  %v2750 = vpop.f32.mrb[0].mxu0
  %v2751 = vadd.f32 0.0, %v2750
  %v2752 = vpop.f32.mrb[0].mxu0
  %2753 = vdwg.mxu0
  %v2754 = vmul.f32 %v2746, %v2016
  %v2755 = vmul.f32 %v2751, %v2017
  %v2756 = vadd.f32 %v2502, %v2754
  %v2757 = vadd.f32 %v2503, %v2755
  %2758 = vset.pattern.permute.xlu0 2
  %2759 = vperm.xlu0 %2758, %v2177
  %v2760 = vpop.permute.xlu0 %2759
  %2762 = vset.pattern.permute.xlu0 2
  %2763 = vperm.xlu0 %2762, %v2182
  %v2764 = vpop.permute.xlu0 %2763
  %v2766 = vlaneseq
  %v2767 = vshrl.u32 %v2766, 7
  %v2768 = vsub.s32 2, %v2767
  %v2769 = vrot.slane %v2252, %v2768
  %v2770 = vadd.f32 %v2760, %v2769
  %v2771 = vadd.f32 %v2764, %v2769
  %vm2772 = vcmp.ge.f32.partialorder %v2770, 0.0
  %vm2773 = vcmp.ge.f32.partialorder %v2771, 0.0
  %v2774 = vmul.f32 %v2770, 0.2
  %v2775 = vmul.f32 %v2771, 0.2
  %v2776 = vsel %vm2772, %v2770, %v2774
  %v2777 = vsel %vm2773, %v2771, %v2775
  %v2778 = vsel %vm2001, %v2776, -1e+30
  %v2779 = vsel %vm2002, %v2777, -1e+30
  %v2780 = vsel %vm2003, %v2778, -inf
  %2781 = vmax.xlane.f32.xlu0 %v2780
  %v2782 = vpop.xlane.xlu0 %2781
  %v2783 = vsel %vm2003, %v2779, -inf
  %2784 = vmax.xlane.f32.xlu0 %v2783
  %v2785 = vpop.xlane.xlu0 %2784
  %v2786 = vsub.f32 %v2778, %v2782
  %v2787 = vsub.f32 %v2779, %v2785
  %v2788 = vmul.f32 %v2786, 1.442695
  %v2789 = vpow.pop %v2788
  %v2790 = vmul.f32 %v2787, 1.442695
  %v2791 = vpow.pop %v2790
  %v2792 = vsel %vm2001, %v2789, 0.0
  %v2793 = vsel %vm2002, %v2791, 0.0
  %v2794 = vsel %vm2003, %v2792, 0.0
  %2795 = vadd.xlane.f32.xlu0 %v2794
  %v2796 = vpop.xlane.xlu0 %2795
  %v2797 = vsel %vm2003, %v2793, 0.0
  %2798 = vadd.xlane.f32.xlu0 %v2797
  %v2799 = vpop.xlane.xlu0 %2798
  %vm2800 = vcmp.gt.f32.partialorder %v2796, 0.0
  %vm2801 = vcmp.gt.f32.partialorder %v2799, 0.0
  %v2802 = vrcp.pop %v2796
  %v2803 = vrcp.pop %v2799
  %v2804 = vmul.f32 %v2792, %v2802
  %v2805 = vmul.f32 %v2793, %v2803
  %v2806 = vsel %vm2800, 1, 0
  %v2807 = vsel %vm2801, 1, 0
  %vm2808 = vcmp.eq.s32.totalorder %v2806, 1
  %vm2809 = vcmp.eq.s32.totalorder %v2807, 1
  %v2810 = vsel %vm2808, %v2804, 0.0
  %v2811 = vsel %vm2809, %v2805, 0.0
  %v2812 = vmul.f32 %v2810, %v2028
  %v2813 = vmul.f32 %v2811, %v2028
  %2814 = vxpose.xlu0.b32.start [1/16] %v2812, 128
  %2815 = vxpose.xlu0.b32.cont [2/16] %v2813, 128
  %2816 = vxpose.xlu0.b32.cont [3/16] 0.0, 128
  %2817 = vxpose.xlu0.b32.cont [4/16] 0.0, 128
  %2818 = vxpose.xlu0.b32.cont [5/16] 0.0, 128
  %2819 = vxpose.xlu0.b32.cont [6/16] 0.0, 128
  %2820 = vxpose.xlu0.b32.cont [7/16] 0.0, 128
  %2821 = vxpose.xlu0.b32.cont [8/16] 0.0, 128
  %2822 = vxpose.xlu0.b32.cont [9/16] 0.0, 128
  %2823 = vxpose.xlu0.b32.cont [10/16] 0.0, 128
  %2824 = vxpose.xlu0.b32.cont [11/16] 0.0, 128
  %2825 = vxpose.xlu0.b32.cont [12/16] 0.0, 128
  %2826 = vxpose.xlu0.b32.cont [13/16] 0.0, 128
  %2827 = vxpose.xlu0.b32.cont [14/16] 0.0, 128
  %2828 = vxpose.xlu0.b32.cont [15/16] 0.0, 128
  %2829 = vxpose.xlu0.b32.end [16/16] 0.0, 128
  %v2830 = vpop.trf.xlu0
  %v2831 = vpop.trf.xlu0
  %v2832 = vpop.trf.xlu0
  %v2833 = vpop.trf.xlu0
  %v2834 = vpop.trf.xlu0
  %v2835 = vpop.trf.xlu0
  %v2836 = vpop.trf.xlu0
  %v2837 = vpop.trf.xlu0
  %v2838 = vpop.trf.xlu0
  %v2839 = vpop.trf.xlu0
  %v2840 = vpop.trf.xlu0
  %v2841 = vpop.trf.xlu0
  %v2842 = vpop.trf.xlu0
  %v2843 = vpop.trf.xlu0
  %v2844 = vpop.trf.xlu0
  %v2845 = vpop.trf.xlu0
  %2846 = vrot.lane.b32.xlu0 %v2102, 64
  %v2847 = vpop.permute.xlu0 %2846
  %2848 = vrot.lane.b32.xlu0 %v2107, 64
  %v2849 = vpop.permute.xlu0 %2848
  %v2853 = vsel %vm2345, %v2830, 0
  %2855 = vmatprep.subr.mxu0 0.0
  %2856 = vmatpush1.msra.mxu0 %v2847
  %2857 = vmatprep.subr.mxu0 0.0
  %2858 = vmatpush1.msra.mxu0 %v2849
  %2859 = vmatprep.subr.mxu0 0.0
  %2860 = vmatpush1.msra.mxu0 0.0
  %2861 = vmatprep.subr.mxu0 0.0
  %2862 = vmatpush1.msra.mxu0 0.0
  %2863 = vmatprep.subr.mxu0 0.0
  %2864 = vmatpush1.msra.mxu0 0.0
  %2865 = vmatprep.subr.mxu0 0.0
  %2866 = vmatpush1.msra.mxu0 0.0
  %2867 = vmatprep.subr.mxu0 0.0
  %2868 = vmatpush1.msra.mxu0 0.0
  %2869 = vmatprep.subr.mxu0 0.0
  %2870 = vmatpush1.msra.mxu0 0.0
  %2871 = vmatprep.subr.mxu0 0.0
  %2872 = vmatpush1.msra.mxu0 0.0
  %2873 = vmatprep.subr.mxu0 0.0
  %2874 = vmatpush1.msra.mxu0 0.0
  %2875 = vmatprep.subr.mxu0 0.0
  %2876 = vmatpush1.msra.mxu0 0.0
  %2877 = vmatprep.subr.mxu0 0.0
  %2878 = vmatpush1.msra.mxu0 0.0
  %2879 = vmatprep.subr.mxu0 0.0
  %2880 = vmatpush1.msra.mxu0 0.0
  %2881 = vmatprep.subr.mxu0 0.0
  %2882 = vmatpush1.msra.mxu0 0.0
  %2883 = vmatprep.subr.mxu0 0.0
  %2884 = vmatpush1.msra.mxu0 0.0
  %2885 = vmatprep.subr.mxu0 0.0
  %2886 = vmatpush1.msra.mxu0 0.0
  %2887 = vmatprep.subr.mxu0 0.0
  %2888 = vmatpush1.msra.mxu0 0.0
  %2889 = vmatprep.subr.mxu0 0.0
  %2890 = vmatpush1.msra.mxu0 0.0
  %2891 = vmatprep.subr.mxu0 0.0
  %2892 = vmatpush1.msra.mxu0 0.0
  %2893 = vmatprep.subr.mxu0 0.0
  %2894 = vmatpush1.msra.mxu0 0.0
  %2895 = vmatprep.subr.mxu0 0.0
  %2896 = vmatpush1.msra.mxu0 0.0
  %2897 = vmatprep.subr.mxu0 0.0
  %2898 = vmatpush1.msra.mxu0 0.0
  %2899 = vmatprep.subr.mxu0 0.0
  %2900 = vmatpush1.msra.mxu0 0.0
  %2901 = vmatprep.subr.mxu0 0.0
  %2902 = vmatpush1.msra.mxu0 0.0
  %2903 = vmatprep.subr.mxu0 0.0
  %2904 = vmatpush1.msra.mxu0 0.0
  %2905 = vmatprep.subr.mxu0 0.0
  %2906 = vmatpush1.msra.mxu0 0.0
  %2907 = vmatprep.subr.mxu0 0.0
  %2908 = vmatpush1.msra.mxu0 0.0
  %2909 = vmatprep.subr.mxu0 0.0
  %2910 = vmatpush1.msra.mxu0 0.0
  %2911 = vmatprep.subr.mxu0 0.0
  %2912 = vmatpush1.msra.mxu0 0.0
  %2913 = vmatprep.subr.mxu0 0.0
  %2914 = vmatpush1.msra.mxu0 0.0
  %2915 = vmatprep.subr.mxu0 0.0
  %2916 = vmatpush1.msra.mxu0 0.0
  %2917 = vmatprep.subr.mxu0 0.0
  %2918 = vmatpush1.msra.mxu0 0.0
  %2919 = vmatprep.mubr.f32.mxu0 0.0
  %2920 = vmatmul.mubr.f32.gmra.mrb[0].mxu0 %v2853
  %v2921 = vpop.f32.mrb[0].mxu0
  %v2922 = vadd.f32 0.0, %v2921
  %v2923 = vpop.f32.mrb[0].mxu0
  %2924 = vdwg.mxu0
  %v2926 = vsel %vm2003, %v2810, 0
  %v2929 = vsel %vm2003, %v2811, 0
  %2931 = vmatprep.subr.mxu0 0.0
  %2932 = vmatpush1.msra.mxu0 %v2922
  %2933 = vmatprep.subr.mxu0 0.0
  %2934 = vmatpush1.msra.mxu0 0.0
  %2935 = vmatprep.subr.mxu0 0.0
  %2936 = vmatpush1.msra.mxu0 0.0
  %2937 = vmatprep.subr.mxu0 0.0
  %2938 = vmatpush1.msra.mxu0 0.0
  %2939 = vmatprep.subr.mxu0 0.0
  %2940 = vmatpush1.msra.mxu0 0.0
  %2941 = vmatprep.subr.mxu0 0.0
  %2942 = vmatpush1.msra.mxu0 0.0
  %2943 = vmatprep.subr.mxu0 0.0
  %2944 = vmatpush1.msra.mxu0 0.0
  %2945 = vmatprep.subr.mxu0 0.0
  %2946 = vmatpush1.msra.mxu0 0.0
  %2947 = vmatprep.subr.mxu0 0.0
  %2948 = vmatpush1.msra.mxu0 0.0
  %2949 = vmatprep.subr.mxu0 0.0
  %2950 = vmatpush1.msra.mxu0 0.0
  %2951 = vmatprep.subr.mxu0 0.0
  %2952 = vmatpush1.msra.mxu0 0.0
  %2953 = vmatprep.subr.mxu0 0.0
  %2954 = vmatpush1.msra.mxu0 0.0
  %2955 = vmatprep.subr.mxu0 0.0
  %2956 = vmatpush1.msra.mxu0 0.0
  %2957 = vmatprep.subr.mxu0 0.0
  %2958 = vmatpush1.msra.mxu0 0.0
  %2959 = vmatprep.subr.mxu0 0.0
  %2960 = vmatpush1.msra.mxu0 0.0
  %2961 = vmatprep.subr.mxu0 0.0
  %2962 = vmatpush1.msra.mxu0 0.0
  %2963 = vmatprep.subr.mxu0 0.0
  %2964 = vmatpush1.msra.mxu0 0.0
  %2965 = vmatprep.subr.mxu0 0.0
  %2966 = vmatpush1.msra.mxu0 0.0
  %2967 = vmatprep.subr.mxu0 0.0
  %2968 = vmatpush1.msra.mxu0 0.0
  %2969 = vmatprep.subr.mxu0 0.0
  %2970 = vmatpush1.msra.mxu0 0.0
  %2971 = vmatprep.subr.mxu0 0.0
  %2972 = vmatpush1.msra.mxu0 0.0
  %2973 = vmatprep.subr.mxu0 0.0
  %2974 = vmatpush1.msra.mxu0 0.0
  %2975 = vmatprep.subr.mxu0 0.0
  %2976 = vmatpush1.msra.mxu0 0.0
  %2977 = vmatprep.subr.mxu0 0.0
  %2978 = vmatpush1.msra.mxu0 0.0
  %2979 = vmatprep.subr.mxu0 0.0
  %2980 = vmatpush1.msra.mxu0 0.0
  %2981 = vmatprep.subr.mxu0 0.0
  %2982 = vmatpush1.msra.mxu0 0.0
  %2983 = vmatprep.subr.mxu0 0.0
  %2984 = vmatpush1.msra.mxu0 0.0
  %2985 = vmatprep.subr.mxu0 0.0
  %2986 = vmatpush1.msra.mxu0 0.0
  %2987 = vmatprep.subr.mxu0 0.0
  %2988 = vmatpush1.msra.mxu0 0.0
  %2989 = vmatprep.subr.mxu0 0.0
  %2990 = vmatpush1.msra.mxu0 0.0
  %2991 = vmatprep.subr.mxu0 0.0
  %2992 = vmatpush1.msra.mxu0 0.0
  %2993 = vmatprep.subr.mxu0 0.0
  %2994 = vmatpush1.msra.mxu0 0.0
  %2995 = vmatprep.mubr.f32.mxu0 0.0
  %2996 = vmatmul.mubr.f32.gmra.mrb[0].mxu0 %v2926
  %v2997 = vpop.f32.mrb[0].mxu0
  %v2998 = vadd.f32 0.0, %v2997
  %v2999 = vpop.f32.mrb[0].mxu0
  %3000 = vmatprep.mubr.f32.mxu0 0.0
  %3001 = vmatmul.mubr.f32.gmra.mrb[0].mxu0 %v2929
  %v3002 = vpop.f32.mrb[0].mxu0
  %v3003 = vadd.f32 0.0, %v3002
  %v3004 = vpop.f32.mrb[0].mxu0
  %3005 = vdwg.mxu0
  %v3006 = vmul.f32 %v2998, %v2016
  %v3007 = vmul.f32 %v3003, %v2017
  %v3008 = vadd.f32 %v2756, %v3006
  %v3009 = vadd.f32 %v2757, %v3007
  %3010 = vset.pattern.permute.xlu0 3
  %3011 = vperm.xlu0 %3010, %v2177
  %v3012 = vpop.permute.xlu0 %3011
  %3014 = vset.pattern.permute.xlu0 3
  %3015 = vperm.xlu0 %3014, %v2182
  %v3016 = vpop.permute.xlu0 %3015
  %v3018 = vlaneseq
  %v3019 = vshrl.u32 %v3018, 7
  %v3020 = vsub.s32 3, %v3019
  %v3021 = vrot.slane %v2252, %v3020
  %v3022 = vadd.f32 %v3012, %v3021
  %v3023 = vadd.f32 %v3016, %v3021
  %vm3024 = vcmp.ge.f32.partialorder %v3022, 0.0
  %vm3025 = vcmp.ge.f32.partialorder %v3023, 0.0
  %v3026 = vmul.f32 %v3022, 0.2
  %v3027 = vmul.f32 %v3023, 0.2
  %v3028 = vsel %vm3024, %v3022, %v3026
  %v3029 = vsel %vm3025, %v3023, %v3027
  %v3030 = vsel %vm2001, %v3028, -1e+30
  %v3031 = vsel %vm2002, %v3029, -1e+30
  %v3032 = vsel %vm2003, %v3030, -inf
  %3033 = vmax.xlane.f32.xlu0 %v3032
  %v3034 = vpop.xlane.xlu0 %3033
  %v3035 = vsel %vm2003, %v3031, -inf
  %3036 = vmax.xlane.f32.xlu0 %v3035
  %v3037 = vpop.xlane.xlu0 %3036
  %v3038 = vsub.f32 %v3030, %v3034
  %v3039 = vsub.f32 %v3031, %v3037
  %v3040 = vmul.f32 %v3038, 1.442695
  %v3041 = vpow.pop %v3040
  %v3042 = vmul.f32 %v3039, 1.442695
  %v3043 = vpow.pop %v3042
  %v3044 = vsel %vm2001, %v3041, 0.0
  %v3045 = vsel %vm2002, %v3043, 0.0
  %v3046 = vsel %vm2003, %v3044, 0.0
  %3047 = vadd.xlane.f32.xlu0 %v3046
  %v3048 = vpop.xlane.xlu0 %3047
  %v3049 = vsel %vm2003, %v3045, 0.0
  %3050 = vadd.xlane.f32.xlu0 %v3049
  %v3051 = vpop.xlane.xlu0 %3050
  %vm3052 = vcmp.gt.f32.partialorder %v3048, 0.0
  %vm3053 = vcmp.gt.f32.partialorder %v3051, 0.0
  %v3054 = vrcp.pop %v3048
  %v3055 = vrcp.pop %v3051
  %v3056 = vmul.f32 %v3044, %v3054
  %v3057 = vmul.f32 %v3045, %v3055
  %v3058 = vsel %vm3052, 1, 0
  %v3059 = vsel %vm3053, 1, 0
  %vm3060 = vcmp.eq.s32.totalorder %v3058, 1
  %vm3061 = vcmp.eq.s32.totalorder %v3059, 1
  %v3062 = vsel %vm3060, %v3056, 0.0
  %v3063 = vsel %vm3061, %v3057, 0.0
  %v3064 = vmul.f32 %v3062, %v2028
  %v3065 = vmul.f32 %v3063, %v2028
  %3066 = vxpose.xlu0.b32.start [1/16] %v3064, 128
  %3067 = vxpose.xlu0.b32.cont [2/16] %v3065, 128
  %3068 = vxpose.xlu0.b32.cont [3/16] 0.0, 128
  %3069 = vxpose.xlu0.b32.cont [4/16] 0.0, 128
  %3070 = vxpose.xlu0.b32.cont [5/16] 0.0, 128
  %3071 = vxpose.xlu0.b32.cont [6/16] 0.0, 128
  %3072 = vxpose.xlu0.b32.cont [7/16] 0.0, 128
  %3073 = vxpose.xlu0.b32.cont [8/16] 0.0, 128
  %3074 = vxpose.xlu0.b32.cont [9/16] 0.0, 128
  %3075 = vxpose.xlu0.b32.cont [10/16] 0.0, 128
  %3076 = vxpose.xlu0.b32.cont [11/16] 0.0, 128
  %3077 = vxpose.xlu0.b32.cont [12/16] 0.0, 128
  %3078 = vxpose.xlu0.b32.cont [13/16] 0.0, 128
  %3079 = vxpose.xlu0.b32.cont [14/16] 0.0, 128
  %3080 = vxpose.xlu0.b32.cont [15/16] 0.0, 128
  %3081 = vxpose.xlu0.b32.end [16/16] 0.0, 128
  %v3082 = vpop.trf.xlu0
  %v3083 = vpop.trf.xlu0
  %v3084 = vpop.trf.xlu0
  %v3085 = vpop.trf.xlu0
  %v3086 = vpop.trf.xlu0
  %v3087 = vpop.trf.xlu0
  %v3088 = vpop.trf.xlu0
  %v3089 = vpop.trf.xlu0
  %v3090 = vpop.trf.xlu0
  %v3091 = vpop.trf.xlu0
  %v3092 = vpop.trf.xlu0
  %v3093 = vpop.trf.xlu0
  %v3094 = vpop.trf.xlu0
  %v3095 = vpop.trf.xlu0
  %v3096 = vpop.trf.xlu0
  %v3097 = vpop.trf.xlu0
  %3098 = vrot.lane.b32.xlu0 %v2102, 32
  %v3099 = vpop.permute.xlu0 %3098
  %3100 = vrot.lane.b32.xlu0 %v2107, 32
  %v3101 = vpop.permute.xlu0 %3100
  %v3105 = vsel %vm2345, %v3082, 0
  %3107 = vmatprep.subr.mxu0 0.0
  %3108 = vmatpush1.msra.mxu0 %v3099
  %3109 = vmatprep.subr.mxu0 0.0
  %3110 = vmatpush1.msra.mxu0 %v3101
  %3111 = vmatprep.subr.mxu0 0.0
  %3112 = vmatpush1.msra.mxu0 0.0
  %3113 = vmatprep.subr.mxu0 0.0
  %3114 = vmatpush1.msra.mxu0 0.0
  %3115 = vmatprep.subr.mxu0 0.0
  %3116 = vmatpush1.msra.mxu0 0.0
  %3117 = vmatprep.subr.mxu0 0.0
  %3118 = vmatpush1.msra.mxu0 0.0
  %3119 = vmatprep.subr.mxu0 0.0
  %3120 = vmatpush1.msra.mxu0 0.0
  %3121 = vmatprep.subr.mxu0 0.0
  %3122 = vmatpush1.msra.mxu0 0.0
  %3123 = vmatprep.subr.mxu0 0.0
  %3124 = vmatpush1.msra.mxu0 0.0
  %3125 = vmatprep.subr.mxu0 0.0
  %3126 = vmatpush1.msra.mxu0 0.0
  %3127 = vmatprep.subr.mxu0 0.0
  %3128 = vmatpush1.msra.mxu0 0.0
  %3129 = vmatprep.subr.mxu0 0.0
  %3130 = vmatpush1.msra.mxu0 0.0
  %3131 = vmatprep.subr.mxu0 0.0
  %3132 = vmatpush1.msra.mxu0 0.0
  %3133 = vmatprep.subr.mxu0 0.0
  %3134 = vmatpush1.msra.mxu0 0.0
  %3135 = vmatprep.subr.mxu0 0.0
  %3136 = vmatpush1.msra.mxu0 0.0
  %3137 = vmatprep.subr.mxu0 0.0
  %3138 = vmatpush1.msra.mxu0 0.0
  %3139 = vmatprep.subr.mxu0 0.0
  %3140 = vmatpush1.msra.mxu0 0.0
  %3141 = vmatprep.subr.mxu0 0.0
  %3142 = vmatpush1.msra.mxu0 0.0
  %3143 = vmatprep.subr.mxu0 0.0
  %3144 = vmatpush1.msra.mxu0 0.0
  %3145 = vmatprep.subr.mxu0 0.0
  %3146 = vmatpush1.msra.mxu0 0.0
  %3147 = vmatprep.subr.mxu0 0.0
  %3148 = vmatpush1.msra.mxu0 0.0
  %3149 = vmatprep.subr.mxu0 0.0
  %3150 = vmatpush1.msra.mxu0 0.0
  %3151 = vmatprep.subr.mxu0 0.0
  %3152 = vmatpush1.msra.mxu0 0.0
  %3153 = vmatprep.subr.mxu0 0.0
  %3154 = vmatpush1.msra.mxu0 0.0
  %3155 = vmatprep.subr.mxu0 0.0
  %3156 = vmatpush1.msra.mxu0 0.0
  %3157 = vmatprep.subr.mxu0 0.0
  %3158 = vmatpush1.msra.mxu0 0.0
  %3159 = vmatprep.subr.mxu0 0.0
  %3160 = vmatpush1.msra.mxu0 0.0
  %3161 = vmatprep.subr.mxu0 0.0
  %3162 = vmatpush1.msra.mxu0 0.0
  %3163 = vmatprep.subr.mxu0 0.0
  %3164 = vmatpush1.msra.mxu0 0.0
  %3165 = vmatprep.subr.mxu0 0.0
  %3166 = vmatpush1.msra.mxu0 0.0
  %3167 = vmatprep.subr.mxu0 0.0
  %3168 = vmatpush1.msra.mxu0 0.0
  %3169 = vmatprep.subr.mxu0 0.0
  %3170 = vmatpush1.msra.mxu0 0.0
  %3171 = vmatprep.mubr.f32.mxu0 0.0
  %3172 = vmatmul.mubr.f32.gmra.mrb[0].mxu0 %v3105
  %v3173 = vpop.f32.mrb[0].mxu0
  %v3174 = vadd.f32 0.0, %v3173
  %v3175 = vpop.f32.mrb[0].mxu0
  %3176 = vdwg.mxu0
  %v3178 = vsel %vm2003, %v3062, 0
  %v3181 = vsel %vm2003, %v3063, 0
  %3183 = vmatprep.subr.mxu0 0.0
  %3184 = vmatpush1.msra.mxu0 %v3174
  %3185 = vmatprep.subr.mxu0 0.0
  %3186 = vmatpush1.msra.mxu0 0.0
  %3187 = vmatprep.subr.mxu0 0.0
  %3188 = vmatpush1.msra.mxu0 0.0
  %3189 = vmatprep.subr.mxu0 0.0
  %3190 = vmatpush1.msra.mxu0 0.0
  %3191 = vmatprep.subr.mxu0 0.0
  %3192 = vmatpush1.msra.mxu0 0.0
  %3193 = vmatprep.subr.mxu0 0.0
  %3194 = vmatpush1.msra.mxu0 0.0
  %3195 = vmatprep.subr.mxu0 0.0
  %3196 = vmatpush1.msra.mxu0 0.0
  %3197 = vmatprep.subr.mxu0 0.0
  %3198 = vmatpush1.msra.mxu0 0.0
  %3199 = vmatprep.subr.mxu0 0.0
  %3200 = vmatpush1.msra.mxu0 0.0
  %3201 = vmatprep.subr.mxu0 0.0
  %3202 = vmatpush1.msra.mxu0 0.0
  %3203 = vmatprep.subr.mxu0 0.0
  %3204 = vmatpush1.msra.mxu0 0.0
  %3205 = vmatprep.subr.mxu0 0.0
  %3206 = vmatpush1.msra.mxu0 0.0
  %3207 = vmatprep.subr.mxu0 0.0
  %3208 = vmatpush1.msra.mxu0 0.0
  %3209 = vmatprep.subr.mxu0 0.0
  %3210 = vmatpush1.msra.mxu0 0.0
  %3211 = vmatprep.subr.mxu0 0.0
  %3212 = vmatpush1.msra.mxu0 0.0
  %3213 = vmatprep.subr.mxu0 0.0
  %3214 = vmatpush1.msra.mxu0 0.0
  %3215 = vmatprep.subr.mxu0 0.0
  %3216 = vmatpush1.msra.mxu0 0.0
  %3217 = vmatprep.subr.mxu0 0.0
  %3218 = vmatpush1.msra.mxu0 0.0
  %3219 = vmatprep.subr.mxu0 0.0
  %3220 = vmatpush1.msra.mxu0 0.0
  %3221 = vmatprep.subr.mxu0 0.0
  %3222 = vmatpush1.msra.mxu0 0.0
  %3223 = vmatprep.subr.mxu0 0.0
  %3224 = vmatpush1.msra.mxu0 0.0
  %3225 = vmatprep.subr.mxu0 0.0
  %3226 = vmatpush1.msra.mxu0 0.0
  %3227 = vmatprep.subr.mxu0 0.0
  %3228 = vmatpush1.msra.mxu0 0.0
  %3229 = vmatprep.subr.mxu0 0.0
  %3230 = vmatpush1.msra.mxu0 0.0
  %3231 = vmatprep.subr.mxu0 0.0
  %3232 = vmatpush1.msra.mxu0 0.0
  %3233 = vmatprep.subr.mxu0 0.0
  %3234 = vmatpush1.msra.mxu0 0.0
  %3235 = vmatprep.subr.mxu0 0.0
  %3236 = vmatpush1.msra.mxu0 0.0
  %3237 = vmatprep.subr.mxu0 0.0
  %3238 = vmatpush1.msra.mxu0 0.0
  %3239 = vmatprep.subr.mxu0 0.0
  %3240 = vmatpush1.msra.mxu0 0.0
  %3241 = vmatprep.subr.mxu0 0.0
  %3242 = vmatpush1.msra.mxu0 0.0
  %3243 = vmatprep.subr.mxu0 0.0
  %3244 = vmatpush1.msra.mxu0 0.0
  %3245 = vmatprep.subr.mxu0 0.0
  %3246 = vmatpush1.msra.mxu0 0.0
  %3247 = vmatprep.mubr.f32.mxu0 0.0
  %3248 = vmatmul.mubr.f32.gmra.mrb[0].mxu0 %v3178
  %v3249 = vpop.f32.mrb[0].mxu0
  %v3250 = vadd.f32 0.0, %v3249
  %v3251 = vpop.f32.mrb[0].mxu0
  %3252 = vmatprep.mubr.f32.mxu0 0.0
  %3253 = vmatmul.mubr.f32.gmra.mrb[0].mxu0 %v3181
  %v3254 = vpop.f32.mrb[0].mxu0
  %v3255 = vadd.f32 0.0, %v3254
  %v3256 = vpop.f32.mrb[0].mxu0
  %3257 = vdwg.mxu0
  %v3258 = vmul.f32 %v3250, %v2016
  %v3259 = vmul.f32 %v3255, %v2017
  %v3260 = vadd.f32 %v3008, %v3258
  %v3261 = vadd.f32 %v3009, %v3259
  %v3262 = vmul.f32 %v3260, 0.25
  %v3263 = vmul.f32 %v3261, 0.25
  %v3264 = vlaneseq
  %v3265 = vshrl.u32 %v3264, 7
  %v3266 = vsub.s32 0, %v3265
  %v3267 = vrot.slane %v54, %v3266
  %v3268 = vadd.f32 %v3262, %v3267
  %v3269 = vadd.f32 %v3263, %v3267
  %vm3270 = vcmp.ge.f32.partialorder %v3268, 0.0
  %vm3271 = vcmp.ge.f32.partialorder %v3269, 0.0
  %v3272 = vmul.f32 %v3268, 0.2
  %v3273 = vmul.f32 %v3269, 0.2
  %v3274 = vsel %vm3270, %v3268, %v3272
  %v3275 = vsel %vm3271, %v3269, %v3273
  %v3277 = vsel %vm288, %v3274, 0
  %v3280 = vsel %vm288, %v3275, 0
  %3282 = vmatprep.subr.mxu0 0.0
  %3283 = vmatpush1.msra.mxu0 %v55
  %3284 = vmatprep.subr.mxu0 0.0
  %3285 = vmatpush1.msra.mxu0 %v56
  %3286 = vmatprep.subr.mxu0 0.0
  %3287 = vmatpush1.msra.mxu0 %v57
  %3288 = vmatprep.subr.mxu0 0.0
  %3289 = vmatpush1.msra.mxu0 %v58
  %3290 = vmatprep.subr.mxu0 0.0
  %3291 = vmatpush1.msra.mxu0 0.0
  %3292 = vmatprep.subr.mxu0 0.0
  %3293 = vmatpush1.msra.mxu0 0.0
  %3294 = vmatprep.subr.mxu0 0.0
  %3295 = vmatpush1.msra.mxu0 0.0
  %3296 = vmatprep.subr.mxu0 0.0
  %3297 = vmatpush1.msra.mxu0 0.0
  %3298 = vmatprep.subr.mxu0 0.0
  %3299 = vmatpush1.msra.mxu0 0.0
  %3300 = vmatprep.subr.mxu0 0.0
  %3301 = vmatpush1.msra.mxu0 0.0
  %3302 = vmatprep.subr.mxu0 0.0
  %3303 = vmatpush1.msra.mxu0 0.0
  %3304 = vmatprep.subr.mxu0 0.0
  %3305 = vmatpush1.msra.mxu0 0.0
  %3306 = vmatprep.subr.mxu0 0.0
  %3307 = vmatpush1.msra.mxu0 0.0
  %3308 = vmatprep.subr.mxu0 0.0
  %3309 = vmatpush1.msra.mxu0 0.0
  %3310 = vmatprep.subr.mxu0 0.0
  %3311 = vmatpush1.msra.mxu0 0.0
  %3312 = vmatprep.subr.mxu0 0.0
  %3313 = vmatpush1.msra.mxu0 0.0
  %3314 = vmatprep.subr.mxu0 0.0
  %3315 = vmatpush1.msra.mxu0 0.0
  %3316 = vmatprep.subr.mxu0 0.0
  %3317 = vmatpush1.msra.mxu0 0.0
  %3318 = vmatprep.subr.mxu0 0.0
  %3319 = vmatpush1.msra.mxu0 0.0
  %3320 = vmatprep.subr.mxu0 0.0
  %3321 = vmatpush1.msra.mxu0 0.0
  %3322 = vmatprep.subr.mxu0 0.0
  %3323 = vmatpush1.msra.mxu0 0.0
  %3324 = vmatprep.subr.mxu0 0.0
  %3325 = vmatpush1.msra.mxu0 0.0
  %3326 = vmatprep.subr.mxu0 0.0
  %3327 = vmatpush1.msra.mxu0 0.0
  %3328 = vmatprep.subr.mxu0 0.0
  %3329 = vmatpush1.msra.mxu0 0.0
  %3330 = vmatprep.subr.mxu0 0.0
  %3331 = vmatpush1.msra.mxu0 0.0
  %3332 = vmatprep.subr.mxu0 0.0
  %3333 = vmatpush1.msra.mxu0 0.0
  %3334 = vmatprep.subr.mxu0 0.0
  %3335 = vmatpush1.msra.mxu0 0.0
  %3336 = vmatprep.subr.mxu0 0.0
  %3337 = vmatpush1.msra.mxu0 0.0
  %3338 = vmatprep.subr.mxu0 0.0
  %3339 = vmatpush1.msra.mxu0 0.0
  %3340 = vmatprep.subr.mxu0 0.0
  %3341 = vmatpush1.msra.mxu0 0.0
  %3342 = vmatprep.subr.mxu0 0.0
  %3343 = vmatpush1.msra.mxu0 0.0
  %3344 = vmatprep.subr.mxu0 0.0
  %3345 = vmatpush1.msra.mxu0 0.0
  %3346 = vmatprep.mubr.f32.mxu0 0.0
  %3347 = vmatmul.mubr.f32.gmra.mrb[0].mxu0 %v3277
  %v3348 = vpop.f32.mrb[0].mxu0
  %v3349 = vadd.f32 0.0, %v3348
  %v3350 = vpop.f32.mrb[0].mxu0
  %3351 = vmatprep.mubr.f32.mxu0 0.0
  %3352 = vmatmul.mubr.f32.gmra.mrb[0].mxu0 %v3280
  %v3353 = vpop.f32.mrb[0].mxu0
  %v3354 = vadd.f32 0.0, %v3353
  %v3355 = vpop.f32.mrb[0].mxu0
  %3356 = vdwg.mxu0
  %v3357 = vlaneseq
  %v3358 = vshrl.u32 %v3357, 7
  %v3359 = vsub.s32 0, %v3358
  %v3360 = vrot.slane %v59, %v3359
  %v3361 = vmul.f32 %v3349, %v3360
  %v3362 = vmul.f32 %v3354, %v3360
  %v3363 = vsel %vm288, %v3361, 0.0
  %3364 = vadd.xlane.f32.xlu0 %v3363
  %v3365 = vpop.xlane.xlu0 %3364
  %v3366 = vsel %vm288, %v3362, 0.0
  %3367 = vadd.xlane.f32.xlu0 %v3366
  %v3368 = vpop.xlane.xlu0 %3367
  %v3370 = vsel %vm288, %v60, 0
  %v3373 = vsel %vm288, %v3349, 0
  %3375 = vmatprep.subr.mxu0 0.0
  %3376 = vmatpush1.xpose.msra.mxu0 %v3373
  %3377 = vmatprep.subr.mxu0 0.0
  %3378 = vmatpush1.xpose.msra.mxu0 0.0
  %3379 = vmatprep.subr.mxu0 0.0
  %3380 = vmatpush1.xpose.msra.mxu0 0.0
  %3381 = vmatprep.subr.mxu0 0.0
  %3382 = vmatpush1.xpose.msra.mxu0 0.0
  %3383 = vmatprep.subr.mxu0 0.0
  %3384 = vmatpush1.xpose.msra.mxu0 0.0
  %3385 = vmatprep.subr.mxu0 0.0
  %3386 = vmatpush1.xpose.msra.mxu0 0.0
  %3387 = vmatprep.subr.mxu0 0.0
  %3388 = vmatpush1.xpose.msra.mxu0 0.0
  %3389 = vmatprep.subr.mxu0 0.0
  %3390 = vmatpush1.xpose.msra.mxu0 0.0
  %3391 = vmatprep.subr.mxu0 0.0
  %3392 = vmatpush1.xpose.msra.mxu0 0.0
  %3393 = vmatprep.subr.mxu0 0.0
  %3394 = vmatpush1.xpose.msra.mxu0 0.0
  %3395 = vmatprep.subr.mxu0 0.0
  %3396 = vmatpush1.xpose.msra.mxu0 0.0
  %3397 = vmatprep.subr.mxu0 0.0
  %3398 = vmatpush1.xpose.msra.mxu0 0.0
  %3399 = vmatprep.subr.mxu0 0.0
  %3400 = vmatpush1.xpose.msra.mxu0 0.0
  %3401 = vmatprep.subr.mxu0 0.0
  %3402 = vmatpush1.xpose.msra.mxu0 0.0
  %3403 = vmatprep.subr.mxu0 0.0
  %3404 = vmatpush1.xpose.msra.mxu0 0.0
  %3405 = vmatprep.subr.mxu0 0.0
  %3406 = vmatpush1.xpose.msra.mxu0 0.0
  %3407 = vmatprep.subr.mxu0 0.0
  %3408 = vmatpush1.xpose.msra.mxu0 0.0
  %3409 = vmatprep.subr.mxu0 0.0
  %3410 = vmatpush1.xpose.msra.mxu0 0.0
  %3411 = vmatprep.subr.mxu0 0.0
  %3412 = vmatpush1.xpose.msra.mxu0 0.0
  %3413 = vmatprep.subr.mxu0 0.0
  %3414 = vmatpush1.xpose.msra.mxu0 0.0
  %3415 = vmatprep.subr.mxu0 0.0
  %3416 = vmatpush1.xpose.msra.mxu0 0.0
  %3417 = vmatprep.subr.mxu0 0.0
  %3418 = vmatpush1.xpose.msra.mxu0 0.0
  %3419 = vmatprep.subr.mxu0 0.0
  %3420 = vmatpush1.xpose.msra.mxu0 0.0
  %3421 = vmatprep.subr.mxu0 0.0
  %3422 = vmatpush1.xpose.msra.mxu0 0.0
  %3423 = vmatprep.subr.mxu0 0.0
  %3424 = vmatpush1.xpose.msra.mxu0 0.0
  %3425 = vmatprep.subr.mxu0 0.0
  %3426 = vmatpush1.xpose.msra.mxu0 0.0
  %3427 = vmatprep.subr.mxu0 0.0
  %3428 = vmatpush1.xpose.msra.mxu0 0.0
  %3429 = vmatprep.subr.mxu0 0.0
  %3430 = vmatpush1.xpose.msra.mxu0 0.0
  %3431 = vmatprep.subr.mxu0 0.0
  %3432 = vmatpush1.xpose.msra.mxu0 0.0
  %3433 = vmatprep.subr.mxu0 0.0
  %3434 = vmatpush1.xpose.msra.mxu0 0.0
  %3435 = vmatprep.subr.mxu0 0.0
  %3436 = vmatpush1.xpose.msra.mxu0 0.0
  %3437 = vmatprep.subr.mxu0 0.0
  %3438 = vmatpush1.xpose.msra.mxu0 0.0
  %3439 = vmatprep.mubr.f32.mxu0 0.0
  %3440 = vmatmul.mubr.f32.gmra.mrb[0].mxu0 %v3370
  %v3441 = vpop.f32.mrb[0].mxu0
  %v3442 = vadd.f32 0.0, %v3441
  %v3443 = vpop.f32.mrb[0].mxu0
  %3444 = vdwg.mxu0
  %v3445 = vlaneseq
  %v3446 = vshrl.u32 %v3445, 7
  %v3447 = vsub.s32 0, %v3446
  %v3448 = vrot.slane %v3442, %v3447
  %v3449 = vadd.f32 %v3365, %v3448
  %v3450 = vadd.f32 %v3368, %v3448
  %vm3451 = vcmp.ge.f32.partialorder %v3449, 0.0
  %vm3452 = vcmp.ge.f32.partialorder %v3450, 0.0
  %v3453 = vmul.f32 %v3449, 0.2
  %v3454 = vmul.f32 %v3450, 0.2
  %v3455 = vsel %vm3451, %v3449, %v3453
  %v3456 = vsel %vm3452, %v3450, %v3454
  %v3457 = vsel %vm2001, %v3455, -1e+30
  %v3458 = vsel %vm2002, %v3456, -1e+30
  %v3459 = vsel %vm2003, %v3457, -inf
  %3460 = vmax.xlane.f32.xlu0 %v3459
  %v3461 = vpop.xlane.xlu0 %3460
  %v3462 = vsel %vm2003, %v3458, -inf
  %3463 = vmax.xlane.f32.xlu0 %v3462
  %v3464 = vpop.xlane.xlu0 %3463
  %v3465 = vsub.f32 %v3457, %v3461
  %v3466 = vsub.f32 %v3458, %v3464
  %v3467 = vmul.f32 %v3465, 1.442695
  %v3468 = vpow.pop %v3467
  %v3469 = vmul.f32 %v3466, 1.442695
  %v3470 = vpow.pop %v3469
  %v3471 = vsel %vm2001, %v3468, 0.0
  %v3472 = vsel %vm2002, %v3470, 0.0
  %v3473 = vsel %vm2003, %v3471, 0.0
  %3474 = vadd.xlane.f32.xlu0 %v3473
  %v3475 = vpop.xlane.xlu0 %3474
  %v3476 = vsel %vm2003, %v3472, 0.0
  %3477 = vadd.xlane.f32.xlu0 %v3476
  %v3478 = vpop.xlane.xlu0 %3477
  %vm3479 = vcmp.gt.f32.partialorder %v3475, 0.0
  %vm3480 = vcmp.gt.f32.partialorder %v3478, 0.0
  %v3481 = vrcp.pop %v3475
  %v3482 = vrcp.pop %v3478
  %v3483 = vmul.f32 %v3471, %v3481
  %v3484 = vmul.f32 %v3472, %v3482
  %v3485 = vsel %vm3479, 1, 0
  %v3486 = vsel %vm3480, 1, 0
  %vm3487 = vcmp.eq.s32.totalorder %v3485, 1
  %vm3488 = vcmp.eq.s32.totalorder %v3486, 1
  %v3489 = vsel %vm3487, %v3483, 0.0
  %v3490 = vsel %vm3488, %v3484, 0.0
  %v3491 = vmul.f32 %v3489, %v2028
  %v3492 = vmul.f32 %v3490, %v2028
  %3493 = vxpose.xlu0.b32.start [1/16] %v3491, 128
  %3494 = vxpose.xlu0.b32.cont [2/16] %v3492, 128
  %3495 = vxpose.xlu0.b32.cont [3/16] 0.0, 128
  %3496 = vxpose.xlu0.b32.cont [4/16] 0.0, 128
  %3497 = vxpose.xlu0.b32.cont [5/16] 0.0, 128
  %3498 = vxpose.xlu0.b32.cont [6/16] 0.0, 128
  %3499 = vxpose.xlu0.b32.cont [7/16] 0.0, 128
  %3500 = vxpose.xlu0.b32.cont [8/16] 0.0, 128
  %3501 = vxpose.xlu0.b32.cont [9/16] 0.0, 128
  %3502 = vxpose.xlu0.b32.cont [10/16] 0.0, 128
  %3503 = vxpose.xlu0.b32.cont [11/16] 0.0, 128
  %3504 = vxpose.xlu0.b32.cont [12/16] 0.0, 128
  %3505 = vxpose.xlu0.b32.cont [13/16] 0.0, 128
  %3506 = vxpose.xlu0.b32.cont [14/16] 0.0, 128
  %3507 = vxpose.xlu0.b32.cont [15/16] 0.0, 128
  %3508 = vxpose.xlu0.b32.end [16/16] 0.0, 128
  %v3509 = vpop.trf.xlu0
  %v3510 = vpop.trf.xlu0
  %v3511 = vpop.trf.xlu0
  %v3512 = vpop.trf.xlu0
  %v3513 = vpop.trf.xlu0
  %v3514 = vpop.trf.xlu0
  %v3515 = vpop.trf.xlu0
  %v3516 = vpop.trf.xlu0
  %v3517 = vpop.trf.xlu0
  %v3518 = vpop.trf.xlu0
  %v3519 = vpop.trf.xlu0
  %v3520 = vpop.trf.xlu0
  %v3521 = vpop.trf.xlu0
  %v3522 = vpop.trf.xlu0
  %v3523 = vpop.trf.xlu0
  %v3524 = vpop.trf.xlu0
  %v3526 = vsel %vm2345, %v3509, 0
  %3528 = vmatprep.subr.mxu0 0.0
  %3529 = vmatpush1.msra.mxu0 %v3349
  %3530 = vmatprep.subr.mxu0 0.0
  %3531 = vmatpush1.msra.mxu0 %v3354
  %3532 = vmatprep.subr.mxu0 0.0
  %3533 = vmatpush1.msra.mxu0 0.0
  %3534 = vmatprep.subr.mxu0 0.0
  %3535 = vmatpush1.msra.mxu0 0.0
  %3536 = vmatprep.subr.mxu0 0.0
  %3537 = vmatpush1.msra.mxu0 0.0
  %3538 = vmatprep.subr.mxu0 0.0
  %3539 = vmatpush1.msra.mxu0 0.0
  %3540 = vmatprep.subr.mxu0 0.0
  %3541 = vmatpush1.msra.mxu0 0.0
  %3542 = vmatprep.subr.mxu0 0.0
  %3543 = vmatpush1.msra.mxu0 0.0
  %3544 = vmatprep.subr.mxu0 0.0
  %3545 = vmatpush1.msra.mxu0 0.0
  %3546 = vmatprep.subr.mxu0 0.0
  %3547 = vmatpush1.msra.mxu0 0.0
  %3548 = vmatprep.subr.mxu0 0.0
  %3549 = vmatpush1.msra.mxu0 0.0
  %3550 = vmatprep.subr.mxu0 0.0
  %3551 = vmatpush1.msra.mxu0 0.0
  %3552 = vmatprep.subr.mxu0 0.0
  %3553 = vmatpush1.msra.mxu0 0.0
  %3554 = vmatprep.subr.mxu0 0.0
  %3555 = vmatpush1.msra.mxu0 0.0
  %3556 = vmatprep.subr.mxu0 0.0
  %3557 = vmatpush1.msra.mxu0 0.0
  %3558 = vmatprep.subr.mxu0 0.0
  %3559 = vmatpush1.msra.mxu0 0.0
  %3560 = vmatprep.subr.mxu0 0.0
  %3561 = vmatpush1.msra.mxu0 0.0
  %3562 = vmatprep.subr.mxu0 0.0
  %3563 = vmatpush1.msra.mxu0 0.0
  %3564 = vmatprep.subr.mxu0 0.0
  %3565 = vmatpush1.msra.mxu0 0.0
  %3566 = vmatprep.subr.mxu0 0.0
  %3567 = vmatpush1.msra.mxu0 0.0
  %3568 = vmatprep.subr.mxu0 0.0
  %3569 = vmatpush1.msra.mxu0 0.0
  %3570 = vmatprep.subr.mxu0 0.0
  %3571 = vmatpush1.msra.mxu0 0.0
  %3572 = vmatprep.subr.mxu0 0.0
  %3573 = vmatpush1.msra.mxu0 0.0
  %3574 = vmatprep.subr.mxu0 0.0
  %3575 = vmatpush1.msra.mxu0 0.0
  %3576 = vmatprep.subr.mxu0 0.0
  %3577 = vmatpush1.msra.mxu0 0.0
  %3578 = vmatprep.subr.mxu0 0.0
  %3579 = vmatpush1.msra.mxu0 0.0
  %3580 = vmatprep.subr.mxu0 0.0
  %3581 = vmatpush1.msra.mxu0 0.0
  %3582 = vmatprep.subr.mxu0 0.0
  %3583 = vmatpush1.msra.mxu0 0.0
  %3584 = vmatprep.subr.mxu0 0.0
  %3585 = vmatpush1.msra.mxu0 0.0
  %3586 = vmatprep.subr.mxu0 0.0
  %3587 = vmatpush1.msra.mxu0 0.0
  %3588 = vmatprep.subr.mxu0 0.0
  %3589 = vmatpush1.msra.mxu0 0.0
  %3590 = vmatprep.subr.mxu0 0.0
  %3591 = vmatpush1.msra.mxu0 0.0
  %3592 = vmatprep.mubr.f32.mxu0 0.0
  %3593 = vmatmul.mubr.f32.gmra.mrb[0].mxu0 %v3526
  %v3594 = vpop.f32.mrb[0].mxu0
  %v3595 = vadd.f32 0.0, %v3594
  %v3596 = vpop.f32.mrb[0].mxu0
  %3597 = vdwg.mxu0
  %v3599 = vsel %vm2003, %v3489, 0
  %v3602 = vsel %vm2003, %v3490, 0
  %3604 = vmatprep.subr.mxu0 0.0
  %3605 = vmatpush1.msra.mxu0 %v3595
  %3606 = vmatprep.subr.mxu0 0.0
  %3607 = vmatpush1.msra.mxu0 0.0
  %3608 = vmatprep.subr.mxu0 0.0
  %3609 = vmatpush1.msra.mxu0 0.0
  %3610 = vmatprep.subr.mxu0 0.0
  %3611 = vmatpush1.msra.mxu0 0.0
  %3612 = vmatprep.subr.mxu0 0.0
  %3613 = vmatpush1.msra.mxu0 0.0
  %3614 = vmatprep.subr.mxu0 0.0
  %3615 = vmatpush1.msra.mxu0 0.0
  %3616 = vmatprep.subr.mxu0 0.0
  %3617 = vmatpush1.msra.mxu0 0.0
  %3618 = vmatprep.subr.mxu0 0.0
  %3619 = vmatpush1.msra.mxu0 0.0
  %3620 = vmatprep.subr.mxu0 0.0
  %3621 = vmatpush1.msra.mxu0 0.0
  %3622 = vmatprep.subr.mxu0 0.0
  %3623 = vmatpush1.msra.mxu0 0.0
  %3624 = vmatprep.subr.mxu0 0.0
  %3625 = vmatpush1.msra.mxu0 0.0
  %3626 = vmatprep.subr.mxu0 0.0
  %3627 = vmatpush1.msra.mxu0 0.0
  %3628 = vmatprep.subr.mxu0 0.0
  %3629 = vmatpush1.msra.mxu0 0.0
  %3630 = vmatprep.subr.mxu0 0.0
  %3631 = vmatpush1.msra.mxu0 0.0
  %3632 = vmatprep.subr.mxu0 0.0
  %3633 = vmatpush1.msra.mxu0 0.0
  %3634 = vmatprep.subr.mxu0 0.0
  %3635 = vmatpush1.msra.mxu0 0.0
  %3636 = vmatprep.subr.mxu0 0.0
  %3637 = vmatpush1.msra.mxu0 0.0
  %3638 = vmatprep.subr.mxu0 0.0
  %3639 = vmatpush1.msra.mxu0 0.0
  %3640 = vmatprep.subr.mxu0 0.0
  %3641 = vmatpush1.msra.mxu0 0.0
  %3642 = vmatprep.subr.mxu0 0.0
  %3643 = vmatpush1.msra.mxu0 0.0
  %3644 = vmatprep.subr.mxu0 0.0
  %3645 = vmatpush1.msra.mxu0 0.0
  %3646 = vmatprep.subr.mxu0 0.0
  %3647 = vmatpush1.msra.mxu0 0.0
  %3648 = vmatprep.subr.mxu0 0.0
  %3649 = vmatpush1.msra.mxu0 0.0
  %3650 = vmatprep.subr.mxu0 0.0
  %3651 = vmatpush1.msra.mxu0 0.0
  %3652 = vmatprep.subr.mxu0 0.0
  %3653 = vmatpush1.msra.mxu0 0.0
  %3654 = vmatprep.subr.mxu0 0.0
  %3655 = vmatpush1.msra.mxu0 0.0
  %3656 = vmatprep.subr.mxu0 0.0
  %3657 = vmatpush1.msra.mxu0 0.0
  %3658 = vmatprep.subr.mxu0 0.0
  %3659 = vmatpush1.msra.mxu0 0.0
  %3660 = vmatprep.subr.mxu0 0.0
  %3661 = vmatpush1.msra.mxu0 0.0
  %3662 = vmatprep.subr.mxu0 0.0
  %3663 = vmatpush1.msra.mxu0 0.0
  %3664 = vmatprep.subr.mxu0 0.0
  %3665 = vmatpush1.msra.mxu0 0.0
  %3666 = vmatprep.subr.mxu0 0.0
  %3667 = vmatpush1.msra.mxu0 0.0
  %3668 = vmatprep.mubr.f32.mxu0 0.0
  %3669 = vmatmul.mubr.f32.gmra.mrb[0].mxu0 %v3599
  %v3670 = vpop.f32.mrb[0].mxu0
  %v3671 = vadd.f32 0.0, %v3670
  %v3672 = vpop.f32.mrb[0].mxu0
  %3673 = vmatprep.mubr.f32.mxu0 0.0
  %3674 = vmatmul.mubr.f32.gmra.mrb[0].mxu0 %v3602
  %v3675 = vpop.f32.mrb[0].mxu0
  %v3676 = vadd.f32 0.0, %v3675
  %v3677 = vpop.f32.mrb[0].mxu0
  %3678 = vdwg.mxu0
  %v3679 = vmul.f32 %v3671, %v2016
  %v3680 = vmul.f32 %v3676, %v2017
  %v3681 = vadd.f32 %v3679, 0.0
  %v3682 = vadd.f32 %v3680, 0.0
  %v3683 = vlaneseq
  %v3684 = vshrl.u32 %v3683, 7
  %v3685 = vsub.s32 0, %v3684
  %v3686 = vrot.slane %v61, %v3685
  %v3687 = vadd.f32 %v3681, %v3686
  %v3688 = vadd.f32 %v3682, %v3686
  %vm3689 = vcmp.ge.f32.partialorder %v3687, 0.0
  %vm3690 = vcmp.ge.f32.partialorder %v3688, 0.0
  %v3691 = vmul.f32 %v3687, 0.2
  %v3692 = vmul.f32 %v3688, 0.2
  %v3693 = vsel %vm3689, %v3687, %v3691
  %v3694 = vsel %vm3690, %v3688, %v3692
  %v3695 = vlaneseq
  %v3696 = vshrl.u32 %v3695, 7
  %v3697 = vsub.s32 0, %v3696
  %v3698 = vrot.slane %v62, %v3697
  %v3699 = vmul.f32 %v3693, %v3698
  %v3700 = vmul.f32 %v3694, %v3698
  %v3701 = vsel %vm288, %v3699, 0.0
  %3702 = vadd.xlane.f32.xlu0 %v3701
  %v3703 = vpop.xlane.xlu0 %3702
  %v3704 = vsel %vm288, %v3700, 0.0
  %3705 = vadd.xlane.f32.xlu0 %v3704
  %v3706 = vpop.xlane.xlu0 %3705
  %v3707 = vlaneseq
  %v3708 = vshrl.u32 %v3707, 7
  %v3709 = vsub.s32 0, %v3708
  %v3710 = vrot.slane %v63, %v3709
  %v3711 = vadd.f32 %v3703, %v3710
  %v3712 = vadd.f32 %v3706, %v3710
  %vm3713 = vcmp.ge.f32.partialorder %v3711, 0.0
  %vm3714 = vcmp.ge.f32.partialorder %v3712, 0.0
  %v3715 = vmul.f32 %v3711, 0.01
  %v3716 = vmul.f32 %v3712, 0.01
  %v3717 = vsel %vm3713, %v3711, %v3715
  %v3718 = vsel %vm3714, %v3712, %v3716
  %vm3719 = vcmask 7168
  %3720 = vst.msk [vmem:[%s3] sm:$0xff] %vm3719, %v3717
  %3721 = vst.msk [vmem:[%s3 + $0x8] sm:$0xff] %vm3719, %v3718
  // Predicated region
  $region14: #{hgat_forward.1} parent=0 // pred_check
    _
  $region15: #{hgat_forward.1} parent=0 // pred_check_branch
    %3723 = sbr.rel (0) target = $region17
  $region16: #{hgat_forward.1} parent=0 // pred_region
    _
  $region17: #{hgat_forward.1} parent=0 // pred_fallthru
    _
  // Predicated region
  $region18: #{hgat_forward.1} parent=0 // pred_check
    _
  $region19: #{hgat_forward.1} parent=0 // pred_check_branch
    %3725 = sbr.rel (0) target = $region21
  $region20: #{hgat_forward.1} parent=0 // pred_region
    _
  $region21: #{hgat_forward.1} parent=0 // pred_fallthru
    _

</llo_original>
